<compile_context>
chip_gen: v7x
topology: tpu7x:2x2x1
jax: 0.10.0
libtpu: 0.0.40
codegen_flags: <defaults>
</compile_context>

<pallas_src>
import functools

import jax
import jax.numpy as jnp
from jax.experimental import pallas as pl
from jax.experimental.pallas import tpu as pltpu

LEAKY_SLOPE = 0.2
BN_EPS = 1e-5
_K_SINGLE_BLOCK_CAP = 2048  # whole-K single block up to this contraction size


def _round_up(x, m):
    return (x + m - 1) // m * m


def _apply_act(y, activation):
    if activation == "leaky_relu":
        return jnp.where(y >= 0, y, LEAKY_SLOPE * y)
    if activation == "relu":
        return jnp.maximum(y, 0.0)
    if activation == "tanh":
        return jnp.tanh(y)
    return y


def _vmem_budget_bytes(tm, tk, tn):
    # double-buffered bf16 A/B tiles + f32 bias + double-buffered f32 out
    # + f32 accumulator, with generous slack for Mosaic internal scratch.
    need = (2 * tm * tk * 2 + 2 * tk * tn * 2 + 2 * tn * 4
            + 2 * tm * tn * 4 + tm * tn * 4)
    return int(min(max(2 * need + (4 << 20), 32 << 20), 64 << 20))


# ----------------------------------------------------------------------------
# Pallas kernels: matmul with fused bias + activation epilogue
# ----------------------------------------------------------------------------
def _mm_single_k_kernel(a_ref, b_ref, bias_ref, o_ref, *, activation):
    # Whole contraction in one block: accumulate straight into registers,
    # no scratch accumulator, fused epilogue.
    y = jnp.dot(a_ref[...], b_ref[...], preferred_element_type=jnp.float32)
    y = y + bias_ref[...]                     # (tm,tn) + (1,tn) broadcast
    o_ref[...] = _apply_act(y, activation).astype(o_ref.dtype)


def _mm_tiled_k_kernel(a_ref, b_ref, bias_ref, o_ref, acc_ref, *, activation):
    @pl.when(pl.program_id(2) == 0)
    def _():
        acc_ref[...] = jnp.zeros_like(acc_ref)

    acc_ref[...] += jnp.dot(a_ref[...], b_ref[...],
                            preferred_element_type=jnp.float32)

    @pl.when(pl.program_id(2) == pl.num_programs(2) - 1)
    def _():
        y = acc_ref[...] + bias_ref[...]
        o_ref[...] = _apply_act(y, activation).astype(o_ref.dtype)


def pallas_matmul_bias_act(a, b, bias, activation="none"):
    """out = act(a @ b + bias);  a:(M,K)  b:(K,N)  bias:(N,) -> f32 (M,N)."""
    M, K = a.shape
    Kb, N = b.shape
    assert K == Kb

    # bf16 MXU inputs, f32 accumulation.
    a = a.astype(jnp.bfloat16)
    b = b.astype(jnp.bfloat16)
    bias2d = bias.astype(jnp.float32).reshape(1, N)

    # ---- M tiling: big tiles; >= 2 blocks when possible (v7x megacore) ----
    if M >= 1024:
        tm = 512
    elif M >= 512:
        tm = 256
    else:
        tm = _round_up(M, 16)          # single full-extent M block
    Mp = _round_up(M, tm)
    if Mp != M:                        # rare: only small / ragged-M layers
        a = jnp.pad(a, ((0, Mp - M), (0, 0)))

    # ---- N tiling: full-extent (lane-dense) up to 512, else 256/128 tiles --
    if N <= 512:
        tn, Np = N, N
    else:
        tn = 256 if N % 256 == 0 else 128
        Np = _round_up(N, tn)
        if Np != N:
            b = jnp.pad(b, ((0, 0), (0, Np - N)))
            bias2d = jnp.pad(bias2d, ((0, 0), (0, Np - N)))

    grid_m, grid_n = Mp // tm, Np // tn
    out_shape = jax.ShapeDtypeStruct((Mp, Np), jnp.float32)

    if K <= _K_SINGLE_BLOCK_CAP:
        # No K grid axis, no scratch accumulator, no K padding.
        out = pl.pallas_call(
            functools.partial(_mm_single_k_kernel, activation=activation),
            out_shape=out_shape,
            grid=(grid_m, grid_n),
            in_specs=[
                pl.BlockSpec((tm, K), lambda i, j: (i, 0)),
                pl.BlockSpec((K, tn), lambda i, j: (0, j)),
                pl.BlockSpec((1, tn), lambda i, j: (0, j)),
            ],
            out_specs=pl.BlockSpec((tm, tn), lambda i, j: (i, j)),
            compiler_params=pltpu.CompilerParams(
                dimension_semantics=("parallel", "parallel"),
                vmem_limit_bytes=_vmem_budget_bytes(tm, K, tn)),
        )(a, b, bias2d)
    else:
        # Exact-divisor K tiles whenever possible (K = 16*Cin is composite).
        tk = next((c for c in (2048, 1024, 512, 256, 128) if K % c == 0), 256)
        Kp = _round_up(K, tk)
        if Kp != K:
            a = jnp.pad(a, ((0, 0), (0, Kp - K)))
            b = jnp.pad(b, ((0, Kp - K), (0, 0)))
        out = pl.pallas_call(
            functools.partial(_mm_tiled_k_kernel, activation=activation),
            out_shape=out_shape,
            grid=(grid_m, grid_n, Kp // tk),
            in_specs=[
                pl.BlockSpec((tm, tk), lambda i, j, k: (i, k)),
                pl.BlockSpec((tk, tn), lambda i, j, k: (k, j)),
                pl.BlockSpec((1, tn), lambda i, j, k: (0, j)),
            ],
            out_specs=pl.BlockSpec((tm, tn), lambda i, j, k: (i, j)),
            scratch_shapes=[pltpu.VMEM((tm, tn), jnp.float32)],
            compiler_params=pltpu.CompilerParams(
                dimension_semantics=("parallel", "parallel", "arbitrary"),
                vmem_limit_bytes=_vmem_budget_bytes(tm, tk, tn)),
        )(a, b, bias2d)

    if Mp != M or Np != N:
        out = out[:M, :N]
    return out


# ----------------------------------------------------------------------------
# Conv2d (k=4, p=1, stride 1 or 2) via im2col + Pallas matmul
# ----------------------------------------------------------------------------
def conv2d_k4_p1(x, w, b, stride, activation="none"):
    # x: (N,H,W,Cin) NHWC; w: (Cout,Cin,4,4) OIHW (PyTorch); b: (Cout,)
    N, H, W, Cin = x.shape
    Cout = w.shape[0]
    xp = jnp.pad(x, ((0, 0), (1, 1), (1, 1), (0, 0)))
    if stride == 2:
        assert H % 2 == 0 and W % 2 == 0
        Ho, Wo = H // 2, W // 2
        patches = [xp[:, ky:ky + 2 * Ho:2, kx:kx + 2 * Wo:2, :]
                   for ky in range(4) for kx in range(4)]
    else:
        Ho, Wo = H - 1, W - 1
        patches = [xp[:, ky:ky + Ho, kx:kx + Wo, :]
                   for ky in range(4) for kx in range(4)]
    # TODO(synk): stream the 16 taps from HBM inside the kernel (per-tap K
    # grid / manual DMA) instead of materializing the full im2col matrix.
    A = jnp.stack(patches, axis=3).reshape(N * Ho * Wo, 16 * Cin)
    B = jnp.transpose(w, (2, 3, 1, 0)).reshape(16 * Cin, Cout)
    out = pallas_matmul_bias_act(A, B, b, activation)
    return out.reshape(N, Ho, Wo, Cout)


# ----------------------------------------------------------------------------
# Fused BatchNorm2d (training-mode batch stats, PyTorch default) + LeakyReLU
# ----------------------------------------------------------------------------
def bn_leaky_relu(x, gamma, beta):
    mean = jnp.mean(x, axis=(0, 1, 2))
    var = jnp.var(x, axis=(0, 1, 2))                 # biased, matches PyTorch fwd
    scale = gamma * jax.lax.rsqrt(var + BN_EPS)
    shift = beta - mean * scale
    y = x * scale + shift                            # one fused elementwise pass
    return jnp.where(y >= 0, y, LEAKY_SLOPE * y)


# ----------------------------------------------------------------------------
# Parameter initialization (kaiming_normal(a=0.2) for convs, as LR_weight_init)
# ----------------------------------------------------------------------------
def init_params(key, ndf):
    ki = iter(jax.random.split(key, 16))

    def conv_p(cin, cout):
        fan_in = cin * 16
        std = (2.0 / ((1.0 + LEAKY_SLOPE ** 2) * fan_in)) ** 0.5
        w = std * jax.random.normal(next(ki), (cout, cin, 4, 4), jnp.float32)
        bound = 1.0 / (fan_in ** 0.5)
        b = jax.random.uniform(next(ki), (cout,), jnp.float32, -bound, bound)
        return {"w": w, "b": b}

    def bn_p(c):
        gamma = 1.0 + 0.02 * jax.random.normal(next(ki), (c,), jnp.float32)
        beta = jnp.zeros((c,), jnp.float32)
        return {"gamma": gamma, "beta": beta}

    return {
        "conv1": conv_p(4, ndf),
        "conv2": conv_p(ndf, ndf * 2), "bn2": bn_p(ndf * 2),
        "conv3": conv_p(ndf * 2, ndf * 4), "bn3": bn_p(ndf * 4),
        "conv4": conv_p(ndf * 4, ndf * 8), "bn4": bn_p(ndf * 8),
        "conv5": conv_p(ndf * 8, 1),
    }


# ----------------------------------------------------------------------------
# Forward pass (NLayerDiscriminator.forward semantics)
# ----------------------------------------------------------------------------
def nlayer_discriminator_forward(params, x_nchw):
    x = jnp.transpose(x_nchw, (0, 2, 3, 1))   # NCHW -> NHWC

    h = conv2d_k4_p1(x, params["conv1"]["w"], params["conv1"]["b"],
                     stride=2, activation="leaky_relu")

    h = conv2d_k4_p1(h, params["conv2"]["w"], params["conv2"]["b"], stride=2)
    h = bn_leaky_relu(h, params["bn2"]["gamma"], params["bn2"]["beta"])

    h = conv2d_k4_p1(h, params["conv3"]["w"], params["conv3"]["b"], stride=2)
    h = bn_leaky_relu(h, params["bn3"]["gamma"], params["bn3"]["beta"])

    h = conv2d_k4_p1(h, params["conv4"]["w"], params["conv4"]["b"], stride=1)
    h = bn_leaky_relu(h, params["bn4"]["gamma"], params["bn4"]["beta"])

    h = conv2d_k4_p1(h, params["conv5"]["w"], params["conv5"]["b"], stride=1)

    return jnp.transpose(h, (0, 3, 1, 2))     # NHWC -> NCHW


if __name__ == "__main__":
    ndf = 8          # small synthetic config
    batch = 2
    spatial = 64     # 3x stride-2 + 2x (k=4,s=1,p=1) layers need spatial >= 32

    key = jax.random.PRNGKey(0)
    kp, kx = jax.random.split(key)
    params = init_params(kp, ndf)
    x = jax.random.normal(kx, (batch, 4, spatial, spatial), jnp.float32)

    fwd = jax.jit(nlayer_discriminator_forward)
    out = jax.block_until_ready(fwd(params, x))

    expect_hw = spatial // 8 - 2              # 64 -> 32 -> 16 -> 8 -> 7 -> 6
    assert out.shape == (batch, 1, expect_hw, expect_hw), out.shape
    assert bool(jnp.all(jnp.isfinite(out)))
    print("KERNEL_OK")
</pallas_src>

<mosaic_0001>
module attributes {stable_mosaic.version = 11 : i64} {
  func.func @_mm_single_k_kernel(%arg0: i32, %arg1: i32, %arg2: memref<512x64xbf16, #tpu.memory_space<vmem>>, %arg3: memref<64x8xbf16, #tpu.memory_space<vmem>>, %arg4: memref<1x8xf32, #tpu.memory_space<vmem>>, %arg5: memref<512x8xf32, #tpu.memory_space<vmem>>) attributes {dimension_semantics = [#tpu.dimension_semantics<parallel>, #tpu.dimension_semantics<parallel>], iteration_bounds = array<i64: 4, 1>, scalar_prefetch = 0 : i64, scratch_operands = 0 : i64, tpu.core_type = #tpu.core_type<tc>, window_params = [{transform_indices = @transform_0, window_bounds = array<i64: 512, 64>}, {transform_indices = @transform_1, window_bounds = array<i64: 64, 8>}, {transform_indices = @transform_2, window_bounds = array<i64: 1, 8>}, {transform_indices = @transform_3, window_bounds = array<i64: 512, 8>}]} {
    %c0 = arith.constant 0 : index
    %c0_0 = arith.constant 0 : index
    %0 = vector.load %arg2[%c0, %c0_0] : memref<512x64xbf16, #tpu.memory_space<vmem>>, vector<512x64xbf16>
    %c0_1 = arith.constant 0 : index
    %c0_2 = arith.constant 0 : index
    %1 = vector.load %arg3[%c0_1, %c0_2] : memref<64x8xbf16, #tpu.memory_space<vmem>>, vector<64x8xbf16>
    %cst = arith.constant dense<0.000000e+00> : vector<512x8xf32>
    %2 = tpu.matmul %0, %1, %cst {dimension_numbers = #tpu.dot_dimension_numbers<[1], [0], [0], [1], [0, 0, 1, 1], [], []>} : vector<512x64xbf16>, vector<64x8xbf16>, vector<512x8xf32> -> vector<512x8xf32>
    %c0_3 = arith.constant 0 : index
    %c0_4 = arith.constant 0 : index
    %3 = vector.load %arg4[%c0_3, %c0_4] : memref<1x8xf32, #tpu.memory_space<vmem>>, vector<1x8xf32>
    %4 = vector.broadcast %3 : vector<1x8xf32> to vector<512x8xf32>
    %5 = arith.addf %2, %4 : vector<512x8xf32>
    %cst_5 = arith.constant 0.000000e+00 : f32
    %6 = vector.broadcast %cst_5 : f32 to vector<512x8xf32>
    %7 = arith.cmpf oge, %5, %6 : vector<512x8xf32>
    %cst_6 = arith.constant 2.000000e-01 : f32
    %8 = vector.broadcast %cst_6 : f32 to vector<512x8xf32>
    %9 = arith.mulf %8, %5 : vector<512x8xf32>
    %10 = arith.select %7, %5, %9 : vector<512x8xi1>, vector<512x8xf32>
    %c0_7 = arith.constant 0 : index
    %c0_8 = arith.constant 0 : index
    %11 = vector.load %arg5[%c0_7, %c0_8] : memref<512x8xf32, #tpu.memory_space<vmem>>, vector<512x8xf32>
    tpu.vector_store %arg5[%c0_7, %c0_8], %10 {strides = array<i32>} : memref<512x8xf32, #tpu.memory_space<vmem>>, vector<512x8xf32>,
    return
  }
  func.func @transform_0(%arg0: i32, %arg1: i32) -> (i32, i32) {
    %c0_i32 = arith.constant 0 : i32
    %c0_i32_0 = arith.constant 0 : i32
    return %arg0, %c0_i32 : i32, i32
  }
  func.func @transform_1(%arg0: i32, %arg1: i32) -> (i32, i32) {
    %c0_i32 = arith.constant 0 : i32
    %c0_i32_0 = arith.constant 0 : i32
    return %c0_i32, %arg1 : i32, i32
  }
  func.func @transform_2(%arg0: i32, %arg1: i32) -> (i32, i32) {
    %c0_i32 = arith.constant 0 : i32
    %c0_i32_0 = arith.constant 0 : i32
    return %c0_i32, %arg1 : i32, i32
  }
  func.func @transform_3(%arg0: i32, %arg1: i32) -> (i32, i32) {
    %c0_i32 = arith.constant 0 : i32
    return %arg0, %arg1 : i32, i32
  }
}

module attributes {stable_mosaic.version = 11 : i64} {
  func.func @_mm_single_k_kernel(%arg0: i32, %arg1: i32, %arg2: memref<256x128xbf16, #tpu.memory_space<vmem>>, %arg3: memref<128x16xbf16, #tpu.memory_space<vmem>>, %arg4: memref<1x16xf32, #tpu.memory_space<vmem>>, %arg5: memref<256x16xf32, #tpu.memory_space<vmem>>) attributes {dimension_semantics = [#tpu.dimension_semantics<parallel>, #tpu.dimension_semantics<parallel>], iteration_bounds = array<i64: 2, 1>, scalar_prefetch = 0 : i64, scratch_operands = 0 : i64, tpu.core_type = #tpu.core_type<tc>, window_params = [{transform_indices = @transform_0, window_bounds = array<i64: 256, 128>}, {transform_indices = @transform_1, window_bounds = array<i64: 128, 16>}, {transform_indices = @transform_2, window_bounds = array<i64: 1, 16>}, {transform_indices = @transform_3, window_bounds = array<i64: 256, 16>}]} {
    %c0 = arith.constant 0 : index
    %c0_0 = arith.constant 0 : index
    %0 = vector.load %arg2[%c0, %c0_0] : memref<256x128xbf16, #tpu.memory_space<vmem>>, vector<256x128xbf16>
    %c0_1 = arith.constant 0 : index
    %c0_2 = arith.constant 0 : index
    %1 = vector.load %arg3[%c0_1, %c0_2] : memref<128x16xbf16, #tpu.memory_space<vmem>>, vector<128x16xbf16>
    %cst = arith.constant dense<0.000000e+00> : vector<256x16xf32>
    %2 = tpu.matmul %0, %1, %cst {dimension_numbers = #tpu.dot_dimension_numbers<[1], [0], [0], [1], [0, 0, 1, 1], [], []>} : vector<256x128xbf16>, vector<128x16xbf16>, vector<256x16xf32> -> vector<256x16xf32>
    %c0_3 = arith.constant 0 : index
    %c0_4 = arith.constant 0 : index
    %3 = vector.load %arg4[%c0_3, %c0_4] : memref<1x16xf32, #tpu.memory_space<vmem>>, vector<1x16xf32>
    %4 = vector.broadcast %3 : vector<1x16xf32> to vector<256x16xf32>
    %5 = arith.addf %2, %4 : vector<256x16xf32>
    %c0_5 = arith.constant 0 : index
    %c0_6 = arith.constant 0 : index
    %6 = vector.load %arg5[%c0_5, %c0_6] : memref<256x16xf32, #tpu.memory_space<vmem>>, vector<256x16xf32>
    tpu.vector_store %arg5[%c0_5, %c0_6], %5 {strides = array<i32>} : memref<256x16xf32, #tpu.memory_space<vmem>>, vector<256x16xf32>,
    return
  }
  func.func @transform_0(%arg0: i32, %arg1: i32) -> (i32, i32) {
    %c0_i32 = arith.constant 0 : i32
    %c0_i32_0 = arith.constant 0 : i32
    return %arg0, %c0_i32 : i32, i32
  }
  func.func @transform_1(%arg0: i32, %arg1: i32) -> (i32, i32) {
    %c0_i32 = arith.constant 0 : i32
    %c0_i32_0 = arith.constant 0 : i32
    return %c0_i32, %arg1 : i32, i32
  }
  func.func @transform_2(%arg0: i32, %arg1: i32) -> (i32, i32) {
    %c0_i32 = arith.constant 0 : i32
    %c0_i32_0 = arith.constant 0 : i32
    return %c0_i32, %arg1 : i32, i32
  }
  func.func @transform_3(%arg0: i32, %arg1: i32) -> (i32, i32) {
    %c0_i32 = arith.constant 0 : i32
    return %arg0, %arg1 : i32, i32
  }
}

module attributes {stable_mosaic.version = 11 : i64} {
  func.func @_mm_single_k_kernel(%arg0: i32, %arg1: i32, %arg2: memref<128x256xbf16, #tpu.memory_space<vmem>>, %arg3: memref<256x32xbf16, #tpu.memory_space<vmem>>, %arg4: memref<1x32xf32, #tpu.memory_space<vmem>>, %arg5: memref<128x32xf32, #tpu.memory_space<vmem>>) attributes {dimension_semantics = [#tpu.dimension_semantics<parallel>, #tpu.dimension_semantics<parallel>], iteration_bounds = array<i64: 1, 1>, scalar_prefetch = 0 : i64, scratch_operands = 0 : i64, tpu.core_type = #tpu.core_type<tc>, window_params = [{transform_indices = @transform_0, window_bounds = array<i64: 128, 256>}, {transform_indices = @transform_1, window_bounds = array<i64: 256, 32>}, {transform_indices = @transform_2, window_bounds = array<i64: 1, 32>}, {transform_indices = @transform_3, window_bounds = array<i64: 128, 32>}]} {
    %c0 = arith.constant 0 : index
    %c0_0 = arith.constant 0 : index
    %0 = vector.load %arg2[%c0, %c0_0] : memref<128x256xbf16, #tpu.memory_space<vmem>>, vector<128x256xbf16>
    %c0_1 = arith.constant 0 : index
    %c0_2 = arith.constant 0 : index
    %1 = vector.load %arg3[%c0_1, %c0_2] : memref<256x32xbf16, #tpu.memory_space<vmem>>, vector<256x32xbf16>
    %cst = arith.constant dense<0.000000e+00> : vector<128x32xf32>
    %2 = tpu.matmul %0, %1, %cst {dimension_numbers = #tpu.dot_dimension_numbers<[1], [0], [0], [1], [0, 0, 1, 1], [], []>} : vector<128x256xbf16>, vector<256x32xbf16>, vector<128x32xf32> -> vector<128x32xf32>
    %c0_3 = arith.constant 0 : index
    %c0_4 = arith.constant 0 : index
    %3 = vector.load %arg4[%c0_3, %c0_4] : memref<1x32xf32, #tpu.memory_space<vmem>>, vector<1x32xf32>
    %4 = vector.broadcast %3 : vector<1x32xf32> to vector<128x32xf32>
    %5 = arith.addf %2, %4 : vector<128x32xf32>
    %c0_5 = arith.constant 0 : index
    %c0_6 = arith.constant 0 : index
    %6 = vector.load %arg5[%c0_5, %c0_6] : memref<128x32xf32, #tpu.memory_space<vmem>>, vector<128x32xf32>
    tpu.vector_store %arg5[%c0_5, %c0_6], %5 {strides = array<i32>} : memref<128x32xf32, #tpu.memory_space<vmem>>, vector<128x32xf32>,
    return
  }
  func.func @transform_0(%arg0: i32, %arg1: i32) -> (i32, i32) {
    %c0_i32 = arith.constant 0 : i32
    %c0_i32_0 = arith.constant 0 : i32
    return %arg0, %c0_i32 : i32, i32
  }
  func.func @transform_1(%arg0: i32, %arg1: i32) -> (i32, i32) {
    %c0_i32 = arith.constant 0 : i32
    %c0_i32_0 = arith.constant 0 : i32
    return %c0_i32, %arg1 : i32, i32
  }
  func.func @transform_2(%arg0: i32, %arg1: i32) -> (i32, i32) {
    %c0_i32 = arith.constant 0 : i32
    %c0_i32_0 = arith.constant 0 : i32
    return %c0_i32, %arg1 : i32, i32
  }
  func.func @transform_3(%arg0: i32, %arg1: i32) -> (i32, i32) {
    %c0_i32 = arith.constant 0 : i32
    return %arg0, %arg1 : i32, i32
  }
}

module attributes {stable_mosaic.version = 11 : i64} {
  func.func @_mm_single_k_kernel(%arg0: i32, %arg1: i32, %arg2: memref<112x512xbf16, #tpu.memory_space<vmem>>, %arg3: memref<512x64xbf16, #tpu.memory_space<vmem>>, %arg4: memref<1x64xf32, #tpu.memory_space<vmem>>, %arg5: memref<112x64xf32, #tpu.memory_space<vmem>>) attributes {dimension_semantics = [#tpu.dimension_semantics<parallel>, #tpu.dimension_semantics<parallel>], iteration_bounds = array<i64: 1, 1>, scalar_prefetch = 0 : i64, scratch_operands = 0 : i64, tpu.core_type = #tpu.core_type<tc>, window_params = [{transform_indices = @transform_0, window_bounds = array<i64: 112, 512>}, {transform_indices = @transform_1, window_bounds = array<i64: 512, 64>}, {transform_indices = @transform_2, window_bounds = array<i64: 1, 64>}, {transform_indices = @transform_3, window_bounds = array<i64: 112, 64>}]} {
    %c0 = arith.constant 0 : index
    %c0_0 = arith.constant 0 : index
    %0 = vector.load %arg2[%c0, %c0_0] : memref<112x512xbf16, #tpu.memory_space<vmem>>, vector<112x512xbf16>
    %c0_1 = arith.constant 0 : index
    %c0_2 = arith.constant 0 : index
    %1 = vector.load %arg3[%c0_1, %c0_2] : memref<512x64xbf16, #tpu.memory_space<vmem>>, vector<512x64xbf16>
    %cst = arith.constant dense<0.000000e+00> : vector<112x64xf32>
    %2 = tpu.matmul %0, %1, %cst {dimension_numbers = #tpu.dot_dimension_numbers<[1], [0], [0], [1], [0, 0, 1, 1], [], []>} : vector<112x512xbf16>, vector<512x64xbf16>, vector<112x64xf32> -> vector<112x64xf32>
    %c0_3 = arith.constant 0 : index
    %c0_4 = arith.constant 0 : index
    %3 = vector.load %arg4[%c0_3, %c0_4] : memref<1x64xf32, #tpu.memory_space<vmem>>, vector<1x64xf32>
    %4 = vector.broadcast %3 : vector<1x64xf32> to vector<112x64xf32>
    %5 = arith.addf %2, %4 : vector<112x64xf32>
    %c0_5 = arith.constant 0 : index
    %c0_6 = arith.constant 0 : index
    %6 = vector.load %arg5[%c0_5, %c0_6] : memref<112x64xf32, #tpu.memory_space<vmem>>, vector<112x64xf32>
    tpu.vector_store %arg5[%c0_5, %c0_6], %5 {strides = array<i32>} : memref<112x64xf32, #tpu.memory_space<vmem>>, vector<112x64xf32>,
    return
  }
  func.func @transform_0(%arg0: i32, %arg1: i32) -> (i32, i32) {
    %c0_i32 = arith.constant 0 : i32
    %c0_i32_0 = arith.constant 0 : i32
    return %arg0, %c0_i32 : i32, i32
  }
  func.func @transform_1(%arg0: i32, %arg1: i32) -> (i32, i32) {
    %c0_i32 = arith.constant 0 : i32
    %c0_i32_0 = arith.constant 0 : i32
    return %c0_i32, %arg1 : i32, i32
  }
  func.func @transform_2(%arg0: i32, %arg1: i32) -> (i32, i32) {
    %c0_i32 = arith.constant 0 : i32
    %c0_i32_0 = arith.constant 0 : i32
    return %c0_i32, %arg1 : i32, i32
  }
  func.func @transform_3(%arg0: i32, %arg1: i32) -> (i32, i32) {
    %c0_i32 = arith.constant 0 : i32
    return %arg0, %arg1 : i32, i32
  }
}

module attributes {stable_mosaic.version = 11 : i64} {
  func.func @_mm_single_k_kernel(%arg0: i32, %arg1: i32, %arg2: memref<80x1024xbf16, #tpu.memory_space<vmem>>, %arg3: memref<1024x1xbf16, #tpu.memory_space<vmem>>, %arg4: memref<1x1xf32, #tpu.memory_space<vmem>>, %arg5: memref<80x1xf32, #tpu.memory_space<vmem>>) attributes {dimension_semantics = [#tpu.dimension_semantics<parallel>, #tpu.dimension_semantics<parallel>], iteration_bounds = array<i64: 1, 1>, scalar_prefetch = 0 : i64, scratch_operands = 0 : i64, tpu.core_type = #tpu.core_type<tc>, window_params = [{transform_indices = @transform_0, window_bounds = array<i64: 80, 1024>}, {transform_indices = @transform_1, window_bounds = array<i64: 1024, 1>}, {transform_indices = @transform_2, window_bounds = array<i64: 1, 1>}, {transform_indices = @transform_3, window_bounds = array<i64: 80, 1>}]} {
    %c0 = arith.constant 0 : index
    %c0_0 = arith.constant 0 : index
    %0 = vector.load %arg2[%c0, %c0_0] : memref<80x1024xbf16, #tpu.memory_space<vmem>>, vector<80x1024xbf16>
    %c0_1 = arith.constant 0 : index
    %c0_2 = arith.constant 0 : index
    %1 = vector.load %arg3[%c0_1, %c0_2] : memref<1024x1xbf16, #tpu.memory_space<vmem>>, vector<1024x1xbf16>
    %cst = arith.constant dense<0.000000e+00> : vector<80x1xf32>
    %2 = tpu.matmul %0, %1, %cst {dimension_numbers = #tpu.dot_dimension_numbers<[1], [0], [0], [1], [0, 0, 1, 1], [], []>} : vector<80x1024xbf16>, vector<1024x1xbf16>, vector<80x1xf32> -> vector<80x1xf32>
    %c0_3 = arith.constant 0 : index
    %c0_4 = arith.constant 0 : index
    %3 = vector.load %arg4[%c0_3, %c0_4] : memref<1x1xf32, #tpu.memory_space<vmem>>, vector<1x1xf32>
    %4 = vector.broadcast %3 : vector<1x1xf32> to vector<80x1xf32>
    %5 = arith.addf %2, %4 : vector<80x1xf32>
    %c0_5 = arith.constant 0 : index
    %c0_6 = arith.constant 0 : index
    %6 = vector.load %arg5[%c0_5, %c0_6] : memref<80x1xf32, #tpu.memory_space<vmem>>, vector<80x1xf32>
    tpu.vector_store %arg5[%c0_5, %c0_6], %5 {strides = array<i32>} : memref<80x1xf32, #tpu.memory_space<vmem>>, vector<80x1xf32>,
    return
  }
  func.func @transform_0(%arg0: i32, %arg1: i32) -> (i32, i32) {
    %c0_i32 = arith.constant 0 : i32
    %c0_i32_0 = arith.constant 0 : i32
    return %arg0, %c0_i32 : i32, i32
  }
  func.func @transform_1(%arg0: i32, %arg1: i32) -> (i32, i32) {
    %c0_i32 = arith.constant 0 : i32
    %c0_i32_0 = arith.constant 0 : i32
    return %c0_i32, %arg1 : i32, i32
  }
  func.func @transform_2(%arg0: i32, %arg1: i32) -> (i32, i32) {
    %c0_i32 = arith.constant 0 : i32
    %c0_i32_0 = arith.constant 0 : i32
    return %c0_i32, %arg1 : i32, i32
  }
  func.func @transform_3(%arg0: i32, %arg1: i32) -> (i32, i32) {
    %c0_i32 = arith.constant 0 : i32
    return %arg0, %arg1 : i32, i32
  }
}

</mosaic_0001>

<llo_original>
// kernel: nlayer_discriminator_forward.5
$region0: #{nlayer_discriminator_forward.5}
  #allocation0 [shape = 'u32[]', space=smem, size = 0x4, offset = 0x4, fixed_abs, tag = 'smem constant byte address 0x4 - core index']
  #allocation1 [shape = 'u32[144,128]{1,0:T(1,128)}', space=vmem, size = 0x12000, scoped, tag = 'internal scratch']
  %s0 = inlined_call_operand.vmem [shape: bf16[2048,64], index: 0, kind: input, shape index: {}]
  %s1 = inlined_call_operand.vmem [shape: bf16[64,8], index: 1, kind: input, shape index: {}]
  %s2 = inlined_call_operand.vmem [shape: f32[1,8], index: 2, kind: input, shape index: {}]
  %s3 = inlined_call_operand.vmem [shape: f32[2048,8], index: 3, kind: output, shape index: {}]
  %s4 = sld [smem:[#allocation0]]
  $region45: #{nlayer_discriminator_forward.5} parent=0
    _
  %s6 = ssub.s32 1, %s4
  %s7 = scalar_select 0, %s6, %s4
  loop: start=0, step=1, limit=6
  $region2: #{nlayer_discriminator_forward.5} parent=0 // loop_pre_header
    _
  $region3: #{nlayer_discriminator_forward.5} parent=0 // loop_header
    %s9 = sphi 0, %s13
    %p10 = scmp.ge.s32.totalorder %s9, 6
    %s16 = sphi 0, %s28
    %s17 = sphi 0, %s24
    %s18 = sphi 0, %s16
    %s19 = sphi 0, %s17
    %s20 = sphi 0, %s18
    %s21 = sphi 0, %s19
    %s31 = sphi 0, %s33
    %s34 = sphi 0, %s31
    %s35 = sphi 0, %s34
    %s51 = sphi 0, %s35
    %s57 = sphi 0, %s59
    %s60 = sphi 0, %s57
    %s61 = sphi 0, %s60
    %s77 = sphi 0, %s61
    %s83 = sphi 0, %s85
    %s86 = sphi 0, %s83
    %s87 = sphi 0, %s86
    %s103 = sphi 0, %s87
    %s111 = sphi 0, %s113
    %s114 = sphi 0, %s111
    %s115 = sphi 0, %s114
    %s131 = sphi 0, %s115
  $region4: #{nlayer_discriminator_forward.5} parent=0 // loop_header_branch
    %12 = sbr.rel (%p10) target = $region8
  $region5: #{nlayer_discriminator_forward.5} parent=0 // loop_body
    %s14 = ssub.s32 %s9, 1
    %s15 = ssub.s32 %s9, 2
    %s22 = sadd.s32 1, %s17
    %p23 = scmp.ge.s32.totalorder %s22, 1
    %s24 = scalar_select %p23, 0, %s22
    %s25 = sadd.s32 1, %s16
    %s26 = scalar_select %p23, %s25, %s16
    %p27 = scmp.ge.s32.totalorder %s26, 4
    %s28 = scalar_select %p27, 0, %s26
    %s29 = ssub.s32 %s16, %s28
    %p30 = scmp.eq.s32.totalorder %s29, 0
    %s32 = sadd.s32 %s31, 1
    %s33 = scalar_select %p30, %s31, %s32
    %p36 = pneg %p30
    %p37 = scmp.eq.s32.totalorder %s9, 3
    %p38 = por %p36, %p37
    %p39 = scmp.ne.s32.totalorder %s31, %s34
    %p40 = scmp.eq.s32.totalorder %s9, 0
    %p41 = por %p39, %p40
    %p42 = scmp.ne.s32.totalorder %s31, %s34
    %p43 = scmp.eq.s32.totalorder %s14, 3
    %p44 = por %p42, %p43
    %p45 = scmp.ne.s32.totalorder %s34, %s35
    %p46 = scmp.eq.s32.totalorder %s14, 0
    %p47 = por %p45, %p46
    %p48 = scmp.ne.s32.totalorder %s34, %s35
    %p49 = scmp.eq.s32.totalorder %s15, 3
    %p50 = por %p48, %p49
    %p52 = scmp.ne.s32.totalorder %s35, %s51
    %p53 = scmp.eq.s32.totalorder %s15, 0
    %p54 = por %p52, %p53
    %s55 = ssub.s32 %s17, %s24
    %p56 = scmp.eq.s32.totalorder %s55, 0
    %s58 = sadd.s32 %s57, 1
    %s59 = scalar_select %p56, %s57, %s58
    %p62 = pneg %p56
    %p63 = scmp.eq.s32.totalorder %s9, 3
    %p64 = por %p62, %p63
    %p65 = scmp.ne.s32.totalorder %s57, %s60
    %p66 = scmp.eq.s32.totalorder %s9, 0
    %p67 = por %p65, %p66
    %p68 = scmp.ne.s32.totalorder %s57, %s60
    %p69 = scmp.eq.s32.totalorder %s14, 3
    %p70 = por %p68, %p69
    %p71 = scmp.ne.s32.totalorder %s60, %s61
    %p72 = scmp.eq.s32.totalorder %s14, 0
    %p73 = por %p71, %p72
    %p74 = scmp.ne.s32.totalorder %s60, %s61
    %p75 = scmp.eq.s32.totalorder %s15, 3
    %p76 = por %p74, %p75
    %p78 = scmp.ne.s32.totalorder %s61, %s77
    %p79 = scmp.eq.s32.totalorder %s15, 0
    %p80 = por %p78, %p79
    %s81 = ssub.s32 %s17, %s24
    %p82 = scmp.eq.s32.totalorder %s81, 0
    %s84 = sadd.s32 %s83, 1
    %s85 = scalar_select %p82, %s83, %s84
    %p88 = pneg %p82
    %p89 = scmp.eq.s32.totalorder %s9, 3
    %p90 = por %p88, %p89
    %p91 = scmp.ne.s32.totalorder %s83, %s86
    %p92 = scmp.eq.s32.totalorder %s9, 0
    %p93 = por %p91, %p92
    %p94 = scmp.ne.s32.totalorder %s83, %s86
    %p95 = scmp.eq.s32.totalorder %s14, 3
    %p96 = por %p94, %p95
    %p97 = scmp.ne.s32.totalorder %s86, %s87
    %p98 = scmp.eq.s32.totalorder %s14, 0
    %p99 = por %p97, %p98
    %p100 = scmp.ne.s32.totalorder %s86, %s87
    %p101 = scmp.eq.s32.totalorder %s15, 3
    %p102 = por %p100, %p101
    %p104 = scmp.ne.s32.totalorder %s87, %s103
    %p105 = scmp.eq.s32.totalorder %s15, 0
    %p106 = por %p104, %p105
    %s107 = ssub.s32 %s16, %s28
    %s108 = ssub.s32 %s17, %s24
    %s109 = sor.u32 %s107, %s108
    %p110 = scmp.eq.s32.totalorder %s109, 0
    %s112 = sadd.s32 %s111, 1
    %s113 = scalar_select %p110, %s111, %s112
    %p116 = pneg %p110
    %p117 = scmp.eq.s32.totalorder %s9, 3
    %p118 = por %p116, %p117
    %p119 = scmp.ne.s32.totalorder %s111, %s114
    %p120 = scmp.eq.s32.totalorder %s9, 0
    %p121 = por %p119, %p120
    %p122 = scmp.ne.s32.totalorder %s111, %s114
    %p123 = scmp.eq.s32.totalorder %s14, 3
    %p124 = por %p122, %p123
    %p125 = scmp.ne.s32.totalorder %s114, %s115
    %p126 = scmp.eq.s32.totalorder %s14, 0
    %p127 = por %p125, %p126
    %p128 = scmp.ne.s32.totalorder %s114, %s115
    %p129 = scmp.eq.s32.totalorder %s15, 3
    %p130 = por %p128, %p129
    %p132 = scmp.ne.s32.totalorder %s115, %s131
    %p133 = scmp.eq.s32.totalorder %s15, 0
    %p134 = por %p132, %p133
    %p135 = scmp.le.s32.totalorder 1, %s9
    %p136 = scmp.lt.s32.totalorder %s9, 5
    %p137 = pnand %p135, %p136
    %p138 = pneg %p137
    // Predicated region
    $region9: #{nlayer_discriminator_forward.5} parent=5 // pred_check
      _
    $region10: #{nlayer_discriminator_forward.5} parent=5 // pred_check_branch
      %140 = sbr.rel (%p137) target = $region12
    $region11: #{nlayer_discriminator_forward.5} parent=5 // pred_region
      %s141 = ssub.s32 %s9, 1
      // Predicated region
      $region13: #{nlayer_discriminator_forward.5} parent=11 // pred_check
        %p142 = pneg %p73
      $region14: #{nlayer_discriminator_forward.5} parent=11 // pred_check_branch
        %144 = sbr.rel (%p142) target = $region16
      $region15: #{nlayer_discriminator_forward.5} parent=11 // pred_region
        %p145 = scmp.lt.s32.totalorder %s19, 0
        %s146 = scalar_select %p145, %s19, 0
        %s147 = smul.addr %s146, 4
        %s148 = scalar_lea.vmem %s1, %s147
      $region16: #{nlayer_discriminator_forward.5} parent=11 // pred_fallthru
        _
      // Predicated region
      $region17: #{nlayer_discriminator_forward.5} parent=11 // pred_check
        %p149 = pneg %p99
      $region18: #{nlayer_discriminator_forward.5} parent=11 // pred_check_branch
        %151 = sbr.rel (%p149) target = $region20
      $region19: #{nlayer_discriminator_forward.5} parent=11 // pred_region
        %p152 = scmp.lt.s32.totalorder %s19, 0
        %s153 = scalar_select %p152, %s19, 0
        %s154 = scalar_lea.vmem %s2, %s153
      $region20: #{nlayer_discriminator_forward.5} parent=11 // pred_fallthru
        _
    $region12: #{nlayer_discriminator_forward.5} parent=5 // pred_fallthru
      _
    %p155 = scmp.lt.s32.totalorder %s9, 4
    // Predicated region
    $region21: #{nlayer_discriminator_forward.5} parent=5 // pred_check
      %p156 = pneg %p155
    $region22: #{nlayer_discriminator_forward.5} parent=5 // pred_check_branch
      %158 = sbr.rel (%p156) target = $region24
    $region23: #{nlayer_discriminator_forward.5} parent=5 // pred_region
      // Predicated region
      $region25: #{nlayer_discriminator_forward.5} parent=23 // pred_check
        %p159 = pneg %p41
      $region26: #{nlayer_discriminator_forward.5} parent=23 // pred_check_branch
        %161 = sbr.rel (%p159) target = $region28
      $region27: #{nlayer_discriminator_forward.5} parent=23 // pred_region
        %s162 = smul.u32 64, %s16
        %p163 = scmp.lt.s32.totalorder %s162, 255
        %s164 = scalar_select %p163, %s162, 255
        %s165 = smul.addr %s164, 4
        %s166 = scalar_lea.vmem %s0, %s165
        %s167 = smul.u32 64, %s16
      $region28: #{nlayer_discriminator_forward.5} parent=23 // pred_fallthru
        _
    $region24: #{nlayer_discriminator_forward.5} parent=5 // pred_fallthru
      _
    %p168 = scmp.le.s32.totalorder 1, %s9
    %p169 = scmp.lt.s32.totalorder %s9, 5
    %p170 = pnand %p168, %p169
    %p171 = pneg %p170
    // Predicated region
    $region29: #{nlayer_discriminator_forward.5} parent=5 // pred_check
      _
    $region30: #{nlayer_discriminator_forward.5} parent=5 // pred_check_branch
      %173 = sbr.rel (%p170) target = $region32
    $region31: #{nlayer_discriminator_forward.5} parent=5 // pred_region
      %s174 = ssub.s32 %s9, 1
      %s175 = smul.u32 64, %s18
      %p176 = scmp.lt.s32.totalorder %s175, 255
      %s177 = scalar_select %p176, %s175, 255
      %s178 = smul.addr %s177, 4
      %s179 = scalar_lea.vmem %s0, %s178
      %p180 = pneg %p47
      %p181 = pneg %p44
      %p182 = scmp.lt.s32.totalorder %s19, 0
      %s183 = scalar_select %p182, %s19, 0
      %s184 = smul.addr %s183, 4
      %s185 = scalar_lea.vmem %s1, %s184
      %p186 = pneg %p73
      %p187 = pneg %p70
      %p188 = scmp.lt.s32.totalorder %s19, 0
      %s189 = scalar_select %p188, %s19, 0
      %s190 = scalar_lea.vmem %s2, %s189
      %p191 = pneg %p99
      %p192 = pneg %p96
      %p193 = pneg %p127
      %p194 = pneg %p124
      %s195 = smul.u32 64, %s18
      %p196 = scmp.lt.s32.totalorder %s195, 255
      %s197 = scalar_select %p196, %s195, 255
      %p198 = scmp.lt.s32.totalorder %s19, 0
      %s199 = scalar_select %p198, %s19, 0
      %s200 = sadd.s32 %s199, %s197
      %s201 = smul.addr %s200, 8
      %s202 = scalar_lea.vmem %s3, %s201
      %s203 = smul.u32 64, %s18
      %p204 = scmp.lt.s32.totalorder %s203, 255
      %s205 = scalar_select %p204, %s203, 255
      %s206 = smul.addr %s205, 4
      %s207 = scalar_lea.vmem %s0, %s206
      %s208 = smul.u32 64, %s18
      %p209 = scmp.lt.s32.totalorder %s19, 0
      %s210 = scalar_select %p209, %s19, 0
      %s211 = smul.addr %s210, 4
      %s212 = scalar_lea.vmem %s1, %s211
      %p213 = scmp.lt.s32.totalorder %s19, 0
      %s214 = scalar_select %p213, %s19, 0
      %s215 = scalar_lea.vmem %s2, %s214
      %s216 = smul.u32 64, %s18
      %p217 = scmp.lt.s32.totalorder %s216, 255
      %s218 = scalar_select %p217, %s216, 255
      %p219 = scmp.lt.s32.totalorder %s19, 0
      %s220 = scalar_select %p219, %s19, 0
      %s221 = sadd.s32 %s220, %s218
      %s222 = smul.addr %s221, 8
      %s223 = scalar_lea.vmem %s3, %s222
      %s224 = smul.u32 64, %s18
      %v226 = vld [vmem:[%s207] sm:$0xf]
      %v227 = vld [vmem:[%s207 + $0x4] sm:$0xf]
      %v228 = vld [vmem:[%s207 + $0x8] sm:$0xf]
      %v229 = vld [vmem:[%s207 + $0xc] sm:$0xf]
      %v230 = vld [vmem:[%s207 + $0x10] sm:$0xf]
      %v231 = vld [vmem:[%s207 + $0x14] sm:$0xf]
      %v232 = vld [vmem:[%s207 + $0x18] sm:$0xf]
      %v233 = vld [vmem:[%s207 + $0x1c] sm:$0xf]
      %v234 = vld [vmem:[%s207 + $0x20] sm:$0xf]
      %v235 = vld [vmem:[%s207 + $0x24] sm:$0xf]
      %v236 = vld [vmem:[%s207 + $0x28] sm:$0xf]
      %v237 = vld [vmem:[%s207 + $0x2c] sm:$0xf]
      %v238 = vld [vmem:[%s207 + $0x30] sm:$0xf]
      %v239 = vld [vmem:[%s207 + $0x34] sm:$0xf]
      %v240 = vld [vmem:[%s207 + $0x38] sm:$0xf]
      %v241 = vld [vmem:[%s207 + $0x3c] sm:$0xf]
      %v242 = vld [vmem:[%s207 + $0x40] sm:$0xf]
      %v243 = vld [vmem:[%s207 + $0x44] sm:$0xf]
      %v244 = vld [vmem:[%s207 + $0x48] sm:$0xf]
      %v245 = vld [vmem:[%s207 + $0x4c] sm:$0xf]
      %v246 = vld [vmem:[%s207 + $0x50] sm:$0xf]
      %v247 = vld [vmem:[%s207 + $0x54] sm:$0xf]
      %v248 = vld [vmem:[%s207 + $0x58] sm:$0xf]
      %v249 = vld [vmem:[%s207 + $0x5c] sm:$0xf]
      %v250 = vld [vmem:[%s207 + $0x60] sm:$0xf]
      %v251 = vld [vmem:[%s207 + $0x64] sm:$0xf]
      %v252 = vld [vmem:[%s207 + $0x68] sm:$0xf]
      %v253 = vld [vmem:[%s207 + $0x6c] sm:$0xf]
      %v254 = vld [vmem:[%s207 + $0x70] sm:$0xf]
      %v255 = vld [vmem:[%s207 + $0x74] sm:$0xf]
      %v256 = vld [vmem:[%s207 + $0x78] sm:$0xf]
      %v257 = vld [vmem:[%s207 + $0x7c] sm:$0xf]
      %v258 = vld [vmem:[%s207 + $0x80] sm:$0xf]
      %v259 = vld [vmem:[%s207 + $0x84] sm:$0xf]
      %v260 = vld [vmem:[%s207 + $0x88] sm:$0xf]
      %v261 = vld [vmem:[%s207 + $0x8c] sm:$0xf]
      %v262 = vld [vmem:[%s207 + $0x90] sm:$0xf]
      %v263 = vld [vmem:[%s207 + $0x94] sm:$0xf]
      %v264 = vld [vmem:[%s207 + $0x98] sm:$0xf]
      %v265 = vld [vmem:[%s207 + $0x9c] sm:$0xf]
      %v266 = vld [vmem:[%s207 + $0xa0] sm:$0xf]
      %v267 = vld [vmem:[%s207 + $0xa4] sm:$0xf]
      %v268 = vld [vmem:[%s207 + $0xa8] sm:$0xf]
      %v269 = vld [vmem:[%s207 + $0xac] sm:$0xf]
      %v270 = vld [vmem:[%s207 + $0xb0] sm:$0xf]
      %v271 = vld [vmem:[%s207 + $0xb4] sm:$0xf]
      %v272 = vld [vmem:[%s207 + $0xb8] sm:$0xf]
      %v273 = vld [vmem:[%s207 + $0xbc] sm:$0xf]
      %v274 = vld [vmem:[%s207 + $0xc0] sm:$0xf]
      %v275 = vld [vmem:[%s207 + $0xc4] sm:$0xf]
      %v276 = vld [vmem:[%s207 + $0xc8] sm:$0xf]
      %v277 = vld [vmem:[%s207 + $0xcc] sm:$0xf]
      %v278 = vld [vmem:[%s207 + $0xd0] sm:$0xf]
      %v279 = vld [vmem:[%s207 + $0xd4] sm:$0xf]
      %v280 = vld [vmem:[%s207 + $0xd8] sm:$0xf]
      %v281 = vld [vmem:[%s207 + $0xdc] sm:$0xf]
      %v282 = vld [vmem:[%s207 + $0xe0] sm:$0xf]
      %v283 = vld [vmem:[%s207 + $0xe4] sm:$0xf]
      %v284 = vld [vmem:[%s207 + $0xe8] sm:$0xf]
      %v285 = vld [vmem:[%s207 + $0xec] sm:$0xf]
      %v286 = vld [vmem:[%s207 + $0xf0] sm:$0xf]
      %v287 = vld [vmem:[%s207 + $0xf4] sm:$0xf]
      %v288 = vld [vmem:[%s207 + $0xf8] sm:$0xf]
      %v289 = vld [vmem:[%s207 + $0xfc] sm:$0xf]
      %v290 = vld [vmem:[%s212] sm:$0xf]
      %v291 = vld [vmem:[%s212 + $0x4] sm:$0xf]
      %v292 = vld [vmem:[%s212 + $0x8] sm:$0xf]
      %v293 = vld [vmem:[%s212 + $0xc] sm:$0xf]
      %v294 = vld [vmem:[%s212 + $0x10] sm:$0xf]
      %v295 = vld [vmem:[%s212 + $0x14] sm:$0xf]
      %v296 = vld [vmem:[%s212 + $0x18] sm:$0xf]
      %v297 = vld [vmem:[%s212 + $0x1c] sm:$0xf]
      %v298 = vld [vmem:[%s215] sm:$0x1]
      %v300 = vlaneseq
      %v301 = vshrl.u32 %v300, 7
      %v302 = vsub.s32 0, %v301
      %v303 = vrot.slane %v298, %v302
      %v369 = vunpack.c.l.b16 %v226
      %v370 = vunpack.c.l.b16 %v227
      %v371 = vunpack.c.l.b16 %v228
      %v372 = vunpack.c.l.b16 %v229
      %v373 = vunpack.c.l.b16 %v230
      %v374 = vunpack.c.l.b16 %v231
      %v375 = vunpack.c.l.b16 %v232
      %v376 = vunpack.c.l.b16 %v233
      %v377 = vunpack.c.l.b16 %v234
      %v378 = vunpack.c.l.b16 %v235
      %v379 = vunpack.c.l.b16 %v236
      %v380 = vunpack.c.l.b16 %v237
      %v381 = vunpack.c.l.b16 %v238
      %v382 = vunpack.c.l.b16 %v239
      %v383 = vunpack.c.l.b16 %v240
      %v384 = vunpack.c.l.b16 %v241
      %v385 = vunpack.c.l.b16 %v242
      %v386 = vunpack.c.l.b16 %v243
      %v387 = vunpack.c.l.b16 %v244
      %v388 = vunpack.c.l.b16 %v245
      %v389 = vunpack.c.l.b16 %v246
      %v390 = vunpack.c.l.b16 %v247
      %v391 = vunpack.c.l.b16 %v248
      %v392 = vunpack.c.l.b16 %v249
      %v393 = vunpack.c.l.b16 %v250
      %v394 = vunpack.c.l.b16 %v251
      %v395 = vunpack.c.l.b16 %v252
      %v396 = vunpack.c.l.b16 %v253
      %v397 = vunpack.c.l.b16 %v254
      %v398 = vunpack.c.l.b16 %v255
      %v399 = vunpack.c.l.b16 %v256
      %v400 = vunpack.c.l.b16 %v257
      %v401 = vunpack.c.l.b16 %v258
      %v402 = vunpack.c.l.b16 %v259
      %v403 = vunpack.c.l.b16 %v260
      %v404 = vunpack.c.l.b16 %v261
      %v405 = vunpack.c.l.b16 %v262
      %v406 = vunpack.c.l.b16 %v263
      %v407 = vunpack.c.l.b16 %v264
      %v408 = vunpack.c.l.b16 %v265
      %v409 = vunpack.c.l.b16 %v266
      %v410 = vunpack.c.l.b16 %v267
      %v411 = vunpack.c.l.b16 %v268
      %v412 = vunpack.c.l.b16 %v269
      %v413 = vunpack.c.l.b16 %v270
      %v414 = vunpack.c.l.b16 %v271
      %v415 = vunpack.c.l.b16 %v272
      %v416 = vunpack.c.l.b16 %v273
      %v417 = vunpack.c.l.b16 %v274
      %v418 = vunpack.c.l.b16 %v275
      %v419 = vunpack.c.l.b16 %v276
      %v420 = vunpack.c.l.b16 %v277
      %v421 = vunpack.c.l.b16 %v278
      %v422 = vunpack.c.l.b16 %v279
      %v423 = vunpack.c.l.b16 %v280
      %v424 = vunpack.c.l.b16 %v281
      %v425 = vunpack.c.l.b16 %v282
      %v426 = vunpack.c.l.b16 %v283
      %v427 = vunpack.c.l.b16 %v284
      %v428 = vunpack.c.l.b16 %v285
      %v429 = vunpack.c.l.b16 %v286
      %v430 = vunpack.c.l.b16 %v287
      %v431 = vunpack.c.l.b16 %v288
      %v432 = vunpack.c.l.b16 %v289
      %v433 = vpack.c.b16 %v370, %v369
      %v434 = vpack.c.b16 %v372, %v371
      %v435 = vpack.c.b16 %v374, %v373
      %v436 = vpack.c.b16 %v376, %v375
      %v437 = vpack.c.b16 %v378, %v377
      %v438 = vpack.c.b16 %v380, %v379
      %v439 = vpack.c.b16 %v382, %v381
      %v440 = vpack.c.b16 %v384, %v383
      %v441 = vpack.c.b16 %v386, %v385
      %v442 = vpack.c.b16 %v388, %v387
      %v443 = vpack.c.b16 %v390, %v389
      %v444 = vpack.c.b16 %v392, %v391
      %v445 = vpack.c.b16 %v394, %v393
      %v446 = vpack.c.b16 %v396, %v395
      %v447 = vpack.c.b16 %v398, %v397
      %v448 = vpack.c.b16 %v400, %v399
      %v449 = vpack.c.b16 %v402, %v401
      %v450 = vpack.c.b16 %v404, %v403
      %v451 = vpack.c.b16 %v406, %v405
      %v452 = vpack.c.b16 %v408, %v407
      %v453 = vpack.c.b16 %v410, %v409
      %v454 = vpack.c.b16 %v412, %v411
      %v455 = vpack.c.b16 %v414, %v413
      %v456 = vpack.c.b16 %v416, %v415
      %v457 = vpack.c.b16 %v418, %v417
      %v458 = vpack.c.b16 %v420, %v419
      %v459 = vpack.c.b16 %v422, %v421
      %v460 = vpack.c.b16 %v424, %v423
      %v461 = vpack.c.b16 %v426, %v425
      %v462 = vpack.c.b16 %v428, %v427
      %v463 = vpack.c.b16 %v430, %v429
      %v464 = vpack.c.b16 %v432, %v431
      %v473 = vunpack.c.l.b16 %v290
      %v474 = vunpack.c.l.b16 %v291
      %v475 = vunpack.c.l.b16 %v292
      %v476 = vunpack.c.l.b16 %v293
      %v477 = vunpack.c.l.b16 %v294
      %v478 = vunpack.c.l.b16 %v295
      %v479 = vunpack.c.l.b16 %v296
      %v480 = vunpack.c.l.b16 %v297
      %v481 = vpack.c.b16 %v474, %v473
      %v482 = vpack.c.b16 %v476, %v475
      %v483 = vpack.c.b16 %v478, %v477
      %v484 = vpack.c.b16 %v480, %v479
      %vm489 = vcmask 523264
      %v491 = vsel %vm489, %v433, 0
      %v494 = vsel %vm489, %v434, 0
      %v497 = vsel %vm489, %v435, 0
      %v500 = vsel %vm489, %v436, 0
      %v503 = vsel %vm489, %v437, 0
      %v506 = vsel %vm489, %v438, 0
      %v509 = vsel %vm489, %v439, 0
      %v512 = vsel %vm489, %v440, 0
      %v515 = vsel %vm489, %v441, 0
      %v518 = vsel %vm489, %v442, 0
      %v521 = vsel %vm489, %v443, 0
      %v524 = vsel %vm489, %v444, 0
      %v527 = vsel %vm489, %v445, 0
      %v530 = vsel %vm489, %v446, 0
      %v533 = vsel %vm489, %v447, 0
      %v536 = vsel %vm489, %v448, 0
      %v539 = vsel %vm489, %v449, 0
      %v542 = vsel %vm489, %v450, 0
      %v545 = vsel %vm489, %v451, 0
      %v548 = vsel %vm489, %v452, 0
      %v551 = vsel %vm489, %v453, 0
      %v554 = vsel %vm489, %v454, 0
      %v557 = vsel %vm489, %v455, 0
      %v560 = vsel %vm489, %v456, 0
      %v563 = vsel %vm489, %v457, 0
      %v566 = vsel %vm489, %v458, 0
      %v569 = vsel %vm489, %v459, 0
      %v572 = vsel %vm489, %v460, 0
      %v575 = vsel %vm489, %v461, 0
      %v578 = vsel %vm489, %v462, 0
      %v581 = vsel %vm489, %v463, 0
      %v584 = vsel %vm489, %v464, 0
      %586 = vmatprep.subr.bf16.mxu0 0
      %587 = vmatpush1.bf16.msra.mxu0 %v481
      %588 = vmatprep.subr.bf16.mxu0 0
      %589 = vmatpush1.bf16.msra.mxu0 %v482
      %590 = vmatprep.subr.bf16.mxu0 0
      %591 = vmatpush1.bf16.msra.mxu0 %v483
      %592 = vmatprep.subr.bf16.mxu0 0
      %593 = vmatpush1.bf16.msra.mxu0 %v484
      %594 = vmatprep.subr.bf16.mxu0 0
      %595 = vmatpush1.bf16.msra.mxu0 0
      %596 = vmatprep.subr.bf16.mxu0 0
      %597 = vmatpush1.bf16.msra.mxu0 0
      %598 = vmatprep.subr.bf16.mxu0 0
      %599 = vmatpush1.bf16.msra.mxu0 0
      %600 = vmatprep.subr.bf16.mxu0 0
      %601 = vmatpush1.bf16.msra.mxu0 0
      %602 = vmatprep.subr.bf16.mxu0 0
      %603 = vmatpush1.bf16.msra.mxu0 0
      %604 = vmatprep.subr.bf16.mxu0 0
      %605 = vmatpush1.bf16.msra.mxu0 0
      %606 = vmatprep.subr.bf16.mxu0 0
      %607 = vmatpush1.bf16.msra.mxu0 0
      %608 = vmatprep.subr.bf16.mxu0 0
      %609 = vmatpush1.bf16.msra.mxu0 0
      %610 = vmatprep.subr.bf16.mxu0 0
      %611 = vmatpush1.bf16.msra.mxu0 0
      %612 = vmatprep.subr.bf16.mxu0 0
      %613 = vmatpush1.bf16.msra.mxu0 0
      %614 = vmatprep.subr.bf16.mxu0 0
      %615 = vmatpush1.bf16.msra.mxu0 0
      %616 = vmatprep.subr.bf16.mxu0 0
      %617 = vmatpush1.bf16.msra.mxu0 0
      %618 = vmatprep.mubr.bf16.mxu0 0
      %619 = vmatmul.mubr.bf16.gmra.mrb[0].mxu0 %v491
      %v620 = vpop.f32.mrb[0].mxu0
      %v621 = vadd.f32 %v303, %v620
      %v622 = vpop.f32.mrb[0].mxu0
      %v623 = vpop.f32.mrb[0].mxu0
      %v624 = vadd.f32 %v303, %v623
      %v625 = vpop.f32.mrb[0].mxu0
      %626 = vmatprep.mubr.bf16.mxu0 0
      %627 = vmatmul.mubr.bf16.gmra.mrb[0].mxu0 %v494
      %v628 = vpop.f32.mrb[0].mxu0
      %v629 = vadd.f32 %v303, %v628
      %v630 = vpop.f32.mrb[0].mxu0
      %v631 = vpop.f32.mrb[0].mxu0
      %v632 = vadd.f32 %v303, %v631
      %v633 = vpop.f32.mrb[0].mxu0
      %634 = vmatprep.mubr.bf16.mxu0 0
      %635 = vmatmul.mubr.bf16.gmra.mrb[0].mxu0 %v497
      %v636 = vpop.f32.mrb[0].mxu0
      %v637 = vadd.f32 %v303, %v636
      %v638 = vpop.f32.mrb[0].mxu0
      %v639 = vpop.f32.mrb[0].mxu0
      %v640 = vadd.f32 %v303, %v639
      %v641 = vpop.f32.mrb[0].mxu0
      %642 = vmatprep.mubr.bf16.mxu0 0
      %643 = vmatmul.mubr.bf16.gmra.mrb[0].mxu0 %v500
      %v644 = vpop.f32.mrb[0].mxu0
      %v645 = vadd.f32 %v303, %v644
      %v646 = vpop.f32.mrb[0].mxu0
      %v647 = vpop.f32.mrb[0].mxu0
      %v648 = vadd.f32 %v303, %v647
      %v649 = vpop.f32.mrb[0].mxu0
      %650 = vmatprep.mubr.bf16.mxu0 0
      %651 = vmatmul.mubr.bf16.gmra.mrb[0].mxu0 %v503
      %v652 = vpop.f32.mrb[0].mxu0
      %v653 = vadd.f32 %v303, %v652
      %v654 = vpop.f32.mrb[0].mxu0
      %v655 = vpop.f32.mrb[0].mxu0
      %v656 = vadd.f32 %v303, %v655
      %v657 = vpop.f32.mrb[0].mxu0
      %658 = vmatprep.mubr.bf16.mxu0 0
      %659 = vmatmul.mubr.bf16.gmra.mrb[0].mxu0 %v506
      %v660 = vpop.f32.mrb[0].mxu0
      %v661 = vadd.f32 %v303, %v660
      %v662 = vpop.f32.mrb[0].mxu0
      %v663 = vpop.f32.mrb[0].mxu0
      %v664 = vadd.f32 %v303, %v663
      %v665 = vpop.f32.mrb[0].mxu0
      %666 = vmatprep.mubr.bf16.mxu0 0
      %667 = vmatmul.mubr.bf16.gmra.mrb[0].mxu0 %v509
      %v668 = vpop.f32.mrb[0].mxu0
      %v669 = vadd.f32 %v303, %v668
      %v670 = vpop.f32.mrb[0].mxu0
      %v671 = vpop.f32.mrb[0].mxu0
      %v672 = vadd.f32 %v303, %v671
      %v673 = vpop.f32.mrb[0].mxu0
      %674 = vmatprep.mubr.bf16.mxu0 0
      %675 = vmatmul.mubr.bf16.gmra.mrb[0].mxu0 %v512
      %v676 = vpop.f32.mrb[0].mxu0
      %v677 = vadd.f32 %v303, %v676
      %v678 = vpop.f32.mrb[0].mxu0
      %v679 = vpop.f32.mrb[0].mxu0
      %v680 = vadd.f32 %v303, %v679
      %v681 = vpop.f32.mrb[0].mxu0
      %682 = vmatprep.mubr.bf16.mxu0 0
      %683 = vmatmul.mubr.bf16.gmra.mrb[0].mxu0 %v515
      %v684 = vpop.f32.mrb[0].mxu0
      %v685 = vadd.f32 %v303, %v684
      %v686 = vpop.f32.mrb[0].mxu0
      %v687 = vpop.f32.mrb[0].mxu0
      %v688 = vadd.f32 %v303, %v687
      %v689 = vpop.f32.mrb[0].mxu0
      %690 = vmatprep.mubr.bf16.mxu0 0
      %691 = vmatmul.mubr.bf16.gmra.mrb[0].mxu0 %v518
      %v692 = vpop.f32.mrb[0].mxu0
      %v693 = vadd.f32 %v303, %v692
      %v694 = vpop.f32.mrb[0].mxu0
      %v695 = vpop.f32.mrb[0].mxu0
      %v696 = vadd.f32 %v303, %v695
      %v697 = vpop.f32.mrb[0].mxu0
      %698 = vmatprep.mubr.bf16.mxu0 0
      %699 = vmatmul.mubr.bf16.gmra.mrb[0].mxu0 %v521
      %v700 = vpop.f32.mrb[0].mxu0
      %v701 = vadd.f32 %v303, %v700
      %v702 = vpop.f32.mrb[0].mxu0
      %v703 = vpop.f32.mrb[0].mxu0
      %v704 = vadd.f32 %v303, %v703
      %v705 = vpop.f32.mrb[0].mxu0
      %706 = vmatprep.mubr.bf16.mxu0 0
      %707 = vmatmul.mubr.bf16.gmra.mrb[0].mxu0 %v524
      %v708 = vpop.f32.mrb[0].mxu0
      %v709 = vadd.f32 %v303, %v708
      %v710 = vpop.f32.mrb[0].mxu0
      %v711 = vpop.f32.mrb[0].mxu0
      %v712 = vadd.f32 %v303, %v711
      %v713 = vpop.f32.mrb[0].mxu0
      %714 = vmatprep.mubr.bf16.mxu0 0
      %715 = vmatmul.mubr.bf16.gmra.mrb[0].mxu0 %v527
      %v716 = vpop.f32.mrb[0].mxu0
      %v717 = vadd.f32 %v303, %v716
      %v718 = vpop.f32.mrb[0].mxu0
      %v719 = vpop.f32.mrb[0].mxu0
      %v720 = vadd.f32 %v303, %v719
      %v721 = vpop.f32.mrb[0].mxu0
      %722 = vmatprep.mubr.bf16.mxu0 0
      %723 = vmatmul.mubr.bf16.gmra.mrb[0].mxu0 %v530
      %v724 = vpop.f32.mrb[0].mxu0
      %v725 = vadd.f32 %v303, %v724
      %v726 = vpop.f32.mrb[0].mxu0
      %v727 = vpop.f32.mrb[0].mxu0
      %v728 = vadd.f32 %v303, %v727
      %v729 = vpop.f32.mrb[0].mxu0
      %730 = vmatprep.mubr.bf16.mxu0 0
      %731 = vmatmul.mubr.bf16.gmra.mrb[0].mxu0 %v533
      %v732 = vpop.f32.mrb[0].mxu0
      %v733 = vadd.f32 %v303, %v732
      %v734 = vpop.f32.mrb[0].mxu0
      %v735 = vpop.f32.mrb[0].mxu0
      %v736 = vadd.f32 %v303, %v735
      %v737 = vpop.f32.mrb[0].mxu0
      %738 = vmatprep.mubr.bf16.mxu0 0
      %739 = vmatmul.mubr.bf16.gmra.mrb[0].mxu0 %v536
      %v740 = vpop.f32.mrb[0].mxu0
      %v741 = vadd.f32 %v303, %v740
      %v742 = vpop.f32.mrb[0].mxu0
      %v743 = vpop.f32.mrb[0].mxu0
      %v744 = vadd.f32 %v303, %v743
      %v745 = vpop.f32.mrb[0].mxu0
      %746 = vmatprep.mubr.bf16.mxu0 0
      %747 = vmatmul.mubr.bf16.gmra.mrb[0].mxu0 %v539
      %v748 = vpop.f32.mrb[0].mxu0
      %v749 = vadd.f32 %v303, %v748
      %v750 = vpop.f32.mrb[0].mxu0
      %v751 = vpop.f32.mrb[0].mxu0
      %v752 = vadd.f32 %v303, %v751
      %v753 = vpop.f32.mrb[0].mxu0
      %754 = vmatprep.mubr.bf16.mxu0 0
      %755 = vmatmul.mubr.bf16.gmra.mrb[0].mxu0 %v542
      %v756 = vpop.f32.mrb[0].mxu0
      %v757 = vadd.f32 %v303, %v756
      %v758 = vpop.f32.mrb[0].mxu0
      %v759 = vpop.f32.mrb[0].mxu0
      %v760 = vadd.f32 %v303, %v759
      %v761 = vpop.f32.mrb[0].mxu0
      %762 = vmatprep.mubr.bf16.mxu0 0
      %763 = vmatmul.mubr.bf16.gmra.mrb[0].mxu0 %v545
      %v764 = vpop.f32.mrb[0].mxu0
      %v765 = vadd.f32 %v303, %v764
      %v766 = vpop.f32.mrb[0].mxu0
      %v767 = vpop.f32.mrb[0].mxu0
      %v768 = vadd.f32 %v303, %v767
      %v769 = vpop.f32.mrb[0].mxu0
      %770 = vmatprep.mubr.bf16.mxu0 0
      %771 = vmatmul.mubr.bf16.gmra.mrb[0].mxu0 %v548
      %v772 = vpop.f32.mrb[0].mxu0
      %v773 = vadd.f32 %v303, %v772
      %v774 = vpop.f32.mrb[0].mxu0
      %v775 = vpop.f32.mrb[0].mxu0
      %v776 = vadd.f32 %v303, %v775
      %v777 = vpop.f32.mrb[0].mxu0
      %778 = vmatprep.mubr.bf16.mxu0 0
      %779 = vmatmul.mubr.bf16.gmra.mrb[0].mxu0 %v551
      %v780 = vpop.f32.mrb[0].mxu0
      %v781 = vadd.f32 %v303, %v780
      %v782 = vpop.f32.mrb[0].mxu0
      %v783 = vpop.f32.mrb[0].mxu0
      %v784 = vadd.f32 %v303, %v783
      %v785 = vpop.f32.mrb[0].mxu0
      %786 = vmatprep.mubr.bf16.mxu0 0
      %787 = vmatmul.mubr.bf16.gmra.mrb[0].mxu0 %v554
      %v788 = vpop.f32.mrb[0].mxu0
      %v789 = vadd.f32 %v303, %v788
      %v790 = vpop.f32.mrb[0].mxu0
      %v791 = vpop.f32.mrb[0].mxu0
      %v792 = vadd.f32 %v303, %v791
      %v793 = vpop.f32.mrb[0].mxu0
      %794 = vmatprep.mubr.bf16.mxu0 0
      %795 = vmatmul.mubr.bf16.gmra.mrb[0].mxu0 %v557
      %v796 = vpop.f32.mrb[0].mxu0
      %v797 = vadd.f32 %v303, %v796
      %v798 = vpop.f32.mrb[0].mxu0
      %v799 = vpop.f32.mrb[0].mxu0
      %v800 = vadd.f32 %v303, %v799
      %v801 = vpop.f32.mrb[0].mxu0
      %802 = vmatprep.mubr.bf16.mxu0 0
      %803 = vmatmul.mubr.bf16.gmra.mrb[0].mxu0 %v560
      %v804 = vpop.f32.mrb[0].mxu0
      %v805 = vadd.f32 %v303, %v804
      %v806 = vpop.f32.mrb[0].mxu0
      %v807 = vpop.f32.mrb[0].mxu0
      %v808 = vadd.f32 %v303, %v807
      %v809 = vpop.f32.mrb[0].mxu0
      %810 = vmatprep.mubr.bf16.mxu0 0
      %811 = vmatmul.mubr.bf16.gmra.mrb[0].mxu0 %v563
      %v812 = vpop.f32.mrb[0].mxu0
      %v813 = vadd.f32 %v303, %v812
      %v814 = vpop.f32.mrb[0].mxu0
      %v815 = vpop.f32.mrb[0].mxu0
      %v816 = vadd.f32 %v303, %v815
      %v817 = vpop.f32.mrb[0].mxu0
      %818 = vmatprep.mubr.bf16.mxu0 0
      %819 = vmatmul.mubr.bf16.gmra.mrb[0].mxu0 %v566
      %v820 = vpop.f32.mrb[0].mxu0
      %v821 = vadd.f32 %v303, %v820
      %v822 = vpop.f32.mrb[0].mxu0
      %v823 = vpop.f32.mrb[0].mxu0
      %v824 = vadd.f32 %v303, %v823
      %v825 = vpop.f32.mrb[0].mxu0
      %826 = vmatprep.mubr.bf16.mxu0 0
      %827 = vmatmul.mubr.bf16.gmra.mrb[0].mxu0 %v569
      %v828 = vpop.f32.mrb[0].mxu0
      %v829 = vadd.f32 %v303, %v828
      %v830 = vpop.f32.mrb[0].mxu0
      %v831 = vpop.f32.mrb[0].mxu0
      %v832 = vadd.f32 %v303, %v831
      %v833 = vpop.f32.mrb[0].mxu0
      %834 = vmatprep.mubr.bf16.mxu0 0
      %835 = vmatmul.mubr.bf16.gmra.mrb[0].mxu0 %v572
      %v836 = vpop.f32.mrb[0].mxu0
      %v837 = vadd.f32 %v303, %v836
      %v838 = vpop.f32.mrb[0].mxu0
      %v839 = vpop.f32.mrb[0].mxu0
      %v840 = vadd.f32 %v303, %v839
      %v841 = vpop.f32.mrb[0].mxu0
      %842 = vmatprep.mubr.bf16.mxu0 0
      %843 = vmatmul.mubr.bf16.gmra.mrb[0].mxu0 %v575
      %v844 = vpop.f32.mrb[0].mxu0
      %v845 = vadd.f32 %v303, %v844
      %v846 = vpop.f32.mrb[0].mxu0
      %v847 = vpop.f32.mrb[0].mxu0
      %v848 = vadd.f32 %v303, %v847
      %v849 = vpop.f32.mrb[0].mxu0
      %850 = vmatprep.mubr.bf16.mxu0 0
      %851 = vmatmul.mubr.bf16.gmra.mrb[0].mxu0 %v578
      %v852 = vpop.f32.mrb[0].mxu0
      %v853 = vadd.f32 %v303, %v852
      %v854 = vpop.f32.mrb[0].mxu0
      %v855 = vpop.f32.mrb[0].mxu0
      %v856 = vadd.f32 %v303, %v855
      %v857 = vpop.f32.mrb[0].mxu0
      %858 = vmatprep.mubr.bf16.mxu0 0
      %859 = vmatmul.mubr.bf16.gmra.mrb[0].mxu0 %v581
      %v860 = vpop.f32.mrb[0].mxu0
      %v861 = vadd.f32 %v303, %v860
      %v862 = vpop.f32.mrb[0].mxu0
      %v863 = vpop.f32.mrb[0].mxu0
      %v864 = vadd.f32 %v303, %v863
      %v865 = vpop.f32.mrb[0].mxu0
      %866 = vmatprep.mubr.bf16.mxu0 0
      %867 = vmatmul.mubr.bf16.gmra.mrb[0].mxu0 %v584
      %v868 = vpop.f32.mrb[0].mxu0
      %v869 = vadd.f32 %v303, %v868
      %v870 = vpop.f32.mrb[0].mxu0
      %v871 = vpop.f32.mrb[0].mxu0
      %v872 = vadd.f32 %v303, %v871
      %v873 = vpop.f32.mrb[0].mxu0
      %874 = vdwg.mxu0
      %vm875 = vcmp.ge.f32.partialorder %v621, 0.0
      %vm876 = vcmp.ge.f32.partialorder %v624, 0.0
      %vm877 = vcmp.ge.f32.partialorder %v629, 0.0
      %vm878 = vcmp.ge.f32.partialorder %v632, 0.0
      %vm879 = vcmp.ge.f32.partialorder %v637, 0.0
      %vm880 = vcmp.ge.f32.partialorder %v640, 0.0
      %vm881 = vcmp.ge.f32.partialorder %v645, 0.0
      %vm882 = vcmp.ge.f32.partialorder %v648, 0.0
      %vm883 = vcmp.ge.f32.partialorder %v653, 0.0
      %vm884 = vcmp.ge.f32.partialorder %v656, 0.0
      %vm885 = vcmp.ge.f32.partialorder %v661, 0.0
      %vm886 = vcmp.ge.f32.partialorder %v664, 0.0
      %vm887 = vcmp.ge.f32.partialorder %v669, 0.0
      %vm888 = vcmp.ge.f32.partialorder %v672, 0.0
      %vm889 = vcmp.ge.f32.partialorder %v677, 0.0
      %vm890 = vcmp.ge.f32.partialorder %v680, 0.0
      %vm891 = vcmp.ge.f32.partialorder %v685, 0.0
      %vm892 = vcmp.ge.f32.partialorder %v688, 0.0
      %vm893 = vcmp.ge.f32.partialorder %v693, 0.0
      %vm894 = vcmp.ge.f32.partialorder %v696, 0.0
      %vm895 = vcmp.ge.f32.partialorder %v701, 0.0
      %vm896 = vcmp.ge.f32.partialorder %v704, 0.0
      %vm897 = vcmp.ge.f32.partialorder %v709, 0.0
      %vm898 = vcmp.ge.f32.partialorder %v712, 0.0
      %vm899 = vcmp.ge.f32.partialorder %v717, 0.0
      %vm900 = vcmp.ge.f32.partialorder %v720, 0.0
      %vm901 = vcmp.ge.f32.partialorder %v725, 0.0
      %vm902 = vcmp.ge.f32.partialorder %v728, 0.0
      %vm903 = vcmp.ge.f32.partialorder %v733, 0.0
      %vm904 = vcmp.ge.f32.partialorder %v736, 0.0
      %vm905 = vcmp.ge.f32.partialorder %v741, 0.0
      %vm906 = vcmp.ge.f32.partialorder %v744, 0.0
      %vm907 = vcmp.ge.f32.partialorder %v749, 0.0
      %vm908 = vcmp.ge.f32.partialorder %v752, 0.0
      %vm909 = vcmp.ge.f32.partialorder %v757, 0.0
      %vm910 = vcmp.ge.f32.partialorder %v760, 0.0
      %vm911 = vcmp.ge.f32.partialorder %v765, 0.0
      %vm912 = vcmp.ge.f32.partialorder %v768, 0.0
      %vm913 = vcmp.ge.f32.partialorder %v773, 0.0
      %vm914 = vcmp.ge.f32.partialorder %v776, 0.0
      %vm915 = vcmp.ge.f32.partialorder %v781, 0.0
      %vm916 = vcmp.ge.f32.partialorder %v784, 0.0
      %vm917 = vcmp.ge.f32.partialorder %v789, 0.0
      %vm918 = vcmp.ge.f32.partialorder %v792, 0.0
      %vm919 = vcmp.ge.f32.partialorder %v797, 0.0
      %vm920 = vcmp.ge.f32.partialorder %v800, 0.0
      %vm921 = vcmp.ge.f32.partialorder %v805, 0.0
      %vm922 = vcmp.ge.f32.partialorder %v808, 0.0
      %vm923 = vcmp.ge.f32.partialorder %v813, 0.0
      %vm924 = vcmp.ge.f32.partialorder %v816, 0.0
      %vm925 = vcmp.ge.f32.partialorder %v821, 0.0
      %vm926 = vcmp.ge.f32.partialorder %v824, 0.0
      %vm927 = vcmp.ge.f32.partialorder %v829, 0.0
      %vm928 = vcmp.ge.f32.partialorder %v832, 0.0
      %vm929 = vcmp.ge.f32.partialorder %v837, 0.0
      %vm930 = vcmp.ge.f32.partialorder %v840, 0.0
      %vm931 = vcmp.ge.f32.partialorder %v845, 0.0
      %vm932 = vcmp.ge.f32.partialorder %v848, 0.0
      %vm933 = vcmp.ge.f32.partialorder %v853, 0.0
      %vm934 = vcmp.ge.f32.partialorder %v856, 0.0
      %vm935 = vcmp.ge.f32.partialorder %v861, 0.0
      %vm936 = vcmp.ge.f32.partialorder %v864, 0.0
      %vm937 = vcmp.ge.f32.partialorder %v869, 0.0
      %vm938 = vcmp.ge.f32.partialorder %v872, 0.0
      %v939 = vmul.f32 %v621, 0.2
      %v940 = vmul.f32 %v624, 0.2
      %v941 = vmul.f32 %v629, 0.2
      %v942 = vmul.f32 %v632, 0.2
      %v943 = vmul.f32 %v637, 0.2
      %v944 = vmul.f32 %v640, 0.2
      %v945 = vmul.f32 %v645, 0.2
      %v946 = vmul.f32 %v648, 0.2
      %v947 = vmul.f32 %v653, 0.2
      %v948 = vmul.f32 %v656, 0.2
      %v949 = vmul.f32 %v661, 0.2
      %v950 = vmul.f32 %v664, 0.2
      %v951 = vmul.f32 %v669, 0.2
      %v952 = vmul.f32 %v672, 0.2
      %v953 = vmul.f32 %v677, 0.2
      %v954 = vmul.f32 %v680, 0.2
      %v955 = vmul.f32 %v685, 0.2
      %v956 = vmul.f32 %v688, 0.2
      %v957 = vmul.f32 %v693, 0.2
      %v958 = vmul.f32 %v696, 0.2
      %v959 = vmul.f32 %v701, 0.2
      %v960 = vmul.f32 %v704, 0.2
      %v961 = vmul.f32 %v709, 0.2
      %v962 = vmul.f32 %v712, 0.2
      %v963 = vmul.f32 %v717, 0.2
      %v964 = vmul.f32 %v720, 0.2
      %v965 = vmul.f32 %v725, 0.2
      %v966 = vmul.f32 %v728, 0.2
      %v967 = vmul.f32 %v733, 0.2
      %v968 = vmul.f32 %v736, 0.2
      %v969 = vmul.f32 %v741, 0.2
      %v970 = vmul.f32 %v744, 0.2
      %v971 = vmul.f32 %v749, 0.2
      %v972 = vmul.f32 %v752, 0.2
      %v973 = vmul.f32 %v757, 0.2
      %v974 = vmul.f32 %v760, 0.2
      %v975 = vmul.f32 %v765, 0.2
      %v976 = vmul.f32 %v768, 0.2
      %v977 = vmul.f32 %v773, 0.2
      %v978 = vmul.f32 %v776, 0.2
      %v979 = vmul.f32 %v781, 0.2
      %v980 = vmul.f32 %v784, 0.2
      %v981 = vmul.f32 %v789, 0.2
      %v982 = vmul.f32 %v792, 0.2
      %v983 = vmul.f32 %v797, 0.2
      %v984 = vmul.f32 %v800, 0.2
      %v985 = vmul.f32 %v805, 0.2
      %v986 = vmul.f32 %v808, 0.2
      %v987 = vmul.f32 %v813, 0.2
      %v988 = vmul.f32 %v816, 0.2
      %v989 = vmul.f32 %v821, 0.2
      %v990 = vmul.f32 %v824, 0.2
      %v991 = vmul.f32 %v829, 0.2
      %v992 = vmul.f32 %v832, 0.2
      %v993 = vmul.f32 %v837, 0.2
      %v994 = vmul.f32 %v840, 0.2
      %v995 = vmul.f32 %v845, 0.2
      %v996 = vmul.f32 %v848, 0.2
      %v997 = vmul.f32 %v853, 0.2
      %v998 = vmul.f32 %v856, 0.2
      %v999 = vmul.f32 %v861, 0.2
      %v1000 = vmul.f32 %v864, 0.2
      %v1001 = vmul.f32 %v869, 0.2
      %v1002 = vmul.f32 %v872, 0.2
      %v1003 = vsel %vm875, %v621, %v939
      %v1004 = vsel %vm876, %v624, %v940
      %v1005 = vsel %vm877, %v629, %v941
      %v1006 = vsel %vm878, %v632, %v942
      %v1007 = vsel %vm879, %v637, %v943
      %v1008 = vsel %vm880, %v640, %v944
      %v1009 = vsel %vm881, %v645, %v945
      %v1010 = vsel %vm882, %v648, %v946
      %v1011 = vsel %vm883, %v653, %v947
      %v1012 = vsel %vm884, %v656, %v948
      %v1013 = vsel %vm885, %v661, %v949
      %v1014 = vsel %vm886, %v664, %v950
      %v1015 = vsel %vm887, %v669, %v951
      %v1016 = vsel %vm888, %v672, %v952
      %v1017 = vsel %vm889, %v677, %v953
      %v1018 = vsel %vm890, %v680, %v954
      %v1019 = vsel %vm891, %v685, %v955
      %v1020 = vsel %vm892, %v688, %v956
      %v1021 = vsel %vm893, %v693, %v957
      %v1022 = vsel %vm894, %v696, %v958
      %v1023 = vsel %vm895, %v701, %v959
      %v1024 = vsel %vm896, %v704, %v960
      %v1025 = vsel %vm897, %v709, %v961
      %v1026 = vsel %vm898, %v712, %v962
      %v1027 = vsel %vm899, %v717, %v963
      %v1028 = vsel %vm900, %v720, %v964
      %v1029 = vsel %vm901, %v725, %v965
      %v1030 = vsel %vm902, %v728, %v966
      %v1031 = vsel %vm903, %v733, %v967
      %v1032 = vsel %vm904, %v736, %v968
      %v1033 = vsel %vm905, %v741, %v969
      %v1034 = vsel %vm906, %v744, %v970
      %v1035 = vsel %vm907, %v749, %v971
      %v1036 = vsel %vm908, %v752, %v972
      %v1037 = vsel %vm909, %v757, %v973
      %v1038 = vsel %vm910, %v760, %v974
      %v1039 = vsel %vm911, %v765, %v975
      %v1040 = vsel %vm912, %v768, %v976
      %v1041 = vsel %vm913, %v773, %v977
      %v1042 = vsel %vm914, %v776, %v978
      %v1043 = vsel %vm915, %v781, %v979
      %v1044 = vsel %vm916, %v784, %v980
      %v1045 = vsel %vm917, %v789, %v981
      %v1046 = vsel %vm918, %v792, %v982
      %v1047 = vsel %vm919, %v797, %v983
      %v1048 = vsel %vm920, %v800, %v984
      %v1049 = vsel %vm921, %v805, %v985
      %v1050 = vsel %vm922, %v808, %v986
      %v1051 = vsel %vm923, %v813, %v987
      %v1052 = vsel %vm924, %v816, %v988
      %v1053 = vsel %vm925, %v821, %v989
      %v1054 = vsel %vm926, %v824, %v990
      %v1055 = vsel %vm927, %v829, %v991
      %v1056 = vsel %vm928, %v832, %v992
      %v1057 = vsel %vm929, %v837, %v993
      %v1058 = vsel %vm930, %v840, %v994
      %v1059 = vsel %vm931, %v845, %v995
      %v1060 = vsel %vm932, %v848, %v996
      %v1061 = vsel %vm933, %v853, %v997
      %v1062 = vsel %vm934, %v856, %v998
      %v1063 = vsel %vm935, %v861, %v999
      %v1064 = vsel %vm936, %v864, %v1000
      %v1065 = vsel %vm937, %v869, %v1001
      %v1066 = vsel %vm938, %v872, %v1002
      %vm1067 = vcmask 64512
      %1068 = vst.msk [vmem:[%s223] sm:$0xff] %vm1067, %v1003
      %1069 = vst.msk [vmem:[%s223 + $0x8] sm:$0xff] %vm1067, %v1004
      %1070 = vst.msk [vmem:[%s223 + $0x10] sm:$0xff] %vm1067, %v1005
      %1071 = vst.msk [vmem:[%s223 + $0x18] sm:$0xff] %vm1067, %v1006
      %1072 = vst.msk [vmem:[%s223 + $0x20] sm:$0xff] %vm1067, %v1007
      %1073 = vst.msk [vmem:[%s223 + $0x28] sm:$0xff] %vm1067, %v1008
      %1074 = vst.msk [vmem:[%s223 + $0x30] sm:$0xff] %vm1067, %v1009
      %1075 = vst.msk [vmem:[%s223 + $0x38] sm:$0xff] %vm1067, %v1010
      %1076 = vst.msk [vmem:[%s223 + $0x40] sm:$0xff] %vm1067, %v1011
      %1077 = vst.msk [vmem:[%s223 + $0x48] sm:$0xff] %vm1067, %v1012
      %1078 = vst.msk [vmem:[%s223 + $0x50] sm:$0xff] %vm1067, %v1013
      %1079 = vst.msk [vmem:[%s223 + $0x58] sm:$0xff] %vm1067, %v1014
      %1080 = vst.msk [vmem:[%s223 + $0x60] sm:$0xff] %vm1067, %v1015
      %1081 = vst.msk [vmem:[%s223 + $0x68] sm:$0xff] %vm1067, %v1016
      %1082 = vst.msk [vmem:[%s223 + $0x70] sm:$0xff] %vm1067, %v1017
      %1083 = vst.msk [vmem:[%s223 + $0x78] sm:$0xff] %vm1067, %v1018
      %1084 = vst.msk [vmem:[%s223 + $0x80] sm:$0xff] %vm1067, %v1019
      %1085 = vst.msk [vmem:[%s223 + $0x88] sm:$0xff] %vm1067, %v1020
      %1086 = vst.msk [vmem:[%s223 + $0x90] sm:$0xff] %vm1067, %v1021
      %1087 = vst.msk [vmem:[%s223 + $0x98] sm:$0xff] %vm1067, %v1022
      %1088 = vst.msk [vmem:[%s223 + $0xa0] sm:$0xff] %vm1067, %v1023
      %1089 = vst.msk [vmem:[%s223 + $0xa8] sm:$0xff] %vm1067, %v1024
      %1090 = vst.msk [vmem:[%s223 + $0xb0] sm:$0xff] %vm1067, %v1025
      %1091 = vst.msk [vmem:[%s223 + $0xb8] sm:$0xff] %vm1067, %v1026
      %1092 = vst.msk [vmem:[%s223 + $0xc0] sm:$0xff] %vm1067, %v1027
      %1093 = vst.msk [vmem:[%s223 + $0xc8] sm:$0xff] %vm1067, %v1028
      %1094 = vst.msk [vmem:[%s223 + $0xd0] sm:$0xff] %vm1067, %v1029
      %1095 = vst.msk [vmem:[%s223 + $0xd8] sm:$0xff] %vm1067, %v1030
      %1096 = vst.msk [vmem:[%s223 + $0xe0] sm:$0xff] %vm1067, %v1031
      %1097 = vst.msk [vmem:[%s223 + $0xe8] sm:$0xff] %vm1067, %v1032
      %1098 = vst.msk [vmem:[%s223 + $0xf0] sm:$0xff] %vm1067, %v1033
      %1099 = vst.msk [vmem:[%s223 + $0xf8] sm:$0xff] %vm1067, %v1034
      %1100 = vst.msk [vmem:[%s223 + $0x100] sm:$0xff] %vm1067, %v1035
      %1101 = vst.msk [vmem:[%s223 + $0x108] sm:$0xff] %vm1067, %v1036
      %1102 = vst.msk [vmem:[%s223 + $0x110] sm:$0xff] %vm1067, %v1037
      %1103 = vst.msk [vmem:[%s223 + $0x118] sm:$0xff] %vm1067, %v1038
      %1104 = vst.msk [vmem:[%s223 + $0x120] sm:$0xff] %vm1067, %v1039
      %1105 = vst.msk [vmem:[%s223 + $0x128] sm:$0xff] %vm1067, %v1040
      %1106 = vst.msk [vmem:[%s223 + $0x130] sm:$0xff] %vm1067, %v1041
      %1107 = vst.msk [vmem:[%s223 + $0x138] sm:$0xff] %vm1067, %v1042
      %1108 = vst.msk [vmem:[%s223 + $0x140] sm:$0xff] %vm1067, %v1043
      %1109 = vst.msk [vmem:[%s223 + $0x148] sm:$0xff] %vm1067, %v1044
      %1110 = vst.msk [vmem:[%s223 + $0x150] sm:$0xff] %vm1067, %v1045
      %1111 = vst.msk [vmem:[%s223 + $0x158] sm:$0xff] %vm1067, %v1046
      %1112 = vst.msk [vmem:[%s223 + $0x160] sm:$0xff] %vm1067, %v1047
      %1113 = vst.msk [vmem:[%s223 + $0x168] sm:$0xff] %vm1067, %v1048
      %1114 = vst.msk [vmem:[%s223 + $0x170] sm:$0xff] %vm1067, %v1049
      %1115 = vst.msk [vmem:[%s223 + $0x178] sm:$0xff] %vm1067, %v1050
      %1116 = vst.msk [vmem:[%s223 + $0x180] sm:$0xff] %vm1067, %v1051
      %1117 = vst.msk [vmem:[%s223 + $0x188] sm:$0xff] %vm1067, %v1052
      %1118 = vst.msk [vmem:[%s223 + $0x190] sm:$0xff] %vm1067, %v1053
      %1119 = vst.msk [vmem:[%s223 + $0x198] sm:$0xff] %vm1067, %v1054
      %1120 = vst.msk [vmem:[%s223 + $0x1a0] sm:$0xff] %vm1067, %v1055
      %1121 = vst.msk [vmem:[%s223 + $0x1a8] sm:$0xff] %vm1067, %v1056
      %1122 = vst.msk [vmem:[%s223 + $0x1b0] sm:$0xff] %vm1067, %v1057
      %1123 = vst.msk [vmem:[%s223 + $0x1b8] sm:$0xff] %vm1067, %v1058
      %1124 = vst.msk [vmem:[%s223 + $0x1c0] sm:$0xff] %vm1067, %v1059
      %1125 = vst.msk [vmem:[%s223 + $0x1c8] sm:$0xff] %vm1067, %v1060
      %1126 = vst.msk [vmem:[%s223 + $0x1d0] sm:$0xff] %vm1067, %v1061
      %1127 = vst.msk [vmem:[%s223 + $0x1d8] sm:$0xff] %vm1067, %v1062
      %1128 = vst.msk [vmem:[%s223 + $0x1e0] sm:$0xff] %vm1067, %v1063
      %1129 = vst.msk [vmem:[%s223 + $0x1e8] sm:$0xff] %vm1067, %v1064
      %1130 = vst.msk [vmem:[%s223 + $0x1f0] sm:$0xff] %vm1067, %v1065
      %1131 = vst.msk [vmem:[%s223 + $0x1f8] sm:$0xff] %vm1067, %v1066
      %s1132 = smul.u32 64, %s18
      %p1133 = scmp.lt.s32.totalorder %s1132, 255
      %s1134 = scalar_select %p1133, %s1132, 255
      %p1135 = scmp.lt.s32.totalorder %s19, 0
      %s1136 = scalar_select %p1135, %s19, 0
      %s1137 = sadd.s32 %s1136, %s1134
      %s1138 = smul.addr %s1137, 8
      %s1139 = scalar_lea.vmem %s3, %s1138
      // Predicated region
      $region33: #{nlayer_discriminator_forward.5} parent=31 // pred_check
        %p1140 = pneg %p124
      $region34: #{nlayer_discriminator_forward.5} parent=31 // pred_check_branch
        %1142 = sbr.rel (%p1140) target = $region36
      $region35: #{nlayer_discriminator_forward.5} parent=31 // pred_region
        %s1143 = smul.u32 64, %s18
      $region36: #{nlayer_discriminator_forward.5} parent=31 // pred_fallthru
        _
    $region32: #{nlayer_discriminator_forward.5} parent=5 // pred_fallthru
      _
    %p1144 = scmp.le.s32.totalorder 2, %s9
    // Predicated region
    $region37: #{nlayer_discriminator_forward.5} parent=5 // pred_check
      %p1145 = pneg %p1144
    $region38: #{nlayer_discriminator_forward.5} parent=5 // pred_check_branch
      %1147 = sbr.rel (%p1145) target = $region40
    $region39: #{nlayer_discriminator_forward.5} parent=5 // pred_region
      %s1148 = ssub.s32 %s9, 2
      // Predicated region
      $region41: #{nlayer_discriminator_forward.5} parent=39 // pred_check
        %p1149 = pneg %p130
      $region42: #{nlayer_discriminator_forward.5} parent=39 // pred_check_branch
        %1151 = sbr.rel (%p1149) target = $region44
      $region43: #{nlayer_discriminator_forward.5} parent=39 // pred_region
        %s1152 = smul.u32 64, %s20
        %p1153 = scmp.lt.s32.totalorder %s1152, 255
        %s1154 = scalar_select %p1153, %s1152, 255
        %p1155 = scmp.lt.s32.totalorder %s21, 0
        %s1156 = scalar_select %p1155, %s21, 0
        %s1157 = sadd.s32 %s1156, %s1154
        %s1158 = smul.addr %s1157, 8
        %s1159 = scalar_lea.vmem %s3, %s1158
      $region44: #{nlayer_discriminator_forward.5} parent=39 // pred_fallthru
        _
    $region40: #{nlayer_discriminator_forward.5} parent=5 // pred_fallthru
      _
  $region6: #{nlayer_discriminator_forward.5} parent=0 // loop_footer
    %s13 = sadd.s32 1, %s9
  $region7: #{nlayer_discriminator_forward.5} parent=0 // loop_footer_branch
    %8 = sbr.rel target = $region3
  $region8: #{nlayer_discriminator_forward.5} parent=0 // loop_exit
    _

// kernel: nlayer_discriminator_forward.6
$region0: #{nlayer_discriminator_forward.6}
  #allocation0 [shape = 'u32[]', space=smem, size = 0x4, offset = 0x4, fixed_abs, tag = 'smem constant byte address 0x4 - core index']
  #allocation1 [shape = 'u32[144,128]{1,0:T(1,128)}', space=vmem, size = 0x12000, scoped, tag = 'internal scratch']
  %s0 = inlined_call_operand.vmem [shape: bf16[512,128], index: 0, kind: input, shape index: {}]
  %s1 = inlined_call_operand.vmem [shape: bf16[128,16], index: 1, kind: input, shape index: {}]
  %s2 = inlined_call_operand.vmem [shape: f32[1,16], index: 2, kind: input, shape index: {}]
  %s3 = inlined_call_operand.vmem [shape: f32[512,16], index: 3, kind: output, shape index: {}]
  %s4 = sld [smem:[#allocation0]]
  $region45: #{nlayer_discriminator_forward.6} parent=0
    _
  %s6 = ssub.s32 1, %s4
  %s7 = scalar_select 0, %s6, %s4
  loop: start=0, step=1, limit=4
  $region2: #{nlayer_discriminator_forward.6} parent=0 // loop_pre_header
    _
  $region3: #{nlayer_discriminator_forward.6} parent=0 // loop_header
    %s9 = sphi 0, %s13
    %p10 = scmp.ge.s32.totalorder %s9, 4
    %s16 = sphi 0, %s28
    %s17 = sphi 0, %s24
    %s18 = sphi 0, %s16
    %s19 = sphi 0, %s17
    %s20 = sphi 0, %s18
    %s21 = sphi 0, %s19
    %s31 = sphi 0, %s33
    %s34 = sphi 0, %s31
    %s35 = sphi 0, %s34
    %s51 = sphi 0, %s35
    %s57 = sphi 0, %s59
    %s60 = sphi 0, %s57
    %s61 = sphi 0, %s60
    %s77 = sphi 0, %s61
    %s83 = sphi 0, %s85
    %s86 = sphi 0, %s83
    %s87 = sphi 0, %s86
    %s103 = sphi 0, %s87
    %s111 = sphi 0, %s113
    %s114 = sphi 0, %s111
    %s115 = sphi 0, %s114
    %s131 = sphi 0, %s115
  $region4: #{nlayer_discriminator_forward.6} parent=0 // loop_header_branch
    %12 = sbr.rel (%p10) target = $region8
  $region5: #{nlayer_discriminator_forward.6} parent=0 // loop_body
    %s14 = ssub.s32 %s9, 1
    %s15 = ssub.s32 %s9, 2
    %s22 = sadd.s32 1, %s17
    %p23 = scmp.ge.s32.totalorder %s22, 1
    %s24 = scalar_select %p23, 0, %s22
    %s25 = sadd.s32 1, %s16
    %s26 = scalar_select %p23, %s25, %s16
    %p27 = scmp.ge.s32.totalorder %s26, 2
    %s28 = scalar_select %p27, 0, %s26
    %s29 = ssub.s32 %s16, %s28
    %p30 = scmp.eq.s32.totalorder %s29, 0
    %s32 = sadd.s32 %s31, 1
    %s33 = scalar_select %p30, %s31, %s32
    %p36 = pneg %p30
    %p37 = scmp.eq.s32.totalorder %s9, 1
    %p38 = por %p36, %p37
    %p39 = scmp.ne.s32.totalorder %s31, %s34
    %p40 = scmp.eq.s32.totalorder %s9, 0
    %p41 = por %p39, %p40
    %p42 = scmp.ne.s32.totalorder %s31, %s34
    %p43 = scmp.eq.s32.totalorder %s14, 1
    %p44 = por %p42, %p43
    %p45 = scmp.ne.s32.totalorder %s34, %s35
    %p46 = scmp.eq.s32.totalorder %s14, 0
    %p47 = por %p45, %p46
    %p48 = scmp.ne.s32.totalorder %s34, %s35
    %p49 = scmp.eq.s32.totalorder %s15, 1
    %p50 = por %p48, %p49
    %p52 = scmp.ne.s32.totalorder %s35, %s51
    %p53 = scmp.eq.s32.totalorder %s15, 0
    %p54 = por %p52, %p53
    %s55 = ssub.s32 %s17, %s24
    %p56 = scmp.eq.s32.totalorder %s55, 0
    %s58 = sadd.s32 %s57, 1
    %s59 = scalar_select %p56, %s57, %s58
    %p62 = pneg %p56
    %p63 = scmp.eq.s32.totalorder %s9, 1
    %p64 = por %p62, %p63
    %p65 = scmp.ne.s32.totalorder %s57, %s60
    %p66 = scmp.eq.s32.totalorder %s9, 0
    %p67 = por %p65, %p66
    %p68 = scmp.ne.s32.totalorder %s57, %s60
    %p69 = scmp.eq.s32.totalorder %s14, 1
    %p70 = por %p68, %p69
    %p71 = scmp.ne.s32.totalorder %s60, %s61
    %p72 = scmp.eq.s32.totalorder %s14, 0
    %p73 = por %p71, %p72
    %p74 = scmp.ne.s32.totalorder %s60, %s61
    %p75 = scmp.eq.s32.totalorder %s15, 1
    %p76 = por %p74, %p75
    %p78 = scmp.ne.s32.totalorder %s61, %s77
    %p79 = scmp.eq.s32.totalorder %s15, 0
    %p80 = por %p78, %p79
    %s81 = ssub.s32 %s17, %s24
    %p82 = scmp.eq.s32.totalorder %s81, 0
    %s84 = sadd.s32 %s83, 1
    %s85 = scalar_select %p82, %s83, %s84
    %p88 = pneg %p82
    %p89 = scmp.eq.s32.totalorder %s9, 1
    %p90 = por %p88, %p89
    %p91 = scmp.ne.s32.totalorder %s83, %s86
    %p92 = scmp.eq.s32.totalorder %s9, 0
    %p93 = por %p91, %p92
    %p94 = scmp.ne.s32.totalorder %s83, %s86
    %p95 = scmp.eq.s32.totalorder %s14, 1
    %p96 = por %p94, %p95
    %p97 = scmp.ne.s32.totalorder %s86, %s87
    %p98 = scmp.eq.s32.totalorder %s14, 0
    %p99 = por %p97, %p98
    %p100 = scmp.ne.s32.totalorder %s86, %s87
    %p101 = scmp.eq.s32.totalorder %s15, 1
    %p102 = por %p100, %p101
    %p104 = scmp.ne.s32.totalorder %s87, %s103
    %p105 = scmp.eq.s32.totalorder %s15, 0
    %p106 = por %p104, %p105
    %s107 = ssub.s32 %s16, %s28
    %s108 = ssub.s32 %s17, %s24
    %s109 = sor.u32 %s107, %s108
    %p110 = scmp.eq.s32.totalorder %s109, 0
    %s112 = sadd.s32 %s111, 1
    %s113 = scalar_select %p110, %s111, %s112
    %p116 = pneg %p110
    %p117 = scmp.eq.s32.totalorder %s9, 1
    %p118 = por %p116, %p117
    %p119 = scmp.ne.s32.totalorder %s111, %s114
    %p120 = scmp.eq.s32.totalorder %s9, 0
    %p121 = por %p119, %p120
    %p122 = scmp.ne.s32.totalorder %s111, %s114
    %p123 = scmp.eq.s32.totalorder %s14, 1
    %p124 = por %p122, %p123
    %p125 = scmp.ne.s32.totalorder %s114, %s115
    %p126 = scmp.eq.s32.totalorder %s14, 0
    %p127 = por %p125, %p126
    %p128 = scmp.ne.s32.totalorder %s114, %s115
    %p129 = scmp.eq.s32.totalorder %s15, 1
    %p130 = por %p128, %p129
    %p132 = scmp.ne.s32.totalorder %s115, %s131
    %p133 = scmp.eq.s32.totalorder %s15, 0
    %p134 = por %p132, %p133
    %p135 = scmp.le.s32.totalorder 1, %s9
    %p136 = scmp.lt.s32.totalorder %s9, 3
    %p137 = pnand %p135, %p136
    %p138 = pneg %p137
    // Predicated region
    $region9: #{nlayer_discriminator_forward.6} parent=5 // pred_check
      _
    $region10: #{nlayer_discriminator_forward.6} parent=5 // pred_check_branch
      %140 = sbr.rel (%p137) target = $region12
    $region11: #{nlayer_discriminator_forward.6} parent=5 // pred_region
      %s141 = ssub.s32 %s9, 1
      // Predicated region
      $region13: #{nlayer_discriminator_forward.6} parent=11 // pred_check
        %p142 = pneg %p73
      $region14: #{nlayer_discriminator_forward.6} parent=11 // pred_check_branch
        %144 = sbr.rel (%p142) target = $region16
      $region15: #{nlayer_discriminator_forward.6} parent=11 // pred_region
        %p145 = scmp.lt.s32.totalorder %s19, 0
        %s146 = scalar_select %p145, %s19, 0
        %s147 = smul.addr %s146, 4
        %s148 = scalar_lea.vmem %s1, %s147
      $region16: #{nlayer_discriminator_forward.6} parent=11 // pred_fallthru
        _
      // Predicated region
      $region17: #{nlayer_discriminator_forward.6} parent=11 // pred_check
        %p149 = pneg %p99
      $region18: #{nlayer_discriminator_forward.6} parent=11 // pred_check_branch
        %151 = sbr.rel (%p149) target = $region20
      $region19: #{nlayer_discriminator_forward.6} parent=11 // pred_region
        %p152 = scmp.lt.s32.totalorder %s19, 0
        %s153 = scalar_select %p152, %s19, 0
        %s154 = scalar_lea.vmem %s2, %s153
      $region20: #{nlayer_discriminator_forward.6} parent=11 // pred_fallthru
        _
    $region12: #{nlayer_discriminator_forward.6} parent=5 // pred_fallthru
      _
    %p155 = scmp.lt.s32.totalorder %s9, 2
    // Predicated region
    $region21: #{nlayer_discriminator_forward.6} parent=5 // pred_check
      %p156 = pneg %p155
    $region22: #{nlayer_discriminator_forward.6} parent=5 // pred_check_branch
      %158 = sbr.rel (%p156) target = $region24
    $region23: #{nlayer_discriminator_forward.6} parent=5 // pred_region
      // Predicated region
      $region25: #{nlayer_discriminator_forward.6} parent=23 // pred_check
        %p159 = pneg %p41
      $region26: #{nlayer_discriminator_forward.6} parent=23 // pred_check_branch
        %161 = sbr.rel (%p159) target = $region28
      $region27: #{nlayer_discriminator_forward.6} parent=23 // pred_region
        %s162 = smul.u32 32, %s16
        %p163 = scmp.lt.s32.totalorder %s162, 63
        %s164 = scalar_select %p163, %s162, 63
        %s165 = smul.addr %s164, 4
        %s166 = scalar_lea.vmem %s0, %s165
        %s167 = smul.u32 32, %s16
      $region28: #{nlayer_discriminator_forward.6} parent=23 // pred_fallthru
        _
    $region24: #{nlayer_discriminator_forward.6} parent=5 // pred_fallthru
      _
    %p168 = scmp.le.s32.totalorder 1, %s9
    %p169 = scmp.lt.s32.totalorder %s9, 3
    %p170 = pnand %p168, %p169
    %p171 = pneg %p170
    // Predicated region
    $region29: #{nlayer_discriminator_forward.6} parent=5 // pred_check
      _
    $region30: #{nlayer_discriminator_forward.6} parent=5 // pred_check_branch
      %173 = sbr.rel (%p170) target = $region32
    $region31: #{nlayer_discriminator_forward.6} parent=5 // pred_region
      %s174 = ssub.s32 %s9, 1
      %s175 = smul.u32 32, %s18
      %p176 = scmp.lt.s32.totalorder %s175, 63
      %s177 = scalar_select %p176, %s175, 63
      %s178 = smul.addr %s177, 4
      %s179 = scalar_lea.vmem %s0, %s178
      %p180 = pneg %p47
      %p181 = pneg %p44
      %p182 = scmp.lt.s32.totalorder %s19, 0
      %s183 = scalar_select %p182, %s19, 0
      %s184 = smul.addr %s183, 4
      %s185 = scalar_lea.vmem %s1, %s184
      %p186 = pneg %p73
      %p187 = pneg %p70
      %p188 = scmp.lt.s32.totalorder %s19, 0
      %s189 = scalar_select %p188, %s19, 0
      %s190 = scalar_lea.vmem %s2, %s189
      %p191 = pneg %p99
      %p192 = pneg %p96
      %p193 = pneg %p127
      %p194 = pneg %p124
      %s195 = smul.u32 32, %s18
      %p196 = scmp.lt.s32.totalorder %s195, 63
      %s197 = scalar_select %p196, %s195, 63
      %p198 = scmp.lt.s32.totalorder %s19, 0
      %s199 = scalar_select %p198, %s19, 0
      %s200 = sadd.s32 %s199, %s197
      %s201 = smul.addr %s200, 8
      %s202 = scalar_lea.vmem %s3, %s201
      %s203 = smul.u32 32, %s18
      %p204 = scmp.lt.s32.totalorder %s203, 63
      %s205 = scalar_select %p204, %s203, 63
      %s206 = smul.addr %s205, 4
      %s207 = scalar_lea.vmem %s0, %s206
      %s208 = smul.u32 32, %s18
      %p209 = scmp.lt.s32.totalorder %s19, 0
      %s210 = scalar_select %p209, %s19, 0
      %s211 = smul.addr %s210, 4
      %s212 = scalar_lea.vmem %s1, %s211
      %p213 = scmp.lt.s32.totalorder %s19, 0
      %s214 = scalar_select %p213, %s19, 0
      %s215 = scalar_lea.vmem %s2, %s214
      %s216 = smul.u32 32, %s18
      %p217 = scmp.lt.s32.totalorder %s216, 63
      %s218 = scalar_select %p217, %s216, 63
      %p219 = scmp.lt.s32.totalorder %s19, 0
      %s220 = scalar_select %p219, %s19, 0
      %s221 = sadd.s32 %s220, %s218
      %s222 = smul.addr %s221, 8
      %s223 = scalar_lea.vmem %s3, %s222
      %s224 = smul.u32 32, %s18
      %v226 = vld [vmem:[%s207] sm:$0xf]
      %v227 = vld [vmem:[%s207 + $0x4] sm:$0xf]
      %v228 = vld [vmem:[%s207 + $0x8] sm:$0xf]
      %v229 = vld [vmem:[%s207 + $0xc] sm:$0xf]
      %v230 = vld [vmem:[%s207 + $0x10] sm:$0xf]
      %v231 = vld [vmem:[%s207 + $0x14] sm:$0xf]
      %v232 = vld [vmem:[%s207 + $0x18] sm:$0xf]
      %v233 = vld [vmem:[%s207 + $0x1c] sm:$0xf]
      %v234 = vld [vmem:[%s207 + $0x20] sm:$0xf]
      %v235 = vld [vmem:[%s207 + $0x24] sm:$0xf]
      %v236 = vld [vmem:[%s207 + $0x28] sm:$0xf]
      %v237 = vld [vmem:[%s207 + $0x2c] sm:$0xf]
      %v238 = vld [vmem:[%s207 + $0x30] sm:$0xf]
      %v239 = vld [vmem:[%s207 + $0x34] sm:$0xf]
      %v240 = vld [vmem:[%s207 + $0x38] sm:$0xf]
      %v241 = vld [vmem:[%s207 + $0x3c] sm:$0xf]
      %v242 = vld [vmem:[%s207 + $0x40] sm:$0xf]
      %v243 = vld [vmem:[%s207 + $0x44] sm:$0xf]
      %v244 = vld [vmem:[%s207 + $0x48] sm:$0xf]
      %v245 = vld [vmem:[%s207 + $0x4c] sm:$0xf]
      %v246 = vld [vmem:[%s207 + $0x50] sm:$0xf]
      %v247 = vld [vmem:[%s207 + $0x54] sm:$0xf]
      %v248 = vld [vmem:[%s207 + $0x58] sm:$0xf]
      %v249 = vld [vmem:[%s207 + $0x5c] sm:$0xf]
      %v250 = vld [vmem:[%s207 + $0x60] sm:$0xf]
      %v251 = vld [vmem:[%s207 + $0x64] sm:$0xf]
      %v252 = vld [vmem:[%s207 + $0x68] sm:$0xf]
      %v253 = vld [vmem:[%s207 + $0x6c] sm:$0xf]
      %v254 = vld [vmem:[%s207 + $0x70] sm:$0xf]
      %v255 = vld [vmem:[%s207 + $0x74] sm:$0xf]
      %v256 = vld [vmem:[%s207 + $0x78] sm:$0xf]
      %v257 = vld [vmem:[%s207 + $0x7c] sm:$0xf]
      %v258 = vld [vmem:[%s212] sm:$0xf]
      %v259 = vld [vmem:[%s212 + $0x4] sm:$0xf]
      %v260 = vld [vmem:[%s212 + $0x8] sm:$0xf]
      %v261 = vld [vmem:[%s212 + $0xc] sm:$0xf]
      %v262 = vld [vmem:[%s212 + $0x10] sm:$0xf]
      %v263 = vld [vmem:[%s212 + $0x14] sm:$0xf]
      %v264 = vld [vmem:[%s212 + $0x18] sm:$0xf]
      %v265 = vld [vmem:[%s212 + $0x1c] sm:$0xf]
      %v266 = vld [vmem:[%s212 + $0x20] sm:$0xf]
      %v267 = vld [vmem:[%s212 + $0x24] sm:$0xf]
      %v268 = vld [vmem:[%s212 + $0x28] sm:$0xf]
      %v269 = vld [vmem:[%s212 + $0x2c] sm:$0xf]
      %v270 = vld [vmem:[%s212 + $0x30] sm:$0xf]
      %v271 = vld [vmem:[%s212 + $0x34] sm:$0xf]
      %v272 = vld [vmem:[%s212 + $0x38] sm:$0xf]
      %v273 = vld [vmem:[%s212 + $0x3c] sm:$0xf]
      %v274 = vld [vmem:[%s215] sm:$0x1]
      %v276 = vlaneseq
      %v277 = vshrl.u32 %v276, 7
      %v278 = vsub.s32 0, %v277
      %v279 = vrot.slane %v274, %v278
      %v313 = vunpack.c.l.b16 %v226
      %v314 = vunpack.c.l.b16 %v227
      %v315 = vunpack.c.l.b16 %v228
      %v316 = vunpack.c.l.b16 %v229
      %v317 = vunpack.c.l.b16 %v230
      %v318 = vunpack.c.l.b16 %v231
      %v319 = vunpack.c.l.b16 %v232
      %v320 = vunpack.c.l.b16 %v233
      %v321 = vunpack.c.l.b16 %v234
      %v322 = vunpack.c.l.b16 %v235
      %v323 = vunpack.c.l.b16 %v236
      %v324 = vunpack.c.l.b16 %v237
      %v325 = vunpack.c.l.b16 %v238
      %v326 = vunpack.c.l.b16 %v239
      %v327 = vunpack.c.l.b16 %v240
      %v328 = vunpack.c.l.b16 %v241
      %v329 = vunpack.c.l.b16 %v242
      %v330 = vunpack.c.l.b16 %v243
      %v331 = vunpack.c.l.b16 %v244
      %v332 = vunpack.c.l.b16 %v245
      %v333 = vunpack.c.l.b16 %v246
      %v334 = vunpack.c.l.b16 %v247
      %v335 = vunpack.c.l.b16 %v248
      %v336 = vunpack.c.l.b16 %v249
      %v337 = vunpack.c.l.b16 %v250
      %v338 = vunpack.c.l.b16 %v251
      %v339 = vunpack.c.l.b16 %v252
      %v340 = vunpack.c.l.b16 %v253
      %v341 = vunpack.c.l.b16 %v254
      %v342 = vunpack.c.l.b16 %v255
      %v343 = vunpack.c.l.b16 %v256
      %v344 = vunpack.c.l.b16 %v257
      %v345 = vpack.c.b16 %v314, %v313
      %v346 = vpack.c.b16 %v316, %v315
      %v347 = vpack.c.b16 %v318, %v317
      %v348 = vpack.c.b16 %v320, %v319
      %v349 = vpack.c.b16 %v322, %v321
      %v350 = vpack.c.b16 %v324, %v323
      %v351 = vpack.c.b16 %v326, %v325
      %v352 = vpack.c.b16 %v328, %v327
      %v353 = vpack.c.b16 %v330, %v329
      %v354 = vpack.c.b16 %v332, %v331
      %v355 = vpack.c.b16 %v334, %v333
      %v356 = vpack.c.b16 %v336, %v335
      %v357 = vpack.c.b16 %v338, %v337
      %v358 = vpack.c.b16 %v340, %v339
      %v359 = vpack.c.b16 %v342, %v341
      %v360 = vpack.c.b16 %v344, %v343
      %v393 = vunpack.c.l.b16 %v258
      %v394 = vunpack.c.l.b16 %v259
      %v395 = vunpack.c.l.b16 %v260
      %v396 = vunpack.c.l.b16 %v261
      %v397 = vunpack.c.l.b16 %v262
      %v398 = vunpack.c.l.b16 %v263
      %v399 = vunpack.c.l.b16 %v264
      %v400 = vunpack.c.l.b16 %v265
      %v401 = vunpack.c.l.b16 %v266
      %v402 = vunpack.c.l.b16 %v267
      %v403 = vunpack.c.l.b16 %v268
      %v404 = vunpack.c.l.b16 %v269
      %v405 = vunpack.c.l.b16 %v270
      %v406 = vunpack.c.l.b16 %v271
      %v407 = vunpack.c.l.b16 %v272
      %v408 = vunpack.c.l.b16 %v273
      %v409 = vpack.c.b16 %v394, %v393
      %v410 = vpack.c.b16 %v396, %v395
      %v411 = vpack.c.b16 %v398, %v397
      %v412 = vpack.c.b16 %v400, %v399
      %v413 = vpack.c.b16 %v402, %v401
      %v414 = vpack.c.b16 %v404, %v403
      %v415 = vpack.c.b16 %v406, %v405
      %v416 = vpack.c.b16 %v408, %v407
      %425 = vmatprep.subr.bf16.mxu0 0
      %426 = vmatpush1.bf16.msra.mxu0 %v409
      %427 = vmatprep.subr.bf16.mxu0 0
      %428 = vmatpush1.bf16.msra.mxu0 %v410
      %429 = vmatprep.subr.bf16.mxu0 0
      %430 = vmatpush1.bf16.msra.mxu0 %v411
      %431 = vmatprep.subr.bf16.mxu0 0
      %432 = vmatpush1.bf16.msra.mxu0 %v412
      %433 = vmatprep.subr.bf16.mxu0 0
      %434 = vmatpush1.bf16.msra.mxu0 %v413
      %435 = vmatprep.subr.bf16.mxu0 0
      %436 = vmatpush1.bf16.msra.mxu0 %v414
      %437 = vmatprep.subr.bf16.mxu0 0
      %438 = vmatpush1.bf16.msra.mxu0 %v415
      %439 = vmatprep.subr.bf16.mxu0 0
      %440 = vmatpush1.bf16.msra.mxu0 %v416
      %441 = vmatprep.subr.bf16.mxu0 0
      %442 = vmatpush1.bf16.msra.mxu0 0
      %443 = vmatprep.subr.bf16.mxu0 0
      %444 = vmatpush1.bf16.msra.mxu0 0
      %445 = vmatprep.subr.bf16.mxu0 0
      %446 = vmatpush1.bf16.msra.mxu0 0
      %447 = vmatprep.subr.bf16.mxu0 0
      %448 = vmatpush1.bf16.msra.mxu0 0
      %449 = vmatprep.subr.bf16.mxu0 0
      %450 = vmatpush1.bf16.msra.mxu0 0
      %451 = vmatprep.subr.bf16.mxu0 0
      %452 = vmatpush1.bf16.msra.mxu0 0
      %453 = vmatprep.subr.bf16.mxu0 0
      %454 = vmatpush1.bf16.msra.mxu0 0
      %455 = vmatprep.subr.bf16.mxu0 0
      %456 = vmatpush1.bf16.msra.mxu0 0
      %457 = vmatprep.mubr.bf16.mxu0 0
      %458 = vmatmul.mubr.bf16.gmra.mrb[0].mxu0 %v345
      %v459 = vpop.f32.mrb[0].mxu0
      %v460 = vadd.f32 %v279, %v459
      %v461 = vpop.f32.mrb[0].mxu0
      %v462 = vpop.f32.mrb[0].mxu0
      %v463 = vadd.f32 %v279, %v462
      %v464 = vpop.f32.mrb[0].mxu0
      %465 = vmatprep.mubr.bf16.mxu0 0
      %466 = vmatmul.mubr.bf16.gmra.mrb[0].mxu0 %v346
      %v467 = vpop.f32.mrb[0].mxu0
      %v468 = vadd.f32 %v279, %v467
      %v469 = vpop.f32.mrb[0].mxu0
      %v470 = vpop.f32.mrb[0].mxu0
      %v471 = vadd.f32 %v279, %v470
      %v472 = vpop.f32.mrb[0].mxu0
      %473 = vmatprep.mubr.bf16.mxu0 0
      %474 = vmatmul.mubr.bf16.gmra.mrb[0].mxu0 %v347
      %v475 = vpop.f32.mrb[0].mxu0
      %v476 = vadd.f32 %v279, %v475
      %v477 = vpop.f32.mrb[0].mxu0
      %v478 = vpop.f32.mrb[0].mxu0
      %v479 = vadd.f32 %v279, %v478
      %v480 = vpop.f32.mrb[0].mxu0
      %481 = vmatprep.mubr.bf16.mxu0 0
      %482 = vmatmul.mubr.bf16.gmra.mrb[0].mxu0 %v348
      %v483 = vpop.f32.mrb[0].mxu0
      %v484 = vadd.f32 %v279, %v483
      %v485 = vpop.f32.mrb[0].mxu0
      %v486 = vpop.f32.mrb[0].mxu0
      %v487 = vadd.f32 %v279, %v486
      %v488 = vpop.f32.mrb[0].mxu0
      %489 = vmatprep.mubr.bf16.mxu0 0
      %490 = vmatmul.mubr.bf16.gmra.mrb[0].mxu0 %v349
      %v491 = vpop.f32.mrb[0].mxu0
      %v492 = vadd.f32 %v279, %v491
      %v493 = vpop.f32.mrb[0].mxu0
      %v494 = vpop.f32.mrb[0].mxu0
      %v495 = vadd.f32 %v279, %v494
      %v496 = vpop.f32.mrb[0].mxu0
      %497 = vmatprep.mubr.bf16.mxu0 0
      %498 = vmatmul.mubr.bf16.gmra.mrb[0].mxu0 %v350
      %v499 = vpop.f32.mrb[0].mxu0
      %v500 = vadd.f32 %v279, %v499
      %v501 = vpop.f32.mrb[0].mxu0
      %v502 = vpop.f32.mrb[0].mxu0
      %v503 = vadd.f32 %v279, %v502
      %v504 = vpop.f32.mrb[0].mxu0
      %505 = vmatprep.mubr.bf16.mxu0 0
      %506 = vmatmul.mubr.bf16.gmra.mrb[0].mxu0 %v351
      %v507 = vpop.f32.mrb[0].mxu0
      %v508 = vadd.f32 %v279, %v507
      %v509 = vpop.f32.mrb[0].mxu0
      %v510 = vpop.f32.mrb[0].mxu0
      %v511 = vadd.f32 %v279, %v510
      %v512 = vpop.f32.mrb[0].mxu0
      %513 = vmatprep.mubr.bf16.mxu0 0
      %514 = vmatmul.mubr.bf16.gmra.mrb[0].mxu0 %v352
      %v515 = vpop.f32.mrb[0].mxu0
      %v516 = vadd.f32 %v279, %v515
      %v517 = vpop.f32.mrb[0].mxu0
      %v518 = vpop.f32.mrb[0].mxu0
      %v519 = vadd.f32 %v279, %v518
      %v520 = vpop.f32.mrb[0].mxu0
      %521 = vmatprep.mubr.bf16.mxu0 0
      %522 = vmatmul.mubr.bf16.gmra.mrb[0].mxu0 %v353
      %v523 = vpop.f32.mrb[0].mxu0
      %v524 = vadd.f32 %v279, %v523
      %v525 = vpop.f32.mrb[0].mxu0
      %v526 = vpop.f32.mrb[0].mxu0
      %v527 = vadd.f32 %v279, %v526
      %v528 = vpop.f32.mrb[0].mxu0
      %529 = vmatprep.mubr.bf16.mxu0 0
      %530 = vmatmul.mubr.bf16.gmra.mrb[0].mxu0 %v354
      %v531 = vpop.f32.mrb[0].mxu0
      %v532 = vadd.f32 %v279, %v531
      %v533 = vpop.f32.mrb[0].mxu0
      %v534 = vpop.f32.mrb[0].mxu0
      %v535 = vadd.f32 %v279, %v534
      %v536 = vpop.f32.mrb[0].mxu0
      %537 = vmatprep.mubr.bf16.mxu0 0
      %538 = vmatmul.mubr.bf16.gmra.mrb[0].mxu0 %v355
      %v539 = vpop.f32.mrb[0].mxu0
      %v540 = vadd.f32 %v279, %v539
      %v541 = vpop.f32.mrb[0].mxu0
      %v542 = vpop.f32.mrb[0].mxu0
      %v543 = vadd.f32 %v279, %v542
      %v544 = vpop.f32.mrb[0].mxu0
      %545 = vmatprep.mubr.bf16.mxu0 0
      %546 = vmatmul.mubr.bf16.gmra.mrb[0].mxu0 %v356
      %v547 = vpop.f32.mrb[0].mxu0
      %v548 = vadd.f32 %v279, %v547
      %v549 = vpop.f32.mrb[0].mxu0
      %v550 = vpop.f32.mrb[0].mxu0
      %v551 = vadd.f32 %v279, %v550
      %v552 = vpop.f32.mrb[0].mxu0
      %553 = vmatprep.mubr.bf16.mxu0 0
      %554 = vmatmul.mubr.bf16.gmra.mrb[0].mxu0 %v357
      %v555 = vpop.f32.mrb[0].mxu0
      %v556 = vadd.f32 %v279, %v555
      %v557 = vpop.f32.mrb[0].mxu0
      %v558 = vpop.f32.mrb[0].mxu0
      %v559 = vadd.f32 %v279, %v558
      %v560 = vpop.f32.mrb[0].mxu0
      %561 = vmatprep.mubr.bf16.mxu0 0
      %562 = vmatmul.mubr.bf16.gmra.mrb[0].mxu0 %v358
      %v563 = vpop.f32.mrb[0].mxu0
      %v564 = vadd.f32 %v279, %v563
      %v565 = vpop.f32.mrb[0].mxu0
      %v566 = vpop.f32.mrb[0].mxu0
      %v567 = vadd.f32 %v279, %v566
      %v568 = vpop.f32.mrb[0].mxu0
      %569 = vmatprep.mubr.bf16.mxu0 0
      %570 = vmatmul.mubr.bf16.gmra.mrb[0].mxu0 %v359
      %v571 = vpop.f32.mrb[0].mxu0
      %v572 = vadd.f32 %v279, %v571
      %v573 = vpop.f32.mrb[0].mxu0
      %v574 = vpop.f32.mrb[0].mxu0
      %v575 = vadd.f32 %v279, %v574
      %v576 = vpop.f32.mrb[0].mxu0
      %577 = vmatprep.mubr.bf16.mxu0 0
      %578 = vmatmul.mubr.bf16.gmra.mrb[0].mxu0 %v360
      %v579 = vpop.f32.mrb[0].mxu0
      %v580 = vadd.f32 %v279, %v579
      %v581 = vpop.f32.mrb[0].mxu0
      %v582 = vpop.f32.mrb[0].mxu0
      %v583 = vadd.f32 %v279, %v582
      %v584 = vpop.f32.mrb[0].mxu0
      %585 = vdwg.mxu0
      %vm586 = vcmask 130048
      %587 = vst.msk [vmem:[%s223] sm:$0xff] %vm586, %v460
      %588 = vst.msk [vmem:[%s223 + $0x8] sm:$0xff] %vm586, %v463
      %589 = vst.msk [vmem:[%s223 + $0x10] sm:$0xff] %vm586, %v468
      %590 = vst.msk [vmem:[%s223 + $0x18] sm:$0xff] %vm586, %v471
      %591 = vst.msk [vmem:[%s223 + $0x20] sm:$0xff] %vm586, %v476
      %592 = vst.msk [vmem:[%s223 + $0x28] sm:$0xff] %vm586, %v479
      %593 = vst.msk [vmem:[%s223 + $0x30] sm:$0xff] %vm586, %v484
      %594 = vst.msk [vmem:[%s223 + $0x38] sm:$0xff] %vm586, %v487
      %595 = vst.msk [vmem:[%s223 + $0x40] sm:$0xff] %vm586, %v492
      %596 = vst.msk [vmem:[%s223 + $0x48] sm:$0xff] %vm586, %v495
      %597 = vst.msk [vmem:[%s223 + $0x50] sm:$0xff] %vm586, %v500
      %598 = vst.msk [vmem:[%s223 + $0x58] sm:$0xff] %vm586, %v503
      %599 = vst.msk [vmem:[%s223 + $0x60] sm:$0xff] %vm586, %v508
      %600 = vst.msk [vmem:[%s223 + $0x68] sm:$0xff] %vm586, %v511
      %601 = vst.msk [vmem:[%s223 + $0x70] sm:$0xff] %vm586, %v516
      %602 = vst.msk [vmem:[%s223 + $0x78] sm:$0xff] %vm586, %v519
      %603 = vst.msk [vmem:[%s223 + $0x80] sm:$0xff] %vm586, %v524
      %604 = vst.msk [vmem:[%s223 + $0x88] sm:$0xff] %vm586, %v527
      %605 = vst.msk [vmem:[%s223 + $0x90] sm:$0xff] %vm586, %v532
      %606 = vst.msk [vmem:[%s223 + $0x98] sm:$0xff] %vm586, %v535
      %607 = vst.msk [vmem:[%s223 + $0xa0] sm:$0xff] %vm586, %v540
      %608 = vst.msk [vmem:[%s223 + $0xa8] sm:$0xff] %vm586, %v543
      %609 = vst.msk [vmem:[%s223 + $0xb0] sm:$0xff] %vm586, %v548
      %610 = vst.msk [vmem:[%s223 + $0xb8] sm:$0xff] %vm586, %v551
      %611 = vst.msk [vmem:[%s223 + $0xc0] sm:$0xff] %vm586, %v556
      %612 = vst.msk [vmem:[%s223 + $0xc8] sm:$0xff] %vm586, %v559
      %613 = vst.msk [vmem:[%s223 + $0xd0] sm:$0xff] %vm586, %v564
      %614 = vst.msk [vmem:[%s223 + $0xd8] sm:$0xff] %vm586, %v567
      %615 = vst.msk [vmem:[%s223 + $0xe0] sm:$0xff] %vm586, %v572
      %616 = vst.msk [vmem:[%s223 + $0xe8] sm:$0xff] %vm586, %v575
      %617 = vst.msk [vmem:[%s223 + $0xf0] sm:$0xff] %vm586, %v580
      %618 = vst.msk [vmem:[%s223 + $0xf8] sm:$0xff] %vm586, %v583
      %s619 = smul.u32 32, %s18
      %p620 = scmp.lt.s32.totalorder %s619, 63
      %s621 = scalar_select %p620, %s619, 63
      %p622 = scmp.lt.s32.totalorder %s19, 0
      %s623 = scalar_select %p622, %s19, 0
      %s624 = sadd.s32 %s623, %s621
      %s625 = smul.addr %s624, 8
      %s626 = scalar_lea.vmem %s3, %s625
      // Predicated region
      $region33: #{nlayer_discriminator_forward.6} parent=31 // pred_check
        %p627 = pneg %p124
      $region34: #{nlayer_discriminator_forward.6} parent=31 // pred_check_branch
        %629 = sbr.rel (%p627) target = $region36
      $region35: #{nlayer_discriminator_forward.6} parent=31 // pred_region
        %s630 = smul.u32 32, %s18
      $region36: #{nlayer_discriminator_forward.6} parent=31 // pred_fallthru
        _
    $region32: #{nlayer_discriminator_forward.6} parent=5 // pred_fallthru
      _
    %p631 = scmp.le.s32.totalorder 2, %s9
    // Predicated region
    $region37: #{nlayer_discriminator_forward.6} parent=5 // pred_check
      %p632 = pneg %p631
    $region38: #{nlayer_discriminator_forward.6} parent=5 // pred_check_branch
      %634 = sbr.rel (%p632) target = $region40
    $region39: #{nlayer_discriminator_forward.6} parent=5 // pred_region
      %s635 = ssub.s32 %s9, 2
      // Predicated region
      $region41: #{nlayer_discriminator_forward.6} parent=39 // pred_check
        %p636 = pneg %p130
      $region42: #{nlayer_discriminator_forward.6} parent=39 // pred_check_branch
        %638 = sbr.rel (%p636) target = $region44
      $region43: #{nlayer_discriminator_forward.6} parent=39 // pred_region
        %s639 = smul.u32 32, %s20
        %p640 = scmp.lt.s32.totalorder %s639, 63
        %s641 = scalar_select %p640, %s639, 63
        %p642 = scmp.lt.s32.totalorder %s21, 0
        %s643 = scalar_select %p642, %s21, 0
        %s644 = sadd.s32 %s643, %s641
        %s645 = smul.addr %s644, 8
        %s646 = scalar_lea.vmem %s3, %s645
      $region44: #{nlayer_discriminator_forward.6} parent=39 // pred_fallthru
        _
    $region40: #{nlayer_discriminator_forward.6} parent=5 // pred_fallthru
      _
  $region6: #{nlayer_discriminator_forward.6} parent=0 // loop_footer
    %s13 = sadd.s32 1, %s9
  $region7: #{nlayer_discriminator_forward.6} parent=0 // loop_footer_branch
    %8 = sbr.rel target = $region3
  $region8: #{nlayer_discriminator_forward.6} parent=0 // loop_exit
    _

// kernel: nlayer_discriminator_forward.7
$region0: #{nlayer_discriminator_forward.7}
  #allocation0 [shape = 'u32[]', space=smem, size = 0x4, offset = 0x4, fixed_abs, tag = 'smem constant byte address 0x4 - core index']
  #allocation1 [shape = 'u32[144,128]{1,0:T(1,128)}', space=vmem, size = 0x12000, scoped, tag = 'internal scratch']
  %s0 = inlined_call_operand.vmem [shape: bf16[128,256], index: 0, kind: input, shape index: {}]
  %s1 = inlined_call_operand.vmem [shape: bf16[256,32], index: 1, kind: input, shape index: {}]
  %s2 = inlined_call_operand.vmem [shape: f32[1,32], index: 2, kind: input, shape index: {}]
  %s3 = inlined_call_operand.vmem [shape: f32[128,32], index: 3, kind: output, shape index: {}]
  %s4 = sld [smem:[#allocation0]]
  $region22: #{nlayer_discriminator_forward.7} parent=0
    _
  %s6 = ssub.s32 1, %s4
  %s7 = scalar_select 0, %s6, %s4
  // Predicated region
  $region2: #{nlayer_discriminator_forward.7} parent=0 // pred_check
    _
  $region3: #{nlayer_discriminator_forward.7} parent=0 // pred_check_branch
    %9 = sbr.rel (0) target = $region5
  $region4: #{nlayer_discriminator_forward.7} parent=0 // pred_region
    _
  $region5: #{nlayer_discriminator_forward.7} parent=0 // pred_fallthru
    _
  // Predicated region
  $region6: #{nlayer_discriminator_forward.7} parent=0 // pred_check
    _
  $region7: #{nlayer_discriminator_forward.7} parent=0 // pred_check_branch
    %11 = sbr.rel (0) target = $region9
  $region8: #{nlayer_discriminator_forward.7} parent=0 // pred_region
    _
  $region9: #{nlayer_discriminator_forward.7} parent=0 // pred_fallthru
    _
  // Predicated region
  $region10: #{nlayer_discriminator_forward.7} parent=0 // pred_check
    _
  $region11: #{nlayer_discriminator_forward.7} parent=0 // pred_check_branch
    %13 = sbr.rel (0) target = $region13
  $region12: #{nlayer_discriminator_forward.7} parent=0 // pred_region
    _
  $region13: #{nlayer_discriminator_forward.7} parent=0 // pred_fallthru
    _
  %v15 = vld [vmem:[%s0] sm:$0xff]
  %v16 = vld [vmem:[%s0 + $0x8] sm:$0xff]
  %v17 = vld [vmem:[%s0 + $0x10] sm:$0xff]
  %v18 = vld [vmem:[%s0 + $0x18] sm:$0xff]
  %v19 = vld [vmem:[%s0 + $0x20] sm:$0xff]
  %v20 = vld [vmem:[%s0 + $0x28] sm:$0xff]
  %v21 = vld [vmem:[%s0 + $0x30] sm:$0xff]
  %v22 = vld [vmem:[%s0 + $0x38] sm:$0xff]
  %v23 = vld [vmem:[%s0 + $0x40] sm:$0xff]
  %v24 = vld [vmem:[%s0 + $0x48] sm:$0xff]
  %v25 = vld [vmem:[%s0 + $0x50] sm:$0xff]
  %v26 = vld [vmem:[%s0 + $0x58] sm:$0xff]
  %v27 = vld [vmem:[%s0 + $0x60] sm:$0xff]
  %v28 = vld [vmem:[%s0 + $0x68] sm:$0xff]
  %v29 = vld [vmem:[%s0 + $0x70] sm:$0xff]
  %v30 = vld [vmem:[%s0 + $0x78] sm:$0xff]
  %v31 = vld [vmem:[%s1] sm:$0xf]
  %v32 = vld [vmem:[%s1 + $0x4] sm:$0xf]
  %v33 = vld [vmem:[%s1 + $0x8] sm:$0xf]
  %v34 = vld [vmem:[%s1 + $0xc] sm:$0xf]
  %v35 = vld [vmem:[%s1 + $0x10] sm:$0xf]
  %v36 = vld [vmem:[%s1 + $0x14] sm:$0xf]
  %v37 = vld [vmem:[%s1 + $0x18] sm:$0xf]
  %v38 = vld [vmem:[%s1 + $0x1c] sm:$0xf]
  %v39 = vld [vmem:[%s1 + $0x20] sm:$0xf]
  %v40 = vld [vmem:[%s1 + $0x24] sm:$0xf]
  %v41 = vld [vmem:[%s1 + $0x28] sm:$0xf]
  %v42 = vld [vmem:[%s1 + $0x2c] sm:$0xf]
  %v43 = vld [vmem:[%s1 + $0x30] sm:$0xf]
  %v44 = vld [vmem:[%s1 + $0x34] sm:$0xf]
  %v45 = vld [vmem:[%s1 + $0x38] sm:$0xf]
  %v46 = vld [vmem:[%s1 + $0x3c] sm:$0xf]
  %v47 = vld [vmem:[%s1 + $0x40] sm:$0xf]
  %v48 = vld [vmem:[%s1 + $0x44] sm:$0xf]
  %v49 = vld [vmem:[%s1 + $0x48] sm:$0xf]
  %v50 = vld [vmem:[%s1 + $0x4c] sm:$0xf]
  %v51 = vld [vmem:[%s1 + $0x50] sm:$0xf]
  %v52 = vld [vmem:[%s1 + $0x54] sm:$0xf]
  %v53 = vld [vmem:[%s1 + $0x58] sm:$0xf]
  %v54 = vld [vmem:[%s1 + $0x5c] sm:$0xf]
  %v55 = vld [vmem:[%s1 + $0x60] sm:$0xf]
  %v56 = vld [vmem:[%s1 + $0x64] sm:$0xf]
  %v57 = vld [vmem:[%s1 + $0x68] sm:$0xf]
  %v58 = vld [vmem:[%s1 + $0x6c] sm:$0xf]
  %v59 = vld [vmem:[%s1 + $0x70] sm:$0xf]
  %v60 = vld [vmem:[%s1 + $0x74] sm:$0xf]
  %v61 = vld [vmem:[%s1 + $0x78] sm:$0xf]
  %v62 = vld [vmem:[%s1 + $0x7c] sm:$0xf]
  %v63 = vld [vmem:[%s2] sm:$0x1]
  %v65 = vlaneseq
  %v66 = vshrl.u32 %v65, 7
  %v67 = vsub.s32 0, %v66
  %v68 = vrot.slane %v63, %v67
  %v86 = vunpack.c.l.b16 %v15
  %v87 = vunpack.c.h.b16 %v15
  %v88 = vunpack.c.l.b16 %v16
  %v89 = vunpack.c.h.b16 %v16
  %v90 = vunpack.c.l.b16 %v17
  %v91 = vunpack.c.h.b16 %v17
  %v92 = vunpack.c.l.b16 %v18
  %v93 = vunpack.c.h.b16 %v18
  %v94 = vunpack.c.l.b16 %v19
  %v95 = vunpack.c.h.b16 %v19
  %v96 = vunpack.c.l.b16 %v20
  %v97 = vunpack.c.h.b16 %v20
  %v98 = vunpack.c.l.b16 %v21
  %v99 = vunpack.c.h.b16 %v21
  %v100 = vunpack.c.l.b16 %v22
  %v101 = vunpack.c.h.b16 %v22
  %v102 = vunpack.c.l.b16 %v23
  %v103 = vunpack.c.h.b16 %v23
  %v104 = vunpack.c.l.b16 %v24
  %v105 = vunpack.c.h.b16 %v24
  %v106 = vunpack.c.l.b16 %v25
  %v107 = vunpack.c.h.b16 %v25
  %v108 = vunpack.c.l.b16 %v26
  %v109 = vunpack.c.h.b16 %v26
  %v110 = vunpack.c.l.b16 %v27
  %v111 = vunpack.c.h.b16 %v27
  %v112 = vunpack.c.l.b16 %v28
  %v113 = vunpack.c.h.b16 %v28
  %v114 = vunpack.c.l.b16 %v29
  %v115 = vunpack.c.h.b16 %v29
  %v116 = vunpack.c.l.b16 %v30
  %v117 = vunpack.c.h.b16 %v30
  %v118 = vpack.c.b16 %v88, %v86
  %v119 = vpack.c.b16 %v89, %v87
  %v120 = vpack.c.b16 %v92, %v90
  %v121 = vpack.c.b16 %v93, %v91
  %v122 = vpack.c.b16 %v96, %v94
  %v123 = vpack.c.b16 %v97, %v95
  %v124 = vpack.c.b16 %v100, %v98
  %v125 = vpack.c.b16 %v101, %v99
  %v126 = vpack.c.b16 %v104, %v102
  %v127 = vpack.c.b16 %v105, %v103
  %v128 = vpack.c.b16 %v108, %v106
  %v129 = vpack.c.b16 %v109, %v107
  %v130 = vpack.c.b16 %v112, %v110
  %v131 = vpack.c.b16 %v113, %v111
  %v132 = vpack.c.b16 %v116, %v114
  %v133 = vpack.c.b16 %v117, %v115
  %v182 = vunpack.c.l.b16 %v31
  %v183 = vunpack.c.l.b16 %v32
  %v184 = vunpack.c.l.b16 %v33
  %v185 = vunpack.c.l.b16 %v34
  %v186 = vunpack.c.l.b16 %v35
  %v187 = vunpack.c.l.b16 %v36
  %v188 = vunpack.c.l.b16 %v37
  %v189 = vunpack.c.l.b16 %v38
  %v190 = vunpack.c.l.b16 %v39
  %v191 = vunpack.c.l.b16 %v40
  %v192 = vunpack.c.l.b16 %v41
  %v193 = vunpack.c.l.b16 %v42
  %v194 = vunpack.c.l.b16 %v43
  %v195 = vunpack.c.l.b16 %v44
  %v196 = vunpack.c.l.b16 %v45
  %v197 = vunpack.c.l.b16 %v46
  %v198 = vunpack.c.l.b16 %v47
  %v199 = vunpack.c.l.b16 %v48
  %v200 = vunpack.c.l.b16 %v49
  %v201 = vunpack.c.l.b16 %v50
  %v202 = vunpack.c.l.b16 %v51
  %v203 = vunpack.c.l.b16 %v52
  %v204 = vunpack.c.l.b16 %v53
  %v205 = vunpack.c.l.b16 %v54
  %v206 = vunpack.c.l.b16 %v55
  %v207 = vunpack.c.l.b16 %v56
  %v208 = vunpack.c.l.b16 %v57
  %v209 = vunpack.c.l.b16 %v58
  %v210 = vunpack.c.l.b16 %v59
  %v211 = vunpack.c.l.b16 %v60
  %v212 = vunpack.c.l.b16 %v61
  %v213 = vunpack.c.l.b16 %v62
  %v214 = vpack.c.b16 %v183, %v182
  %v215 = vpack.c.b16 %v185, %v184
  %v216 = vpack.c.b16 %v187, %v186
  %v217 = vpack.c.b16 %v189, %v188
  %v218 = vpack.c.b16 %v191, %v190
  %v219 = vpack.c.b16 %v193, %v192
  %v220 = vpack.c.b16 %v195, %v194
  %v221 = vpack.c.b16 %v197, %v196
  %v222 = vpack.c.b16 %v199, %v198
  %v223 = vpack.c.b16 %v201, %v200
  %v224 = vpack.c.b16 %v203, %v202
  %v225 = vpack.c.b16 %v205, %v204
  %v226 = vpack.c.b16 %v207, %v206
  %v227 = vpack.c.b16 %v209, %v208
  %v228 = vpack.c.b16 %v211, %v210
  %v229 = vpack.c.b16 %v213, %v212
  %246 = vmatprep.subr.bf16.mxu0 0
  %247 = vmatpush1.bf16.msra.mxu0 %v214
  %248 = vmatprep.subr.bf16.mxu0 0
  %249 = vmatpush1.bf16.msra.mxu0 %v215
  %250 = vmatprep.subr.bf16.mxu0 0
  %251 = vmatpush1.bf16.msra.mxu0 %v216
  %252 = vmatprep.subr.bf16.mxu0 0
  %253 = vmatpush1.bf16.msra.mxu0 %v217
  %254 = vmatprep.subr.bf16.mxu0 0
  %255 = vmatpush1.bf16.msra.mxu0 %v218
  %256 = vmatprep.subr.bf16.mxu0 0
  %257 = vmatpush1.bf16.msra.mxu0 %v219
  %258 = vmatprep.subr.bf16.mxu0 0
  %259 = vmatpush1.bf16.msra.mxu0 %v220
  %260 = vmatprep.subr.bf16.mxu0 0
  %261 = vmatpush1.bf16.msra.mxu0 %v221
  %262 = vmatprep.subr.bf16.mxu0 0
  %263 = vmatpush1.bf16.msra.mxu0 %v222
  %264 = vmatprep.subr.bf16.mxu0 0
  %265 = vmatpush1.bf16.msra.mxu0 %v223
  %266 = vmatprep.subr.bf16.mxu0 0
  %267 = vmatpush1.bf16.msra.mxu0 %v224
  %268 = vmatprep.subr.bf16.mxu0 0
  %269 = vmatpush1.bf16.msra.mxu0 %v225
  %270 = vmatprep.subr.bf16.mxu0 0
  %271 = vmatpush1.bf16.msra.mxu0 %v226
  %272 = vmatprep.subr.bf16.mxu0 0
  %273 = vmatpush1.bf16.msra.mxu0 %v227
  %274 = vmatprep.subr.bf16.mxu0 0
  %275 = vmatpush1.bf16.msra.mxu0 %v228
  %276 = vmatprep.subr.bf16.mxu0 0
  %277 = vmatpush1.bf16.msra.mxu0 %v229
  %278 = vmatprep.mubr.bf16.mxu0 %v119
  %279 = vmatmul.mubr.bf16.gmra.mrb[0].mxu0 %v118
  %v280 = vpop.f32.mrb[0].mxu0
  %v281 = vadd.f32 %v68, %v280
  %v282 = vpop.f32.mrb[0].mxu0
  %v283 = vpop.f32.mrb[0].mxu0
  %v284 = vadd.f32 %v68, %v283
  %v285 = vpop.f32.mrb[0].mxu0
  %286 = vmatprep.mubr.bf16.mxu0 %v121
  %287 = vmatmul.mubr.bf16.gmra.mrb[0].mxu0 %v120
  %v288 = vpop.f32.mrb[0].mxu0
  %v289 = vadd.f32 %v68, %v288
  %v290 = vpop.f32.mrb[0].mxu0
  %v291 = vpop.f32.mrb[0].mxu0
  %v292 = vadd.f32 %v68, %v291
  %v293 = vpop.f32.mrb[0].mxu0
  %294 = vmatprep.mubr.bf16.mxu0 %v123
  %295 = vmatmul.mubr.bf16.gmra.mrb[0].mxu0 %v122
  %v296 = vpop.f32.mrb[0].mxu0
  %v297 = vadd.f32 %v68, %v296
  %v298 = vpop.f32.mrb[0].mxu0
  %v299 = vpop.f32.mrb[0].mxu0
  %v300 = vadd.f32 %v68, %v299
  %v301 = vpop.f32.mrb[0].mxu0
  %302 = vmatprep.mubr.bf16.mxu0 %v125
  %303 = vmatmul.mubr.bf16.gmra.mrb[0].mxu0 %v124
  %v304 = vpop.f32.mrb[0].mxu0
  %v305 = vadd.f32 %v68, %v304
  %v306 = vpop.f32.mrb[0].mxu0
  %v307 = vpop.f32.mrb[0].mxu0
  %v308 = vadd.f32 %v68, %v307
  %v309 = vpop.f32.mrb[0].mxu0
  %310 = vmatprep.mubr.bf16.mxu0 %v127
  %311 = vmatmul.mubr.bf16.gmra.mrb[0].mxu0 %v126
  %v312 = vpop.f32.mrb[0].mxu0
  %v313 = vadd.f32 %v68, %v312
  %v314 = vpop.f32.mrb[0].mxu0
  %v315 = vpop.f32.mrb[0].mxu0
  %v316 = vadd.f32 %v68, %v315
  %v317 = vpop.f32.mrb[0].mxu0
  %318 = vmatprep.mubr.bf16.mxu0 %v129
  %319 = vmatmul.mubr.bf16.gmra.mrb[0].mxu0 %v128
  %v320 = vpop.f32.mrb[0].mxu0
  %v321 = vadd.f32 %v68, %v320
  %v322 = vpop.f32.mrb[0].mxu0
  %v323 = vpop.f32.mrb[0].mxu0
  %v324 = vadd.f32 %v68, %v323
  %v325 = vpop.f32.mrb[0].mxu0
  %326 = vmatprep.mubr.bf16.mxu0 %v131
  %327 = vmatmul.mubr.bf16.gmra.mrb[0].mxu0 %v130
  %v328 = vpop.f32.mrb[0].mxu0
  %v329 = vadd.f32 %v68, %v328
  %v330 = vpop.f32.mrb[0].mxu0
  %v331 = vpop.f32.mrb[0].mxu0
  %v332 = vadd.f32 %v68, %v331
  %v333 = vpop.f32.mrb[0].mxu0
  %334 = vmatprep.mubr.bf16.mxu0 %v133
  %335 = vmatmul.mubr.bf16.gmra.mrb[0].mxu0 %v132
  %v336 = vpop.f32.mrb[0].mxu0
  %v337 = vadd.f32 %v68, %v336
  %v338 = vpop.f32.mrb[0].mxu0
  %v339 = vpop.f32.mrb[0].mxu0
  %v340 = vadd.f32 %v68, %v339
  %v341 = vpop.f32.mrb[0].mxu0
  %342 = vdwg.mxu0
  %vm343 = vcmask 261120
  %344 = vst.msk [vmem:[%s3] sm:$0xff] %vm343, %v281
  %345 = vst.msk [vmem:[%s3 + $0x8] sm:$0xff] %vm343, %v284
  %346 = vst.msk [vmem:[%s3 + $0x10] sm:$0xff] %vm343, %v289
  %347 = vst.msk [vmem:[%s3 + $0x18] sm:$0xff] %vm343, %v292
  %348 = vst.msk [vmem:[%s3 + $0x20] sm:$0xff] %vm343, %v297
  %349 = vst.msk [vmem:[%s3 + $0x28] sm:$0xff] %vm343, %v300
  %350 = vst.msk [vmem:[%s3 + $0x30] sm:$0xff] %vm343, %v305
  %351 = vst.msk [vmem:[%s3 + $0x38] sm:$0xff] %vm343, %v308
  %352 = vst.msk [vmem:[%s3 + $0x40] sm:$0xff] %vm343, %v313
  %353 = vst.msk [vmem:[%s3 + $0x48] sm:$0xff] %vm343, %v316
  %354 = vst.msk [vmem:[%s3 + $0x50] sm:$0xff] %vm343, %v321
  %355 = vst.msk [vmem:[%s3 + $0x58] sm:$0xff] %vm343, %v324
  %356 = vst.msk [vmem:[%s3 + $0x60] sm:$0xff] %vm343, %v329
  %357 = vst.msk [vmem:[%s3 + $0x68] sm:$0xff] %vm343, %v332
  %358 = vst.msk [vmem:[%s3 + $0x70] sm:$0xff] %vm343, %v337
  %359 = vst.msk [vmem:[%s3 + $0x78] sm:$0xff] %vm343, %v340
  // Predicated region
  $region14: #{nlayer_discriminator_forward.7} parent=0 // pred_check
    _
  $region15: #{nlayer_discriminator_forward.7} parent=0 // pred_check_branch
    %361 = sbr.rel (0) target = $region17
  $region16: #{nlayer_discriminator_forward.7} parent=0 // pred_region
    _
  $region17: #{nlayer_discriminator_forward.7} parent=0 // pred_fallthru
    _
  // Predicated region
  $region18: #{nlayer_discriminator_forward.7} parent=0 // pred_check
    _
  $region19: #{nlayer_discriminator_forward.7} parent=0 // pred_check_branch
    %363 = sbr.rel (0) target = $region21
  $region20: #{nlayer_discriminator_forward.7} parent=0 // pred_region
    _
  $region21: #{nlayer_discriminator_forward.7} parent=0 // pred_fallthru
    _

// kernel: nlayer_discriminator_forward.8
$region0: #{nlayer_discriminator_forward.8}
  #allocation0 [shape = 'u32[]', space=smem, size = 0x4, offset = 0x4, fixed_abs, tag = 'smem constant byte address 0x4 - core index']
  #allocation1 [shape = 'u32[144,128]{1,0:T(1,128)}', space=vmem, size = 0x12000, scoped, tag = 'internal scratch']
  %s0 = inlined_call_operand.vmem [shape: bf16[112,512], index: 0, kind: input, shape index: {}]
  %s1 = inlined_call_operand.vmem [shape: bf16[512,64], index: 1, kind: input, shape index: {}]
  %s2 = inlined_call_operand.vmem [shape: f32[1,64], index: 2, kind: input, shape index: {}]
  %s3 = inlined_call_operand.vmem [shape: f32[112,64], index: 3, kind: output, shape index: {}]
  %s4 = sld [smem:[#allocation0]]
  $region22: #{nlayer_discriminator_forward.8} parent=0
    _
  %s6 = ssub.s32 1, %s4
  %s7 = scalar_select 0, %s6, %s4
  // Predicated region
  $region2: #{nlayer_discriminator_forward.8} parent=0 // pred_check
    _
  $region3: #{nlayer_discriminator_forward.8} parent=0 // pred_check_branch
    %9 = sbr.rel (0) target = $region5
  $region4: #{nlayer_discriminator_forward.8} parent=0 // pred_region
    _
  $region5: #{nlayer_discriminator_forward.8} parent=0 // pred_fallthru
    _
  // Predicated region
  $region6: #{nlayer_discriminator_forward.8} parent=0 // pred_check
    _
  $region7: #{nlayer_discriminator_forward.8} parent=0 // pred_check_branch
    %11 = sbr.rel (0) target = $region9
  $region8: #{nlayer_discriminator_forward.8} parent=0 // pred_region
    _
  $region9: #{nlayer_discriminator_forward.8} parent=0 // pred_fallthru
    _
  // Predicated region
  $region10: #{nlayer_discriminator_forward.8} parent=0 // pred_check
    _
  $region11: #{nlayer_discriminator_forward.8} parent=0 // pred_check_branch
    %13 = sbr.rel (0) target = $region13
  $region12: #{nlayer_discriminator_forward.8} parent=0 // pred_region
    _
  $region13: #{nlayer_discriminator_forward.8} parent=0 // pred_fallthru
    _
  %v15 = vld [vmem:[%s0] sm:$0xff]
  %v16 = vld [vmem:[%s0 + $0x8] sm:$0xff]
  %v17 = vld [vmem:[%s0 + $0x10] sm:$0xff]
  %v18 = vld [vmem:[%s0 + $0x18] sm:$0xff]
  %v19 = vld [vmem:[%s0 + $0x20] sm:$0xff]
  %v20 = vld [vmem:[%s0 + $0x28] sm:$0xff]
  %v21 = vld [vmem:[%s0 + $0x30] sm:$0xff]
  %v22 = vld [vmem:[%s0 + $0x38] sm:$0xff]
  %v23 = vld [vmem:[%s0 + $0x40] sm:$0xff]
  %v24 = vld [vmem:[%s0 + $0x48] sm:$0xff]
  %v25 = vld [vmem:[%s0 + $0x50] sm:$0xff]
  %v26 = vld [vmem:[%s0 + $0x58] sm:$0xff]
  %v27 = vld [vmem:[%s0 + $0x60] sm:$0xff]
  %v28 = vld [vmem:[%s0 + $0x68] sm:$0xff]
  %v29 = vld [vmem:[%s0 + $0x70] sm:$0xff]
  %v30 = vld [vmem:[%s0 + $0x78] sm:$0xff]
  %v31 = vld [vmem:[%s0 + $0x80] sm:$0xff]
  %v32 = vld [vmem:[%s0 + $0x88] sm:$0xff]
  %v33 = vld [vmem:[%s0 + $0x90] sm:$0xff]
  %v34 = vld [vmem:[%s0 + $0x98] sm:$0xff]
  %v35 = vld [vmem:[%s0 + $0xa0] sm:$0xff]
  %v36 = vld [vmem:[%s0 + $0xa8] sm:$0xff]
  %v37 = vld [vmem:[%s0 + $0xb0] sm:$0xff]
  %v38 = vld [vmem:[%s0 + $0xb8] sm:$0xff]
  %v39 = vld [vmem:[%s0 + $0xc0] sm:$0xff]
  %v40 = vld [vmem:[%s0 + $0xc8] sm:$0xff]
  %v41 = vld [vmem:[%s0 + $0xd0] sm:$0xff]
  %v42 = vld [vmem:[%s0 + $0xd8] sm:$0xff]
  %v43 = vld [vmem:[%s1] sm:$0xf]
  %v44 = vld [vmem:[%s1 + $0x4] sm:$0xf]
  %v45 = vld [vmem:[%s1 + $0x8] sm:$0xf]
  %v46 = vld [vmem:[%s1 + $0xc] sm:$0xf]
  %v47 = vld [vmem:[%s1 + $0x10] sm:$0xf]
  %v48 = vld [vmem:[%s1 + $0x14] sm:$0xf]
  %v49 = vld [vmem:[%s1 + $0x18] sm:$0xf]
  %v50 = vld [vmem:[%s1 + $0x1c] sm:$0xf]
  %v51 = vld [vmem:[%s1 + $0x20] sm:$0xf]
  %v52 = vld [vmem:[%s1 + $0x24] sm:$0xf]
  %v53 = vld [vmem:[%s1 + $0x28] sm:$0xf]
  %v54 = vld [vmem:[%s1 + $0x2c] sm:$0xf]
  %v55 = vld [vmem:[%s1 + $0x30] sm:$0xf]
  %v56 = vld [vmem:[%s1 + $0x34] sm:$0xf]
  %v57 = vld [vmem:[%s1 + $0x38] sm:$0xf]
  %v58 = vld [vmem:[%s1 + $0x3c] sm:$0xf]
  %v59 = vld [vmem:[%s1 + $0x40] sm:$0xf]
  %v60 = vld [vmem:[%s1 + $0x44] sm:$0xf]
  %v61 = vld [vmem:[%s1 + $0x48] sm:$0xf]
  %v62 = vld [vmem:[%s1 + $0x4c] sm:$0xf]
  %v63 = vld [vmem:[%s1 + $0x50] sm:$0xf]
  %v64 = vld [vmem:[%s1 + $0x54] sm:$0xf]
  %v65 = vld [vmem:[%s1 + $0x58] sm:$0xf]
  %v66 = vld [vmem:[%s1 + $0x5c] sm:$0xf]
  %v67 = vld [vmem:[%s1 + $0x60] sm:$0xf]
  %v68 = vld [vmem:[%s1 + $0x64] sm:$0xf]
  %v69 = vld [vmem:[%s1 + $0x68] sm:$0xf]
  %v70 = vld [vmem:[%s1 + $0x6c] sm:$0xf]
  %v71 = vld [vmem:[%s1 + $0x70] sm:$0xf]
  %v72 = vld [vmem:[%s1 + $0x74] sm:$0xf]
  %v73 = vld [vmem:[%s1 + $0x78] sm:$0xf]
  %v74 = vld [vmem:[%s1 + $0x7c] sm:$0xf]
  %v75 = vld [vmem:[%s1 + $0x80] sm:$0xf]
  %v76 = vld [vmem:[%s1 + $0x84] sm:$0xf]
  %v77 = vld [vmem:[%s1 + $0x88] sm:$0xf]
  %v78 = vld [vmem:[%s1 + $0x8c] sm:$0xf]
  %v79 = vld [vmem:[%s1 + $0x90] sm:$0xf]
  %v80 = vld [vmem:[%s1 + $0x94] sm:$0xf]
  %v81 = vld [vmem:[%s1 + $0x98] sm:$0xf]
  %v82 = vld [vmem:[%s1 + $0x9c] sm:$0xf]
  %v83 = vld [vmem:[%s1 + $0xa0] sm:$0xf]
  %v84 = vld [vmem:[%s1 + $0xa4] sm:$0xf]
  %v85 = vld [vmem:[%s1 + $0xa8] sm:$0xf]
  %v86 = vld [vmem:[%s1 + $0xac] sm:$0xf]
  %v87 = vld [vmem:[%s1 + $0xb0] sm:$0xf]
  %v88 = vld [vmem:[%s1 + $0xb4] sm:$0xf]
  %v89 = vld [vmem:[%s1 + $0xb8] sm:$0xf]
  %v90 = vld [vmem:[%s1 + $0xbc] sm:$0xf]
  %v91 = vld [vmem:[%s1 + $0xc0] sm:$0xf]
  %v92 = vld [vmem:[%s1 + $0xc4] sm:$0xf]
  %v93 = vld [vmem:[%s1 + $0xc8] sm:$0xf]
  %v94 = vld [vmem:[%s1 + $0xcc] sm:$0xf]
  %v95 = vld [vmem:[%s1 + $0xd0] sm:$0xf]
  %v96 = vld [vmem:[%s1 + $0xd4] sm:$0xf]
  %v97 = vld [vmem:[%s1 + $0xd8] sm:$0xf]
  %v98 = vld [vmem:[%s1 + $0xdc] sm:$0xf]
  %v99 = vld [vmem:[%s1 + $0xe0] sm:$0xf]
  %v100 = vld [vmem:[%s1 + $0xe4] sm:$0xf]
  %v101 = vld [vmem:[%s1 + $0xe8] sm:$0xf]
  %v102 = vld [vmem:[%s1 + $0xec] sm:$0xf]
  %v103 = vld [vmem:[%s1 + $0xf0] sm:$0xf]
  %v104 = vld [vmem:[%s1 + $0xf4] sm:$0xf]
  %v105 = vld [vmem:[%s1 + $0xf8] sm:$0xf]
  %v106 = vld [vmem:[%s1 + $0xfc] sm:$0xf]
  %v107 = vld [vmem:[%s2] sm:$0x1]
  %v109 = vlaneseq
  %v110 = vshrl.u32 %v109, 7
  %v111 = vsub.s32 0, %v110
  %v112 = vrot.slane %v107, %v111
  %v142 = vunpack.c.l.b16 %v15
  %v143 = vunpack.c.h.b16 %v15
  %v144 = vunpack.c.l.b16 %v16
  %v145 = vunpack.c.h.b16 %v16
  %v146 = vunpack.c.l.b16 %v17
  %v147 = vunpack.c.h.b16 %v17
  %v148 = vunpack.c.l.b16 %v18
  %v149 = vunpack.c.h.b16 %v18
  %v150 = vunpack.c.l.b16 %v19
  %v151 = vunpack.c.h.b16 %v19
  %v152 = vunpack.c.l.b16 %v20
  %v153 = vunpack.c.h.b16 %v20
  %v154 = vunpack.c.l.b16 %v21
  %v155 = vunpack.c.h.b16 %v21
  %v156 = vunpack.c.l.b16 %v22
  %v157 = vunpack.c.h.b16 %v22
  %v158 = vunpack.c.l.b16 %v23
  %v159 = vunpack.c.h.b16 %v23
  %v160 = vunpack.c.l.b16 %v24
  %v161 = vunpack.c.h.b16 %v24
  %v162 = vunpack.c.l.b16 %v25
  %v163 = vunpack.c.h.b16 %v25
  %v164 = vunpack.c.l.b16 %v26
  %v165 = vunpack.c.h.b16 %v26
  %v166 = vunpack.c.l.b16 %v27
  %v167 = vunpack.c.h.b16 %v27
  %v168 = vunpack.c.l.b16 %v28
  %v169 = vunpack.c.h.b16 %v28
  %v170 = vunpack.c.l.b16 %v29
  %v171 = vunpack.c.h.b16 %v29
  %v172 = vunpack.c.l.b16 %v30
  %v173 = vunpack.c.h.b16 %v30
  %v174 = vunpack.c.l.b16 %v31
  %v175 = vunpack.c.h.b16 %v31
  %v176 = vunpack.c.l.b16 %v32
  %v177 = vunpack.c.h.b16 %v32
  %v178 = vunpack.c.l.b16 %v33
  %v179 = vunpack.c.h.b16 %v33
  %v180 = vunpack.c.l.b16 %v34
  %v181 = vunpack.c.h.b16 %v34
  %v182 = vunpack.c.l.b16 %v35
  %v183 = vunpack.c.h.b16 %v35
  %v184 = vunpack.c.l.b16 %v36
  %v185 = vunpack.c.h.b16 %v36
  %v186 = vunpack.c.l.b16 %v37
  %v187 = vunpack.c.h.b16 %v37
  %v188 = vunpack.c.l.b16 %v38
  %v189 = vunpack.c.h.b16 %v38
  %v190 = vunpack.c.l.b16 %v39
  %v191 = vunpack.c.h.b16 %v39
  %v192 = vunpack.c.l.b16 %v40
  %v193 = vunpack.c.h.b16 %v40
  %v194 = vunpack.c.l.b16 %v41
  %v195 = vunpack.c.h.b16 %v41
  %v196 = vunpack.c.l.b16 %v42
  %v197 = vunpack.c.h.b16 %v42
  %v198 = vpack.c.b16 %v146, %v142
  %v199 = vpack.c.b16 %v147, %v143
  %v200 = vpack.c.b16 %v148, %v144
  %v201 = vpack.c.b16 %v149, %v145
  %v202 = vpack.c.b16 %v154, %v150
  %v203 = vpack.c.b16 %v155, %v151
  %v204 = vpack.c.b16 %v156, %v152
  %v205 = vpack.c.b16 %v157, %v153
  %v206 = vpack.c.b16 %v162, %v158
  %v207 = vpack.c.b16 %v163, %v159
  %v208 = vpack.c.b16 %v164, %v160
  %v209 = vpack.c.b16 %v165, %v161
  %v210 = vpack.c.b16 %v170, %v166
  %v211 = vpack.c.b16 %v171, %v167
  %v212 = vpack.c.b16 %v172, %v168
  %v213 = vpack.c.b16 %v173, %v169
  %v214 = vpack.c.b16 %v178, %v174
  %v215 = vpack.c.b16 %v179, %v175
  %v216 = vpack.c.b16 %v180, %v176
  %v217 = vpack.c.b16 %v181, %v177
  %v218 = vpack.c.b16 %v186, %v182
  %v219 = vpack.c.b16 %v187, %v183
  %v220 = vpack.c.b16 %v188, %v184
  %v221 = vpack.c.b16 %v189, %v185
  %v222 = vpack.c.b16 %v194, %v190
  %v223 = vpack.c.b16 %v195, %v191
  %v224 = vpack.c.b16 %v196, %v192
  %v225 = vpack.c.b16 %v197, %v193
  %v318 = vunpack.c.l.b16 %v43
  %v319 = vunpack.c.l.b16 %v44
  %v320 = vunpack.c.l.b16 %v45
  %v321 = vunpack.c.l.b16 %v46
  %v322 = vunpack.c.l.b16 %v47
  %v323 = vunpack.c.l.b16 %v48
  %v324 = vunpack.c.l.b16 %v49
  %v325 = vunpack.c.l.b16 %v50
  %v326 = vunpack.c.l.b16 %v51
  %v327 = vunpack.c.l.b16 %v52
  %v328 = vunpack.c.l.b16 %v53
  %v329 = vunpack.c.l.b16 %v54
  %v330 = vunpack.c.l.b16 %v55
  %v331 = vunpack.c.l.b16 %v56
  %v332 = vunpack.c.l.b16 %v57
  %v333 = vunpack.c.l.b16 %v58
  %v334 = vunpack.c.l.b16 %v59
  %v335 = vunpack.c.l.b16 %v60
  %v336 = vunpack.c.l.b16 %v61
  %v337 = vunpack.c.l.b16 %v62
  %v338 = vunpack.c.l.b16 %v63
  %v339 = vunpack.c.l.b16 %v64
  %v340 = vunpack.c.l.b16 %v65
  %v341 = vunpack.c.l.b16 %v66
  %v342 = vunpack.c.l.b16 %v67
  %v343 = vunpack.c.l.b16 %v68
  %v344 = vunpack.c.l.b16 %v69
  %v345 = vunpack.c.l.b16 %v70
  %v346 = vunpack.c.l.b16 %v71
  %v347 = vunpack.c.l.b16 %v72
  %v348 = vunpack.c.l.b16 %v73
  %v349 = vunpack.c.l.b16 %v74
  %v350 = vunpack.c.l.b16 %v75
  %v351 = vunpack.c.l.b16 %v76
  %v352 = vunpack.c.l.b16 %v77
  %v353 = vunpack.c.l.b16 %v78
  %v354 = vunpack.c.l.b16 %v79
  %v355 = vunpack.c.l.b16 %v80
  %v356 = vunpack.c.l.b16 %v81
  %v357 = vunpack.c.l.b16 %v82
  %v358 = vunpack.c.l.b16 %v83
  %v359 = vunpack.c.l.b16 %v84
  %v360 = vunpack.c.l.b16 %v85
  %v361 = vunpack.c.l.b16 %v86
  %v362 = vunpack.c.l.b16 %v87
  %v363 = vunpack.c.l.b16 %v88
  %v364 = vunpack.c.l.b16 %v89
  %v365 = vunpack.c.l.b16 %v90
  %v366 = vunpack.c.l.b16 %v91
  %v367 = vunpack.c.l.b16 %v92
  %v368 = vunpack.c.l.b16 %v93
  %v369 = vunpack.c.l.b16 %v94
  %v370 = vunpack.c.l.b16 %v95
  %v371 = vunpack.c.l.b16 %v96
  %v372 = vunpack.c.l.b16 %v97
  %v373 = vunpack.c.l.b16 %v98
  %v374 = vunpack.c.l.b16 %v99
  %v375 = vunpack.c.l.b16 %v100
  %v376 = vunpack.c.l.b16 %v101
  %v377 = vunpack.c.l.b16 %v102
  %v378 = vunpack.c.l.b16 %v103
  %v379 = vunpack.c.l.b16 %v104
  %v380 = vunpack.c.l.b16 %v105
  %v381 = vunpack.c.l.b16 %v106
  %v382 = vpack.c.b16 %v319, %v318
  %v383 = vpack.c.b16 %v321, %v320
  %v384 = vpack.c.b16 %v323, %v322
  %v385 = vpack.c.b16 %v325, %v324
  %v386 = vpack.c.b16 %v327, %v326
  %v387 = vpack.c.b16 %v329, %v328
  %v388 = vpack.c.b16 %v331, %v330
  %v389 = vpack.c.b16 %v333, %v332
  %v390 = vpack.c.b16 %v335, %v334
  %v391 = vpack.c.b16 %v337, %v336
  %v392 = vpack.c.b16 %v339, %v338
  %v393 = vpack.c.b16 %v341, %v340
  %v394 = vpack.c.b16 %v343, %v342
  %v395 = vpack.c.b16 %v345, %v344
  %v396 = vpack.c.b16 %v347, %v346
  %v397 = vpack.c.b16 %v349, %v348
  %v398 = vpack.c.b16 %v351, %v350
  %v399 = vpack.c.b16 %v353, %v352
  %v400 = vpack.c.b16 %v355, %v354
  %v401 = vpack.c.b16 %v357, %v356
  %v402 = vpack.c.b16 %v359, %v358
  %v403 = vpack.c.b16 %v361, %v360
  %v404 = vpack.c.b16 %v363, %v362
  %v405 = vpack.c.b16 %v365, %v364
  %v406 = vpack.c.b16 %v367, %v366
  %v407 = vpack.c.b16 %v369, %v368
  %v408 = vpack.c.b16 %v371, %v370
  %v409 = vpack.c.b16 %v373, %v372
  %v410 = vpack.c.b16 %v375, %v374
  %v411 = vpack.c.b16 %v377, %v376
  %v412 = vpack.c.b16 %v379, %v378
  %v413 = vpack.c.b16 %v381, %v380
  %446 = vmatprep.subr.bf16.mxu0 0
  %447 = vmatpush1.bf16.msra.mxu0 %v382
  %448 = vmatprep.subr.bf16.mxu0 0
  %449 = vmatpush1.bf16.msra.mxu0 %v383
  %450 = vmatprep.subr.bf16.mxu0 0
  %451 = vmatpush1.bf16.msra.mxu0 %v384
  %452 = vmatprep.subr.bf16.mxu0 0
  %453 = vmatpush1.bf16.msra.mxu0 %v385
  %454 = vmatprep.subr.bf16.mxu0 0
  %455 = vmatpush1.bf16.msra.mxu0 %v386
  %456 = vmatprep.subr.bf16.mxu0 0
  %457 = vmatpush1.bf16.msra.mxu0 %v387
  %458 = vmatprep.subr.bf16.mxu0 0
  %459 = vmatpush1.bf16.msra.mxu0 %v388
  %460 = vmatprep.subr.bf16.mxu0 0
  %461 = vmatpush1.bf16.msra.mxu0 %v389
  %462 = vmatprep.subr.bf16.mxu0 0
  %463 = vmatpush1.bf16.msra.mxu0 %v390
  %464 = vmatprep.subr.bf16.mxu0 0
  %465 = vmatpush1.bf16.msra.mxu0 %v391
  %466 = vmatprep.subr.bf16.mxu0 0
  %467 = vmatpush1.bf16.msra.mxu0 %v392
  %468 = vmatprep.subr.bf16.mxu0 0
  %469 = vmatpush1.bf16.msra.mxu0 %v393
  %470 = vmatprep.subr.bf16.mxu0 0
  %471 = vmatpush1.bf16.msra.mxu0 %v394
  %472 = vmatprep.subr.bf16.mxu0 0
  %473 = vmatpush1.bf16.msra.mxu0 %v395
  %474 = vmatprep.subr.bf16.mxu0 0
  %475 = vmatpush1.bf16.msra.mxu0 %v396
  %476 = vmatprep.subr.bf16.mxu0 0
  %477 = vmatpush1.bf16.msra.mxu0 %v397
  %478 = vmatprep.mubr.bf16.mxu0 %v199
  %479 = vmatmul.mubr.bf16.gmra.mrb[0].mxu0 %v198
  %v480 = vpop.f32.mrb[0].mxu0
  %v481 = vadd.f32 %v112, %v480
  %v482 = vpop.f32.mrb[0].mxu0
  %v483 = vpop.f32.mrb[0].mxu0
  %v484 = vadd.f32 %v112, %v483
  %v485 = vpop.f32.mrb[0].mxu0
  %486 = vmatprep.mubr.bf16.mxu0 %v203
  %487 = vmatmul.mubr.bf16.gmra.mrb[0].mxu0 %v202
  %v488 = vpop.f32.mrb[0].mxu0
  %v489 = vadd.f32 %v112, %v488
  %v490 = vpop.f32.mrb[0].mxu0
  %v491 = vpop.f32.mrb[0].mxu0
  %v492 = vadd.f32 %v112, %v491
  %v493 = vpop.f32.mrb[0].mxu0
  %494 = vmatprep.mubr.bf16.mxu0 %v207
  %495 = vmatmul.mubr.bf16.gmra.mrb[0].mxu0 %v206
  %v496 = vpop.f32.mrb[0].mxu0
  %v497 = vadd.f32 %v112, %v496
  %v498 = vpop.f32.mrb[0].mxu0
  %v499 = vpop.f32.mrb[0].mxu0
  %v500 = vadd.f32 %v112, %v499
  %v501 = vpop.f32.mrb[0].mxu0
  %502 = vmatprep.mubr.bf16.mxu0 %v211
  %503 = vmatmul.mubr.bf16.gmra.mrb[0].mxu0 %v210
  %v504 = vpop.f32.mrb[0].mxu0
  %v505 = vadd.f32 %v112, %v504
  %v506 = vpop.f32.mrb[0].mxu0
  %v507 = vpop.f32.mrb[0].mxu0
  %v508 = vadd.f32 %v112, %v507
  %v509 = vpop.f32.mrb[0].mxu0
  %510 = vmatprep.mubr.bf16.mxu0 %v215
  %511 = vmatmul.mubr.bf16.gmra.mrb[0].mxu0 %v214
  %v512 = vpop.f32.mrb[0].mxu0
  %v513 = vadd.f32 %v112, %v512
  %v514 = vpop.f32.mrb[0].mxu0
  %v515 = vpop.f32.mrb[0].mxu0
  %v516 = vadd.f32 %v112, %v515
  %v517 = vpop.f32.mrb[0].mxu0
  %518 = vmatprep.mubr.bf16.mxu0 %v219
  %519 = vmatmul.mubr.bf16.gmra.mrb[0].mxu0 %v218
  %v520 = vpop.f32.mrb[0].mxu0
  %v521 = vadd.f32 %v112, %v520
  %v522 = vpop.f32.mrb[0].mxu0
  %v523 = vpop.f32.mrb[0].mxu0
  %v524 = vadd.f32 %v112, %v523
  %v525 = vpop.f32.mrb[0].mxu0
  %526 = vmatprep.mubr.bf16.mxu0 %v223
  %527 = vmatmul.mubr.bf16.gmra.mrb[0].mxu0 %v222
  %v528 = vpop.f32.mrb[0].mxu0
  %v529 = vadd.f32 %v112, %v528
  %v530 = vpop.f32.mrb[0].mxu0
  %v531 = vpop.f32.mrb[0].mxu0
  %v532 = vadd.f32 %v112, %v531
  %v533 = vpop.f32.mrb[0].mxu0
  %534 = vdwg.mxu0
  %535 = vmatprep.subr.bf16.mxu0 0
  %536 = vmatpush1.bf16.msra.mxu0 %v398
  %537 = vmatprep.subr.bf16.mxu0 0
  %538 = vmatpush1.bf16.msra.mxu0 %v399
  %539 = vmatprep.subr.bf16.mxu0 0
  %540 = vmatpush1.bf16.msra.mxu0 %v400
  %541 = vmatprep.subr.bf16.mxu0 0
  %542 = vmatpush1.bf16.msra.mxu0 %v401
  %543 = vmatprep.subr.bf16.mxu0 0
  %544 = vmatpush1.bf16.msra.mxu0 %v402
  %545 = vmatprep.subr.bf16.mxu0 0
  %546 = vmatpush1.bf16.msra.mxu0 %v403
  %547 = vmatprep.subr.bf16.mxu0 0
  %548 = vmatpush1.bf16.msra.mxu0 %v404
  %549 = vmatprep.subr.bf16.mxu0 0
  %550 = vmatpush1.bf16.msra.mxu0 %v405
  %551 = vmatprep.subr.bf16.mxu0 0
  %552 = vmatpush1.bf16.msra.mxu0 %v406
  %553 = vmatprep.subr.bf16.mxu0 0
  %554 = vmatpush1.bf16.msra.mxu0 %v407
  %555 = vmatprep.subr.bf16.mxu0 0
  %556 = vmatpush1.bf16.msra.mxu0 %v408
  %557 = vmatprep.subr.bf16.mxu0 0
  %558 = vmatpush1.bf16.msra.mxu0 %v409
  %559 = vmatprep.subr.bf16.mxu0 0
  %560 = vmatpush1.bf16.msra.mxu0 %v410
  %561 = vmatprep.subr.bf16.mxu0 0
  %562 = vmatpush1.bf16.msra.mxu0 %v411
  %563 = vmatprep.subr.bf16.mxu0 0
  %564 = vmatpush1.bf16.msra.mxu0 %v412
  %565 = vmatprep.subr.bf16.mxu0 0
  %566 = vmatpush1.bf16.msra.mxu0 %v413
  %567 = vmatprep.mubr.bf16.mxu0 %v201
  %568 = vmatmul.mubr.bf16.gmra.mrb[0].mxu0 %v200
  %v569 = vpop.f32.mrb[0].mxu0
  %v570 = vadd.f32 %v481, %v569
  %v571 = vpop.f32.mrb[0].mxu0
  %v572 = vpop.f32.mrb[0].mxu0
  %v573 = vadd.f32 %v484, %v572
  %v574 = vpop.f32.mrb[0].mxu0
  %575 = vmatprep.mubr.bf16.mxu0 %v205
  %576 = vmatmul.mubr.bf16.gmra.mrb[0].mxu0 %v204
  %v577 = vpop.f32.mrb[0].mxu0
  %v578 = vadd.f32 %v489, %v577
  %v579 = vpop.f32.mrb[0].mxu0
  %v580 = vpop.f32.mrb[0].mxu0
  %v581 = vadd.f32 %v492, %v580
  %v582 = vpop.f32.mrb[0].mxu0
  %583 = vmatprep.mubr.bf16.mxu0 %v209
  %584 = vmatmul.mubr.bf16.gmra.mrb[0].mxu0 %v208
  %v585 = vpop.f32.mrb[0].mxu0
  %v586 = vadd.f32 %v497, %v585
  %v587 = vpop.f32.mrb[0].mxu0
  %v588 = vpop.f32.mrb[0].mxu0
  %v589 = vadd.f32 %v500, %v588
  %v590 = vpop.f32.mrb[0].mxu0
  %591 = vmatprep.mubr.bf16.mxu0 %v213
  %592 = vmatmul.mubr.bf16.gmra.mrb[0].mxu0 %v212
  %v593 = vpop.f32.mrb[0].mxu0
  %v594 = vadd.f32 %v505, %v593
  %v595 = vpop.f32.mrb[0].mxu0
  %v596 = vpop.f32.mrb[0].mxu0
  %v597 = vadd.f32 %v508, %v596
  %v598 = vpop.f32.mrb[0].mxu0
  %599 = vmatprep.mubr.bf16.mxu0 %v217
  %600 = vmatmul.mubr.bf16.gmra.mrb[0].mxu0 %v216
  %v601 = vpop.f32.mrb[0].mxu0
  %v602 = vadd.f32 %v513, %v601
  %v603 = vpop.f32.mrb[0].mxu0
  %v604 = vpop.f32.mrb[0].mxu0
  %v605 = vadd.f32 %v516, %v604
  %v606 = vpop.f32.mrb[0].mxu0
  %607 = vmatprep.mubr.bf16.mxu0 %v221
  %608 = vmatmul.mubr.bf16.gmra.mrb[0].mxu0 %v220
  %v609 = vpop.f32.mrb[0].mxu0
  %v610 = vadd.f32 %v521, %v609
  %v611 = vpop.f32.mrb[0].mxu0
  %v612 = vpop.f32.mrb[0].mxu0
  %v613 = vadd.f32 %v524, %v612
  %v614 = vpop.f32.mrb[0].mxu0
  %615 = vmatprep.mubr.bf16.mxu0 %v225
  %616 = vmatmul.mubr.bf16.gmra.mrb[0].mxu0 %v224
  %v617 = vpop.f32.mrb[0].mxu0
  %v618 = vadd.f32 %v529, %v617
  %v619 = vpop.f32.mrb[0].mxu0
  %v620 = vpop.f32.mrb[0].mxu0
  %v621 = vadd.f32 %v532, %v620
  %v622 = vpop.f32.mrb[0].mxu0
  %623 = vdwg.mxu0
  %vm624 = vcmask 523264
  %625 = vst.msk [vmem:[%s3] sm:$0xff] %vm624, %v570
  %626 = vst.msk [vmem:[%s3 + $0x8] sm:$0xff] %vm624, %v573
  %627 = vst.msk [vmem:[%s3 + $0x10] sm:$0xff] %vm624, %v578
  %628 = vst.msk [vmem:[%s3 + $0x18] sm:$0xff] %vm624, %v581
  %629 = vst.msk [vmem:[%s3 + $0x20] sm:$0xff] %vm624, %v586
  %630 = vst.msk [vmem:[%s3 + $0x28] sm:$0xff] %vm624, %v589
  %631 = vst.msk [vmem:[%s3 + $0x30] sm:$0xff] %vm624, %v594
  %632 = vst.msk [vmem:[%s3 + $0x38] sm:$0xff] %vm624, %v597
  %633 = vst.msk [vmem:[%s3 + $0x40] sm:$0xff] %vm624, %v602
  %634 = vst.msk [vmem:[%s3 + $0x48] sm:$0xff] %vm624, %v605
  %635 = vst.msk [vmem:[%s3 + $0x50] sm:$0xff] %vm624, %v610
  %636 = vst.msk [vmem:[%s3 + $0x58] sm:$0xff] %vm624, %v613
  %637 = vst.msk [vmem:[%s3 + $0x60] sm:$0xff] %vm624, %v618
  %638 = vst.msk [vmem:[%s3 + $0x68] sm:$0xff] %vm624, %v621
  // Predicated region
  $region14: #{nlayer_discriminator_forward.8} parent=0 // pred_check
    _
  $region15: #{nlayer_discriminator_forward.8} parent=0 // pred_check_branch
    %640 = sbr.rel (0) target = $region17
  $region16: #{nlayer_discriminator_forward.8} parent=0 // pred_region
    _
  $region17: #{nlayer_discriminator_forward.8} parent=0 // pred_fallthru
    _
  // Predicated region
  $region18: #{nlayer_discriminator_forward.8} parent=0 // pred_check
    _
  $region19: #{nlayer_discriminator_forward.8} parent=0 // pred_check_branch
    %642 = sbr.rel (0) target = $region21
  $region20: #{nlayer_discriminator_forward.8} parent=0 // pred_region
    _
  $region21: #{nlayer_discriminator_forward.8} parent=0 // pred_fallthru
    _

// kernel: nlayer_discriminator_forward.9
$region0: #{nlayer_discriminator_forward.9}
  #allocation0 [shape = 'u32[]', space=smem, size = 0x4, offset = 0x4, fixed_abs, tag = 'smem constant byte address 0x4 - core index']
  #allocation1 [shape = 'u32[144,128]{1,0:T(1,128)}', space=vmem, size = 0x12000, scoped, tag = 'internal scratch']
  #allocation2 [shape = 'f32[1,1]{1,0:T(1,128)S(1)}', space=vmem, size = 0x200, scoped, tag = 'scoped memory for nlayer_discriminator_forward.9']
  %s0 = inlined_call_operand.vmem [shape: bf16[80,1024], index: 0, kind: input, shape index: {}]
  %s1 = inlined_call_operand.vmem [shape: bf16[1024,1], index: 1, kind: input, shape index: {}]
  %s2 = inlined_call_operand.<no memory space> [shape: f32[1,1], index: 2, kind: input, shape index: {}]
  %s3 = inlined_call_operand.vmem [shape: f32[80,1], index: 3, kind: output, shape index: {}]
  %s4 = sld [smem:[#allocation0]]
  $region22: #{nlayer_discriminator_forward.9} parent=0
    _
  %s6 = ssub.s32 1, %s4
  %s7 = scalar_select 0, %s6, %s4
  %v8 = vstv %s2
  %9 = vst [vmem:[#allocation2] sm:$0x1] %v8
  // Predicated region
  $region2: #{nlayer_discriminator_forward.9} parent=0 // pred_check
    _
  $region3: #{nlayer_discriminator_forward.9} parent=0 // pred_check_branch
    %11 = sbr.rel (0) target = $region5
  $region4: #{nlayer_discriminator_forward.9} parent=0 // pred_region
    _
  $region5: #{nlayer_discriminator_forward.9} parent=0 // pred_fallthru
    _
  // Predicated region
  $region6: #{nlayer_discriminator_forward.9} parent=0 // pred_check
    _
  $region7: #{nlayer_discriminator_forward.9} parent=0 // pred_check_branch
    %13 = sbr.rel (0) target = $region9
  $region8: #{nlayer_discriminator_forward.9} parent=0 // pred_region
    _
  $region9: #{nlayer_discriminator_forward.9} parent=0 // pred_fallthru
    _
  // Predicated region
  $region10: #{nlayer_discriminator_forward.9} parent=0 // pred_check
    _
  $region11: #{nlayer_discriminator_forward.9} parent=0 // pred_check_branch
    %15 = sbr.rel (0) target = $region13
  $region12: #{nlayer_discriminator_forward.9} parent=0 // pred_region
    _
  $region13: #{nlayer_discriminator_forward.9} parent=0 // pred_fallthru
    _
  %v17 = vld [vmem:[%s0] sm:$0xff]
  %v18 = vld [vmem:[%s0 + $0x8] sm:$0xff]
  %v19 = vld [vmem:[%s0 + $0x10] sm:$0xff]
  %v20 = vld [vmem:[%s0 + $0x18] sm:$0xff]
  %v21 = vld [vmem:[%s0 + $0x20] sm:$0xff]
  %v22 = vld [vmem:[%s0 + $0x28] sm:$0xff]
  %v23 = vld [vmem:[%s0 + $0x30] sm:$0xff]
  %v24 = vld [vmem:[%s0 + $0x38] sm:$0xff]
  %v25 = vld [vmem:[%s0 + $0x40] sm:$0xff]
  %v26 = vld [vmem:[%s0 + $0x48] sm:$0xff]
  %v27 = vld [vmem:[%s0 + $0x50] sm:$0xff]
  %v28 = vld [vmem:[%s0 + $0x58] sm:$0xff]
  %v29 = vld [vmem:[%s0 + $0x60] sm:$0xff]
  %v30 = vld [vmem:[%s0 + $0x68] sm:$0xff]
  %v31 = vld [vmem:[%s0 + $0x70] sm:$0xff]
  %v32 = vld [vmem:[%s0 + $0x78] sm:$0xff]
  %v33 = vld [vmem:[%s0 + $0x80] sm:$0xff]
  %v34 = vld [vmem:[%s0 + $0x88] sm:$0xff]
  %v35 = vld [vmem:[%s0 + $0x90] sm:$0xff]
  %v36 = vld [vmem:[%s0 + $0x98] sm:$0xff]
  %v37 = vld [vmem:[%s0 + $0xa0] sm:$0xff]
  %v38 = vld [vmem:[%s0 + $0xa8] sm:$0xff]
  %v39 = vld [vmem:[%s0 + $0xb0] sm:$0xff]
  %v40 = vld [vmem:[%s0 + $0xb8] sm:$0xff]
  %v41 = vld [vmem:[%s0 + $0xc0] sm:$0xff]
  %v42 = vld [vmem:[%s0 + $0xc8] sm:$0xff]
  %v43 = vld [vmem:[%s0 + $0xd0] sm:$0xff]
  %v44 = vld [vmem:[%s0 + $0xd8] sm:$0xff]
  %v45 = vld [vmem:[%s0 + $0xe0] sm:$0xff]
  %v46 = vld [vmem:[%s0 + $0xe8] sm:$0xff]
  %v47 = vld [vmem:[%s0 + $0xf0] sm:$0xff]
  %v48 = vld [vmem:[%s0 + $0xf8] sm:$0xff]
  %v49 = vld [vmem:[%s0 + $0x100] sm:$0xff]
  %v50 = vld [vmem:[%s0 + $0x108] sm:$0xff]
  %v51 = vld [vmem:[%s0 + $0x110] sm:$0xff]
  %v52 = vld [vmem:[%s0 + $0x118] sm:$0xff]
  %v53 = vld [vmem:[%s0 + $0x120] sm:$0xff]
  %v54 = vld [vmem:[%s0 + $0x128] sm:$0xff]
  %v55 = vld [vmem:[%s0 + $0x130] sm:$0xff]
  %v56 = vld [vmem:[%s0 + $0x138] sm:$0xff]
  %v57 = vld [vmem:[%s1] sm:$0xf]
  %v58 = vld [vmem:[%s1 + $0x4] sm:$0xf]
  %v59 = vld [vmem:[%s1 + $0x8] sm:$0xf]
  %v60 = vld [vmem:[%s1 + $0xc] sm:$0xf]
  %v61 = vld [vmem:[%s1 + $0x10] sm:$0xf]
  %v62 = vld [vmem:[%s1 + $0x14] sm:$0xf]
  %v63 = vld [vmem:[%s1 + $0x18] sm:$0xf]
  %v64 = vld [vmem:[%s1 + $0x1c] sm:$0xf]
  %v65 = vld [vmem:[%s1 + $0x20] sm:$0xf]
  %v66 = vld [vmem:[%s1 + $0x24] sm:$0xf]
  %v67 = vld [vmem:[%s1 + $0x28] sm:$0xf]
  %v68 = vld [vmem:[%s1 + $0x2c] sm:$0xf]
  %v69 = vld [vmem:[%s1 + $0x30] sm:$0xf]
  %v70 = vld [vmem:[%s1 + $0x34] sm:$0xf]
  %v71 = vld [vmem:[%s1 + $0x38] sm:$0xf]
  %v72 = vld [vmem:[%s1 + $0x3c] sm:$0xf]
  %v73 = vld [vmem:[%s1 + $0x40] sm:$0xf]
  %v74 = vld [vmem:[%s1 + $0x44] sm:$0xf]
  %v75 = vld [vmem:[%s1 + $0x48] sm:$0xf]
  %v76 = vld [vmem:[%s1 + $0x4c] sm:$0xf]
  %v77 = vld [vmem:[%s1 + $0x50] sm:$0xf]
  %v78 = vld [vmem:[%s1 + $0x54] sm:$0xf]
  %v79 = vld [vmem:[%s1 + $0x58] sm:$0xf]
  %v80 = vld [vmem:[%s1 + $0x5c] sm:$0xf]
  %v81 = vld [vmem:[%s1 + $0x60] sm:$0xf]
  %v82 = vld [vmem:[%s1 + $0x64] sm:$0xf]
  %v83 = vld [vmem:[%s1 + $0x68] sm:$0xf]
  %v84 = vld [vmem:[%s1 + $0x6c] sm:$0xf]
  %v85 = vld [vmem:[%s1 + $0x70] sm:$0xf]
  %v86 = vld [vmem:[%s1 + $0x74] sm:$0xf]
  %v87 = vld [vmem:[%s1 + $0x78] sm:$0xf]
  %v88 = vld [vmem:[%s1 + $0x7c] sm:$0xf]
  %v89 = vld [vmem:[%s1 + $0x80] sm:$0xf]
  %v90 = vld [vmem:[%s1 + $0x84] sm:$0xf]
  %v91 = vld [vmem:[%s1 + $0x88] sm:$0xf]
  %v92 = vld [vmem:[%s1 + $0x8c] sm:$0xf]
  %v93 = vld [vmem:[%s1 + $0x90] sm:$0xf]
  %v94 = vld [vmem:[%s1 + $0x94] sm:$0xf]
  %v95 = vld [vmem:[%s1 + $0x98] sm:$0xf]
  %v96 = vld [vmem:[%s1 + $0x9c] sm:$0xf]
  %v97 = vld [vmem:[%s1 + $0xa0] sm:$0xf]
  %v98 = vld [vmem:[%s1 + $0xa4] sm:$0xf]
  %v99 = vld [vmem:[%s1 + $0xa8] sm:$0xf]
  %v100 = vld [vmem:[%s1 + $0xac] sm:$0xf]
  %v101 = vld [vmem:[%s1 + $0xb0] sm:$0xf]
  %v102 = vld [vmem:[%s1 + $0xb4] sm:$0xf]
  %v103 = vld [vmem:[%s1 + $0xb8] sm:$0xf]
  %v104 = vld [vmem:[%s1 + $0xbc] sm:$0xf]
  %v105 = vld [vmem:[%s1 + $0xc0] sm:$0xf]
  %v106 = vld [vmem:[%s1 + $0xc4] sm:$0xf]
  %v107 = vld [vmem:[%s1 + $0xc8] sm:$0xf]
  %v108 = vld [vmem:[%s1 + $0xcc] sm:$0xf]
  %v109 = vld [vmem:[%s1 + $0xd0] sm:$0xf]
  %v110 = vld [vmem:[%s1 + $0xd4] sm:$0xf]
  %v111 = vld [vmem:[%s1 + $0xd8] sm:$0xf]
  %v112 = vld [vmem:[%s1 + $0xdc] sm:$0xf]
  %v113 = vld [vmem:[%s1 + $0xe0] sm:$0xf]
  %v114 = vld [vmem:[%s1 + $0xe4] sm:$0xf]
  %v115 = vld [vmem:[%s1 + $0xe8] sm:$0xf]
  %v116 = vld [vmem:[%s1 + $0xec] sm:$0xf]
  %v117 = vld [vmem:[%s1 + $0xf0] sm:$0xf]
  %v118 = vld [vmem:[%s1 + $0xf4] sm:$0xf]
  %v119 = vld [vmem:[%s1 + $0xf8] sm:$0xf]
  %v120 = vld [vmem:[%s1 + $0xfc] sm:$0xf]
  %v121 = vld [vmem:[%s1 + $0x100] sm:$0xf]
  %v122 = vld [vmem:[%s1 + $0x104] sm:$0xf]
  %v123 = vld [vmem:[%s1 + $0x108] sm:$0xf]
  %v124 = vld [vmem:[%s1 + $0x10c] sm:$0xf]
  %v125 = vld [vmem:[%s1 + $0x110] sm:$0xf]
  %v126 = vld [vmem:[%s1 + $0x114] sm:$0xf]
  %v127 = vld [vmem:[%s1 + $0x118] sm:$0xf]
  %v128 = vld [vmem:[%s1 + $0x11c] sm:$0xf]
  %v129 = vld [vmem:[%s1 + $0x120] sm:$0xf]
  %v130 = vld [vmem:[%s1 + $0x124] sm:$0xf]
  %v131 = vld [vmem:[%s1 + $0x128] sm:$0xf]
  %v132 = vld [vmem:[%s1 + $0x12c] sm:$0xf]
  %v133 = vld [vmem:[%s1 + $0x130] sm:$0xf]
  %v134 = vld [vmem:[%s1 + $0x134] sm:$0xf]
  %v135 = vld [vmem:[%s1 + $0x138] sm:$0xf]
  %v136 = vld [vmem:[%s1 + $0x13c] sm:$0xf]
  %v137 = vld [vmem:[%s1 + $0x140] sm:$0xf]
  %v138 = vld [vmem:[%s1 + $0x144] sm:$0xf]
  %v139 = vld [vmem:[%s1 + $0x148] sm:$0xf]
  %v140 = vld [vmem:[%s1 + $0x14c] sm:$0xf]
  %v141 = vld [vmem:[%s1 + $0x150] sm:$0xf]
  %v142 = vld [vmem:[%s1 + $0x154] sm:$0xf]
  %v143 = vld [vmem:[%s1 + $0x158] sm:$0xf]
  %v144 = vld [vmem:[%s1 + $0x15c] sm:$0xf]
  %v145 = vld [vmem:[%s1 + $0x160] sm:$0xf]
  %v146 = vld [vmem:[%s1 + $0x164] sm:$0xf]
  %v147 = vld [vmem:[%s1 + $0x168] sm:$0xf]
  %v148 = vld [vmem:[%s1 + $0x16c] sm:$0xf]
  %v149 = vld [vmem:[%s1 + $0x170] sm:$0xf]
  %v150 = vld [vmem:[%s1 + $0x174] sm:$0xf]
  %v151 = vld [vmem:[%s1 + $0x178] sm:$0xf]
  %v152 = vld [vmem:[%s1 + $0x17c] sm:$0xf]
  %v153 = vld [vmem:[%s1 + $0x180] sm:$0xf]
  %v154 = vld [vmem:[%s1 + $0x184] sm:$0xf]
  %v155 = vld [vmem:[%s1 + $0x188] sm:$0xf]
  %v156 = vld [vmem:[%s1 + $0x18c] sm:$0xf]
  %v157 = vld [vmem:[%s1 + $0x190] sm:$0xf]
  %v158 = vld [vmem:[%s1 + $0x194] sm:$0xf]
  %v159 = vld [vmem:[%s1 + $0x198] sm:$0xf]
  %v160 = vld [vmem:[%s1 + $0x19c] sm:$0xf]
  %v161 = vld [vmem:[%s1 + $0x1a0] sm:$0xf]
  %v162 = vld [vmem:[%s1 + $0x1a4] sm:$0xf]
  %v163 = vld [vmem:[%s1 + $0x1a8] sm:$0xf]
  %v164 = vld [vmem:[%s1 + $0x1ac] sm:$0xf]
  %v165 = vld [vmem:[%s1 + $0x1b0] sm:$0xf]
  %v166 = vld [vmem:[%s1 + $0x1b4] sm:$0xf]
  %v167 = vld [vmem:[%s1 + $0x1b8] sm:$0xf]
  %v168 = vld [vmem:[%s1 + $0x1bc] sm:$0xf]
  %v169 = vld [vmem:[%s1 + $0x1c0] sm:$0xf]
  %v170 = vld [vmem:[%s1 + $0x1c4] sm:$0xf]
  %v171 = vld [vmem:[%s1 + $0x1c8] sm:$0xf]
  %v172 = vld [vmem:[%s1 + $0x1cc] sm:$0xf]
  %v173 = vld [vmem:[%s1 + $0x1d0] sm:$0xf]
  %v174 = vld [vmem:[%s1 + $0x1d4] sm:$0xf]
  %v175 = vld [vmem:[%s1 + $0x1d8] sm:$0xf]
  %v176 = vld [vmem:[%s1 + $0x1dc] sm:$0xf]
  %v177 = vld [vmem:[%s1 + $0x1e0] sm:$0xf]
  %v178 = vld [vmem:[%s1 + $0x1e4] sm:$0xf]
  %v179 = vld [vmem:[%s1 + $0x1e8] sm:$0xf]
  %v180 = vld [vmem:[%s1 + $0x1ec] sm:$0xf]
  %v181 = vld [vmem:[%s1 + $0x1f0] sm:$0xf]
  %v182 = vld [vmem:[%s1 + $0x1f4] sm:$0xf]
  %v183 = vld [vmem:[%s1 + $0x1f8] sm:$0xf]
  %v184 = vld [vmem:[%s1 + $0x1fc] sm:$0xf]
  %v185 = vld [vmem:[#allocation2] sm:$0x1]
  %v187 = vlaneseq
  %v188 = vshrl.u32 %v187, 7
  %v189 = vsub.s32 0, %v188
  %v190 = vrot.slane %v185, %v189
  %v232 = vunpack.c.l.b16 %v17
  %v233 = vunpack.c.h.b16 %v17
  %v234 = vunpack.c.l.b16 %v18
  %v235 = vunpack.c.h.b16 %v18
  %v236 = vunpack.c.l.b16 %v19
  %v237 = vunpack.c.h.b16 %v19
  %v238 = vunpack.c.l.b16 %v20
  %v239 = vunpack.c.h.b16 %v20
  %v240 = vunpack.c.l.b16 %v21
  %v241 = vunpack.c.h.b16 %v21
  %v242 = vunpack.c.l.b16 %v22
  %v243 = vunpack.c.h.b16 %v22
  %v244 = vunpack.c.l.b16 %v23
  %v245 = vunpack.c.h.b16 %v23
  %v246 = vunpack.c.l.b16 %v24
  %v247 = vunpack.c.h.b16 %v24
  %v248 = vunpack.c.l.b16 %v25
  %v249 = vunpack.c.h.b16 %v25
  %v250 = vunpack.c.l.b16 %v26
  %v251 = vunpack.c.h.b16 %v26
  %v252 = vunpack.c.l.b16 %v27
  %v253 = vunpack.c.h.b16 %v27
  %v254 = vunpack.c.l.b16 %v28
  %v255 = vunpack.c.h.b16 %v28
  %v256 = vunpack.c.l.b16 %v29
  %v257 = vunpack.c.h.b16 %v29
  %v258 = vunpack.c.l.b16 %v30
  %v259 = vunpack.c.h.b16 %v30
  %v260 = vunpack.c.l.b16 %v31
  %v261 = vunpack.c.h.b16 %v31
  %v262 = vunpack.c.l.b16 %v32
  %v263 = vunpack.c.h.b16 %v32
  %v264 = vunpack.c.l.b16 %v33
  %v265 = vunpack.c.h.b16 %v33
  %v266 = vunpack.c.l.b16 %v34
  %v267 = vunpack.c.h.b16 %v34
  %v268 = vunpack.c.l.b16 %v35
  %v269 = vunpack.c.h.b16 %v35
  %v270 = vunpack.c.l.b16 %v36
  %v271 = vunpack.c.h.b16 %v36
  %v272 = vunpack.c.l.b16 %v37
  %v273 = vunpack.c.h.b16 %v37
  %v274 = vunpack.c.l.b16 %v38
  %v275 = vunpack.c.h.b16 %v38
  %v276 = vunpack.c.l.b16 %v39
  %v277 = vunpack.c.h.b16 %v39
  %v278 = vunpack.c.l.b16 %v40
  %v279 = vunpack.c.h.b16 %v40
  %v280 = vunpack.c.l.b16 %v41
  %v281 = vunpack.c.h.b16 %v41
  %v282 = vunpack.c.l.b16 %v42
  %v283 = vunpack.c.h.b16 %v42
  %v284 = vunpack.c.l.b16 %v43
  %v285 = vunpack.c.h.b16 %v43
  %v286 = vunpack.c.l.b16 %v44
  %v287 = vunpack.c.h.b16 %v44
  %v288 = vunpack.c.l.b16 %v45
  %v289 = vunpack.c.h.b16 %v45
  %v290 = vunpack.c.l.b16 %v46
  %v291 = vunpack.c.h.b16 %v46
  %v292 = vunpack.c.l.b16 %v47
  %v293 = vunpack.c.h.b16 %v47
  %v294 = vunpack.c.l.b16 %v48
  %v295 = vunpack.c.h.b16 %v48
  %v296 = vunpack.c.l.b16 %v49
  %v297 = vunpack.c.h.b16 %v49
  %v298 = vunpack.c.l.b16 %v50
  %v299 = vunpack.c.h.b16 %v50
  %v300 = vunpack.c.l.b16 %v51
  %v301 = vunpack.c.h.b16 %v51
  %v302 = vunpack.c.l.b16 %v52
  %v303 = vunpack.c.h.b16 %v52
  %v304 = vunpack.c.l.b16 %v53
  %v305 = vunpack.c.h.b16 %v53
  %v306 = vunpack.c.l.b16 %v54
  %v307 = vunpack.c.h.b16 %v54
  %v308 = vunpack.c.l.b16 %v55
  %v309 = vunpack.c.h.b16 %v55
  %v310 = vunpack.c.l.b16 %v56
  %v311 = vunpack.c.h.b16 %v56
  %v312 = vpack.c.b16 %v240, %v232
  %v313 = vpack.c.b16 %v241, %v233
  %v314 = vpack.c.b16 %v242, %v234
  %v315 = vpack.c.b16 %v243, %v235
  %v316 = vpack.c.b16 %v244, %v236
  %v317 = vpack.c.b16 %v245, %v237
  %v318 = vpack.c.b16 %v246, %v238
  %v319 = vpack.c.b16 %v247, %v239
  %v320 = vpack.c.b16 %v256, %v248
  %v321 = vpack.c.b16 %v257, %v249
  %v322 = vpack.c.b16 %v258, %v250
  %v323 = vpack.c.b16 %v259, %v251
  %v324 = vpack.c.b16 %v260, %v252
  %v325 = vpack.c.b16 %v261, %v253
  %v326 = vpack.c.b16 %v262, %v254
  %v327 = vpack.c.b16 %v263, %v255
  %v328 = vpack.c.b16 %v272, %v264
  %v329 = vpack.c.b16 %v273, %v265
  %v330 = vpack.c.b16 %v274, %v266
  %v331 = vpack.c.b16 %v275, %v267
  %v332 = vpack.c.b16 %v276, %v268
  %v333 = vpack.c.b16 %v277, %v269
  %v334 = vpack.c.b16 %v278, %v270
  %v335 = vpack.c.b16 %v279, %v271
  %v336 = vpack.c.b16 %v288, %v280
  %v337 = vpack.c.b16 %v289, %v281
  %v338 = vpack.c.b16 %v290, %v282
  %v339 = vpack.c.b16 %v291, %v283
  %v340 = vpack.c.b16 %v292, %v284
  %v341 = vpack.c.b16 %v293, %v285
  %v342 = vpack.c.b16 %v294, %v286
  %v343 = vpack.c.b16 %v295, %v287
  %v344 = vpack.c.b16 %v304, %v296
  %v345 = vpack.c.b16 %v305, %v297
  %v346 = vpack.c.b16 %v306, %v298
  %v347 = vpack.c.b16 %v307, %v299
  %v348 = vpack.c.b16 %v308, %v300
  %v349 = vpack.c.b16 %v309, %v301
  %v350 = vpack.c.b16 %v310, %v302
  %v351 = vpack.c.b16 %v311, %v303
  %v520 = vunpack.c.l.b16 %v57
  %v521 = vunpack.c.l.b16 %v58
  %v522 = vunpack.c.l.b16 %v59
  %v523 = vunpack.c.l.b16 %v60
  %v524 = vunpack.c.l.b16 %v61
  %v525 = vunpack.c.l.b16 %v62
  %v526 = vunpack.c.l.b16 %v63
  %v527 = vunpack.c.l.b16 %v64
  %v528 = vunpack.c.l.b16 %v65
  %v529 = vunpack.c.l.b16 %v66
  %v530 = vunpack.c.l.b16 %v67
  %v531 = vunpack.c.l.b16 %v68
  %v532 = vunpack.c.l.b16 %v69
  %v533 = vunpack.c.l.b16 %v70
  %v534 = vunpack.c.l.b16 %v71
  %v535 = vunpack.c.l.b16 %v72
  %v536 = vunpack.c.l.b16 %v73
  %v537 = vunpack.c.l.b16 %v74
  %v538 = vunpack.c.l.b16 %v75
  %v539 = vunpack.c.l.b16 %v76
  %v540 = vunpack.c.l.b16 %v77
  %v541 = vunpack.c.l.b16 %v78
  %v542 = vunpack.c.l.b16 %v79
  %v543 = vunpack.c.l.b16 %v80
  %v544 = vunpack.c.l.b16 %v81
  %v545 = vunpack.c.l.b16 %v82
  %v546 = vunpack.c.l.b16 %v83
  %v547 = vunpack.c.l.b16 %v84
  %v548 = vunpack.c.l.b16 %v85
  %v549 = vunpack.c.l.b16 %v86
  %v550 = vunpack.c.l.b16 %v87
  %v551 = vunpack.c.l.b16 %v88
  %v552 = vunpack.c.l.b16 %v89
  %v553 = vunpack.c.l.b16 %v90
  %v554 = vunpack.c.l.b16 %v91
  %v555 = vunpack.c.l.b16 %v92
  %v556 = vunpack.c.l.b16 %v93
  %v557 = vunpack.c.l.b16 %v94
  %v558 = vunpack.c.l.b16 %v95
  %v559 = vunpack.c.l.b16 %v96
  %v560 = vunpack.c.l.b16 %v97
  %v561 = vunpack.c.l.b16 %v98
  %v562 = vunpack.c.l.b16 %v99
  %v563 = vunpack.c.l.b16 %v100
  %v564 = vunpack.c.l.b16 %v101
  %v565 = vunpack.c.l.b16 %v102
  %v566 = vunpack.c.l.b16 %v103
  %v567 = vunpack.c.l.b16 %v104
  %v568 = vunpack.c.l.b16 %v105
  %v569 = vunpack.c.l.b16 %v106
  %v570 = vunpack.c.l.b16 %v107
  %v571 = vunpack.c.l.b16 %v108
  %v572 = vunpack.c.l.b16 %v109
  %v573 = vunpack.c.l.b16 %v110
  %v574 = vunpack.c.l.b16 %v111
  %v575 = vunpack.c.l.b16 %v112
  %v576 = vunpack.c.l.b16 %v113
  %v577 = vunpack.c.l.b16 %v114
  %v578 = vunpack.c.l.b16 %v115
  %v579 = vunpack.c.l.b16 %v116
  %v580 = vunpack.c.l.b16 %v117
  %v581 = vunpack.c.l.b16 %v118
  %v582 = vunpack.c.l.b16 %v119
  %v583 = vunpack.c.l.b16 %v120
  %v584 = vunpack.c.l.b16 %v121
  %v585 = vunpack.c.l.b16 %v122
  %v586 = vunpack.c.l.b16 %v123
  %v587 = vunpack.c.l.b16 %v124
  %v588 = vunpack.c.l.b16 %v125
  %v589 = vunpack.c.l.b16 %v126
  %v590 = vunpack.c.l.b16 %v127
  %v591 = vunpack.c.l.b16 %v128
  %v592 = vunpack.c.l.b16 %v129
  %v593 = vunpack.c.l.b16 %v130
  %v594 = vunpack.c.l.b16 %v131
  %v595 = vunpack.c.l.b16 %v132
  %v596 = vunpack.c.l.b16 %v133
  %v597 = vunpack.c.l.b16 %v134
  %v598 = vunpack.c.l.b16 %v135
  %v599 = vunpack.c.l.b16 %v136
  %v600 = vunpack.c.l.b16 %v137
  %v601 = vunpack.c.l.b16 %v138
  %v602 = vunpack.c.l.b16 %v139
  %v603 = vunpack.c.l.b16 %v140
  %v604 = vunpack.c.l.b16 %v141
  %v605 = vunpack.c.l.b16 %v142
  %v606 = vunpack.c.l.b16 %v143
  %v607 = vunpack.c.l.b16 %v144
  %v608 = vunpack.c.l.b16 %v145
  %v609 = vunpack.c.l.b16 %v146
  %v610 = vunpack.c.l.b16 %v147
  %v611 = vunpack.c.l.b16 %v148
  %v612 = vunpack.c.l.b16 %v149
  %v613 = vunpack.c.l.b16 %v150
  %v614 = vunpack.c.l.b16 %v151
  %v615 = vunpack.c.l.b16 %v152
  %v616 = vunpack.c.l.b16 %v153
  %v617 = vunpack.c.l.b16 %v154
  %v618 = vunpack.c.l.b16 %v155
  %v619 = vunpack.c.l.b16 %v156
  %v620 = vunpack.c.l.b16 %v157
  %v621 = vunpack.c.l.b16 %v158
  %v622 = vunpack.c.l.b16 %v159
  %v623 = vunpack.c.l.b16 %v160
  %v624 = vunpack.c.l.b16 %v161
  %v625 = vunpack.c.l.b16 %v162
  %v626 = vunpack.c.l.b16 %v163
  %v627 = vunpack.c.l.b16 %v164
  %v628 = vunpack.c.l.b16 %v165
  %v629 = vunpack.c.l.b16 %v166
  %v630 = vunpack.c.l.b16 %v167
  %v631 = vunpack.c.l.b16 %v168
  %v632 = vunpack.c.l.b16 %v169
  %v633 = vunpack.c.l.b16 %v170
  %v634 = vunpack.c.l.b16 %v171
  %v635 = vunpack.c.l.b16 %v172
  %v636 = vunpack.c.l.b16 %v173
  %v637 = vunpack.c.l.b16 %v174
  %v638 = vunpack.c.l.b16 %v175
  %v639 = vunpack.c.l.b16 %v176
  %v640 = vunpack.c.l.b16 %v177
  %v641 = vunpack.c.l.b16 %v178
  %v642 = vunpack.c.l.b16 %v179
  %v643 = vunpack.c.l.b16 %v180
  %v644 = vunpack.c.l.b16 %v181
  %v645 = vunpack.c.l.b16 %v182
  %v646 = vunpack.c.l.b16 %v183
  %v647 = vunpack.c.l.b16 %v184
  %v648 = vpack.c.b16 %v521, %v520
  %v649 = vpack.c.b16 %v523, %v522
  %v650 = vpack.c.b16 %v525, %v524
  %v651 = vpack.c.b16 %v527, %v526
  %v652 = vpack.c.b16 %v529, %v528
  %v653 = vpack.c.b16 %v531, %v530
  %v654 = vpack.c.b16 %v533, %v532
  %v655 = vpack.c.b16 %v535, %v534
  %v656 = vpack.c.b16 %v537, %v536
  %v657 = vpack.c.b16 %v539, %v538
  %v658 = vpack.c.b16 %v541, %v540
  %v659 = vpack.c.b16 %v543, %v542
  %v660 = vpack.c.b16 %v545, %v544
  %v661 = vpack.c.b16 %v547, %v546
  %v662 = vpack.c.b16 %v549, %v548
  %v663 = vpack.c.b16 %v551, %v550
  %v664 = vpack.c.b16 %v553, %v552
  %v665 = vpack.c.b16 %v555, %v554
  %v666 = vpack.c.b16 %v557, %v556
  %v667 = vpack.c.b16 %v559, %v558
  %v668 = vpack.c.b16 %v561, %v560
  %v669 = vpack.c.b16 %v563, %v562
  %v670 = vpack.c.b16 %v565, %v564
  %v671 = vpack.c.b16 %v567, %v566
  %v672 = vpack.c.b16 %v569, %v568
  %v673 = vpack.c.b16 %v571, %v570
  %v674 = vpack.c.b16 %v573, %v572
  %v675 = vpack.c.b16 %v575, %v574
  %v676 = vpack.c.b16 %v577, %v576
  %v677 = vpack.c.b16 %v579, %v578
  %v678 = vpack.c.b16 %v581, %v580
  %v679 = vpack.c.b16 %v583, %v582
  %v680 = vpack.c.b16 %v585, %v584
  %v681 = vpack.c.b16 %v587, %v586
  %v682 = vpack.c.b16 %v589, %v588
  %v683 = vpack.c.b16 %v591, %v590
  %v684 = vpack.c.b16 %v593, %v592
  %v685 = vpack.c.b16 %v595, %v594
  %v686 = vpack.c.b16 %v597, %v596
  %v687 = vpack.c.b16 %v599, %v598
  %v688 = vpack.c.b16 %v601, %v600
  %v689 = vpack.c.b16 %v603, %v602
  %v690 = vpack.c.b16 %v605, %v604
  %v691 = vpack.c.b16 %v607, %v606
  %v692 = vpack.c.b16 %v609, %v608
  %v693 = vpack.c.b16 %v611, %v610
  %v694 = vpack.c.b16 %v613, %v612
  %v695 = vpack.c.b16 %v615, %v614
  %v696 = vpack.c.b16 %v617, %v616
  %v697 = vpack.c.b16 %v619, %v618
  %v698 = vpack.c.b16 %v621, %v620
  %v699 = vpack.c.b16 %v623, %v622
  %v700 = vpack.c.b16 %v625, %v624
  %v701 = vpack.c.b16 %v627, %v626
  %v702 = vpack.c.b16 %v629, %v628
  %v703 = vpack.c.b16 %v631, %v630
  %v704 = vpack.c.b16 %v633, %v632
  %v705 = vpack.c.b16 %v635, %v634
  %v706 = vpack.c.b16 %v637, %v636
  %v707 = vpack.c.b16 %v639, %v638
  %v708 = vpack.c.b16 %v641, %v640
  %v709 = vpack.c.b16 %v643, %v642
  %v710 = vpack.c.b16 %v645, %v644
  %v711 = vpack.c.b16 %v647, %v646
  %776 = vmatprep.subr.bf16.mxu0 0
  %777 = vmatpush1.bf16.msra.mxu0 %v648
  %778 = vmatprep.subr.bf16.mxu0 0
  %779 = vmatpush1.bf16.msra.mxu0 %v649
  %780 = vmatprep.subr.bf16.mxu0 0
  %781 = vmatpush1.bf16.msra.mxu0 %v650
  %782 = vmatprep.subr.bf16.mxu0 0
  %783 = vmatpush1.bf16.msra.mxu0 %v651
  %784 = vmatprep.subr.bf16.mxu0 0
  %785 = vmatpush1.bf16.msra.mxu0 %v652
  %786 = vmatprep.subr.bf16.mxu0 0
  %787 = vmatpush1.bf16.msra.mxu0 %v653
  %788 = vmatprep.subr.bf16.mxu0 0
  %789 = vmatpush1.bf16.msra.mxu0 %v654
  %790 = vmatprep.subr.bf16.mxu0 0
  %791 = vmatpush1.bf16.msra.mxu0 %v655
  %792 = vmatprep.subr.bf16.mxu0 0
  %793 = vmatpush1.bf16.msra.mxu0 %v656
  %794 = vmatprep.subr.bf16.mxu0 0
  %795 = vmatpush1.bf16.msra.mxu0 %v657
  %796 = vmatprep.subr.bf16.mxu0 0
  %797 = vmatpush1.bf16.msra.mxu0 %v658
  %798 = vmatprep.subr.bf16.mxu0 0
  %799 = vmatpush1.bf16.msra.mxu0 %v659
  %800 = vmatprep.subr.bf16.mxu0 0
  %801 = vmatpush1.bf16.msra.mxu0 %v660
  %802 = vmatprep.subr.bf16.mxu0 0
  %803 = vmatpush1.bf16.msra.mxu0 %v661
  %804 = vmatprep.subr.bf16.mxu0 0
  %805 = vmatpush1.bf16.msra.mxu0 %v662
  %806 = vmatprep.subr.bf16.mxu0 0
  %807 = vmatpush1.bf16.msra.mxu0 %v663
  %808 = vmatprep.mubr.bf16.mxu0 %v313
  %809 = vmatmul.mubr.bf16.gmra.mrb[0].mxu0 %v312
  %v810 = vpop.f32.mrb[0].mxu0
  %v811 = vadd.f32 %v190, %v810
  %v812 = vpop.f32.mrb[0].mxu0
  %v813 = vpop.f32.mrb[0].mxu0
  %v814 = vadd.f32 %v190, %v813
  %v815 = vpop.f32.mrb[0].mxu0
  %816 = vmatprep.mubr.bf16.mxu0 %v321
  %817 = vmatmul.mubr.bf16.gmra.mrb[0].mxu0 %v320
  %v818 = vpop.f32.mrb[0].mxu0
  %v819 = vadd.f32 %v190, %v818
  %v820 = vpop.f32.mrb[0].mxu0
  %v821 = vpop.f32.mrb[0].mxu0
  %v822 = vadd.f32 %v190, %v821
  %v823 = vpop.f32.mrb[0].mxu0
  %824 = vmatprep.mubr.bf16.mxu0 %v329
  %825 = vmatmul.mubr.bf16.gmra.mrb[0].mxu0 %v328
  %v826 = vpop.f32.mrb[0].mxu0
  %v827 = vadd.f32 %v190, %v826
  %v828 = vpop.f32.mrb[0].mxu0
  %v829 = vpop.f32.mrb[0].mxu0
  %v830 = vadd.f32 %v190, %v829
  %v831 = vpop.f32.mrb[0].mxu0
  %832 = vmatprep.mubr.bf16.mxu0 %v337
  %833 = vmatmul.mubr.bf16.gmra.mrb[0].mxu0 %v336
  %v834 = vpop.f32.mrb[0].mxu0
  %v835 = vadd.f32 %v190, %v834
  %v836 = vpop.f32.mrb[0].mxu0
  %v837 = vpop.f32.mrb[0].mxu0
  %v838 = vadd.f32 %v190, %v837
  %v839 = vpop.f32.mrb[0].mxu0
  %840 = vmatprep.mubr.bf16.mxu0 %v345
  %841 = vmatmul.mubr.bf16.gmra.mrb[0].mxu0 %v344
  %v842 = vpop.f32.mrb[0].mxu0
  %v843 = vadd.f32 %v190, %v842
  %v844 = vpop.f32.mrb[0].mxu0
  %v845 = vpop.f32.mrb[0].mxu0
  %v846 = vadd.f32 %v190, %v845
  %v847 = vpop.f32.mrb[0].mxu0
  %848 = vdwg.mxu0
  %849 = vmatprep.subr.bf16.mxu0 0
  %850 = vmatpush1.bf16.msra.mxu0 %v664
  %851 = vmatprep.subr.bf16.mxu0 0
  %852 = vmatpush1.bf16.msra.mxu0 %v665
  %853 = vmatprep.subr.bf16.mxu0 0
  %854 = vmatpush1.bf16.msra.mxu0 %v666
  %855 = vmatprep.subr.bf16.mxu0 0
  %856 = vmatpush1.bf16.msra.mxu0 %v667
  %857 = vmatprep.subr.bf16.mxu0 0
  %858 = vmatpush1.bf16.msra.mxu0 %v668
  %859 = vmatprep.subr.bf16.mxu0 0
  %860 = vmatpush1.bf16.msra.mxu0 %v669
  %861 = vmatprep.subr.bf16.mxu0 0
  %862 = vmatpush1.bf16.msra.mxu0 %v670
  %863 = vmatprep.subr.bf16.mxu0 0
  %864 = vmatpush1.bf16.msra.mxu0 %v671
  %865 = vmatprep.subr.bf16.mxu0 0
  %866 = vmatpush1.bf16.msra.mxu0 %v672
  %867 = vmatprep.subr.bf16.mxu0 0
  %868 = vmatpush1.bf16.msra.mxu0 %v673
  %869 = vmatprep.subr.bf16.mxu0 0
  %870 = vmatpush1.bf16.msra.mxu0 %v674
  %871 = vmatprep.subr.bf16.mxu0 0
  %872 = vmatpush1.bf16.msra.mxu0 %v675
  %873 = vmatprep.subr.bf16.mxu0 0
  %874 = vmatpush1.bf16.msra.mxu0 %v676
  %875 = vmatprep.subr.bf16.mxu0 0
  %876 = vmatpush1.bf16.msra.mxu0 %v677
  %877 = vmatprep.subr.bf16.mxu0 0
  %878 = vmatpush1.bf16.msra.mxu0 %v678
  %879 = vmatprep.subr.bf16.mxu0 0
  %880 = vmatpush1.bf16.msra.mxu0 %v679
  %881 = vmatprep.mubr.bf16.mxu0 %v315
  %882 = vmatmul.mubr.bf16.gmra.mrb[0].mxu0 %v314
  %v883 = vpop.f32.mrb[0].mxu0
  %v884 = vadd.f32 %v811, %v883
  %v885 = vpop.f32.mrb[0].mxu0
  %v886 = vpop.f32.mrb[0].mxu0
  %v887 = vadd.f32 %v814, %v886
  %v888 = vpop.f32.mrb[0].mxu0
  %889 = vmatprep.mubr.bf16.mxu0 %v323
  %890 = vmatmul.mubr.bf16.gmra.mrb[0].mxu0 %v322
  %v891 = vpop.f32.mrb[0].mxu0
  %v892 = vadd.f32 %v819, %v891
  %v893 = vpop.f32.mrb[0].mxu0
  %v894 = vpop.f32.mrb[0].mxu0
  %v895 = vadd.f32 %v822, %v894
  %v896 = vpop.f32.mrb[0].mxu0
  %897 = vmatprep.mubr.bf16.mxu0 %v331
  %898 = vmatmul.mubr.bf16.gmra.mrb[0].mxu0 %v330
  %v899 = vpop.f32.mrb[0].mxu0
  %v900 = vadd.f32 %v827, %v899
  %v901 = vpop.f32.mrb[0].mxu0
  %v902 = vpop.f32.mrb[0].mxu0
  %v903 = vadd.f32 %v830, %v902
  %v904 = vpop.f32.mrb[0].mxu0
  %905 = vmatprep.mubr.bf16.mxu0 %v339
  %906 = vmatmul.mubr.bf16.gmra.mrb[0].mxu0 %v338
  %v907 = vpop.f32.mrb[0].mxu0
  %v908 = vadd.f32 %v835, %v907
  %v909 = vpop.f32.mrb[0].mxu0
  %v910 = vpop.f32.mrb[0].mxu0
  %v911 = vadd.f32 %v838, %v910
  %v912 = vpop.f32.mrb[0].mxu0
  %913 = vmatprep.mubr.bf16.mxu0 %v347
  %914 = vmatmul.mubr.bf16.gmra.mrb[0].mxu0 %v346
  %v915 = vpop.f32.mrb[0].mxu0
  %v916 = vadd.f32 %v843, %v915
  %v917 = vpop.f32.mrb[0].mxu0
  %v918 = vpop.f32.mrb[0].mxu0
  %v919 = vadd.f32 %v846, %v918
  %v920 = vpop.f32.mrb[0].mxu0
  %921 = vdwg.mxu0
  %922 = vmatprep.subr.bf16.mxu0 0
  %923 = vmatpush1.bf16.msra.mxu0 %v680
  %924 = vmatprep.subr.bf16.mxu0 0
  %925 = vmatpush1.bf16.msra.mxu0 %v681
  %926 = vmatprep.subr.bf16.mxu0 0
  %927 = vmatpush1.bf16.msra.mxu0 %v682
  %928 = vmatprep.subr.bf16.mxu0 0
  %929 = vmatpush1.bf16.msra.mxu0 %v683
  %930 = vmatprep.subr.bf16.mxu0 0
  %931 = vmatpush1.bf16.msra.mxu0 %v684
  %932 = vmatprep.subr.bf16.mxu0 0
  %933 = vmatpush1.bf16.msra.mxu0 %v685
  %934 = vmatprep.subr.bf16.mxu0 0
  %935 = vmatpush1.bf16.msra.mxu0 %v686
  %936 = vmatprep.subr.bf16.mxu0 0
  %937 = vmatpush1.bf16.msra.mxu0 %v687
  %938 = vmatprep.subr.bf16.mxu0 0
  %939 = vmatpush1.bf16.msra.mxu0 %v688
  %940 = vmatprep.subr.bf16.mxu0 0
  %941 = vmatpush1.bf16.msra.mxu0 %v689
  %942 = vmatprep.subr.bf16.mxu0 0
  %943 = vmatpush1.bf16.msra.mxu0 %v690
  %944 = vmatprep.subr.bf16.mxu0 0
  %945 = vmatpush1.bf16.msra.mxu0 %v691
  %946 = vmatprep.subr.bf16.mxu0 0
  %947 = vmatpush1.bf16.msra.mxu0 %v692
  %948 = vmatprep.subr.bf16.mxu0 0
  %949 = vmatpush1.bf16.msra.mxu0 %v693
  %950 = vmatprep.subr.bf16.mxu0 0
  %951 = vmatpush1.bf16.msra.mxu0 %v694
  %952 = vmatprep.subr.bf16.mxu0 0
  %953 = vmatpush1.bf16.msra.mxu0 %v695
  %954 = vmatprep.mubr.bf16.mxu0 %v317
  %955 = vmatmul.mubr.bf16.gmra.mrb[0].mxu0 %v316
  %v956 = vpop.f32.mrb[0].mxu0
  %v957 = vadd.f32 %v884, %v956
  %v958 = vpop.f32.mrb[0].mxu0
  %v959 = vpop.f32.mrb[0].mxu0
  %v960 = vadd.f32 %v887, %v959
  %v961 = vpop.f32.mrb[0].mxu0
  %962 = vmatprep.mubr.bf16.mxu0 %v325
  %963 = vmatmul.mubr.bf16.gmra.mrb[0].mxu0 %v324
  %v964 = vpop.f32.mrb[0].mxu0
  %v965 = vadd.f32 %v892, %v964
  %v966 = vpop.f32.mrb[0].mxu0
  %v967 = vpop.f32.mrb[0].mxu0
  %v968 = vadd.f32 %v895, %v967
  %v969 = vpop.f32.mrb[0].mxu0
  %970 = vmatprep.mubr.bf16.mxu0 %v333
  %971 = vmatmul.mubr.bf16.gmra.mrb[0].mxu0 %v332
  %v972 = vpop.f32.mrb[0].mxu0
  %v973 = vadd.f32 %v900, %v972
  %v974 = vpop.f32.mrb[0].mxu0
  %v975 = vpop.f32.mrb[0].mxu0
  %v976 = vadd.f32 %v903, %v975
  %v977 = vpop.f32.mrb[0].mxu0
  %978 = vmatprep.mubr.bf16.mxu0 %v341
  %979 = vmatmul.mubr.bf16.gmra.mrb[0].mxu0 %v340
  %v980 = vpop.f32.mrb[0].mxu0
  %v981 = vadd.f32 %v908, %v980
  %v982 = vpop.f32.mrb[0].mxu0
  %v983 = vpop.f32.mrb[0].mxu0
  %v984 = vadd.f32 %v911, %v983
  %v985 = vpop.f32.mrb[0].mxu0
  %986 = vmatprep.mubr.bf16.mxu0 %v349
  %987 = vmatmul.mubr.bf16.gmra.mrb[0].mxu0 %v348
  %v988 = vpop.f32.mrb[0].mxu0
  %v989 = vadd.f32 %v916, %v988
  %v990 = vpop.f32.mrb[0].mxu0
  %v991 = vpop.f32.mrb[0].mxu0
  %v992 = vadd.f32 %v919, %v991
  %v993 = vpop.f32.mrb[0].mxu0
  %994 = vdwg.mxu0
  %995 = vmatprep.subr.bf16.mxu0 0
  %996 = vmatpush1.bf16.msra.mxu0 %v696
  %997 = vmatprep.subr.bf16.mxu0 0
  %998 = vmatpush1.bf16.msra.mxu0 %v697
  %999 = vmatprep.subr.bf16.mxu0 0
  %1000 = vmatpush1.bf16.msra.mxu0 %v698
  %1001 = vmatprep.subr.bf16.mxu0 0
  %1002 = vmatpush1.bf16.msra.mxu0 %v699
  %1003 = vmatprep.subr.bf16.mxu0 0
  %1004 = vmatpush1.bf16.msra.mxu0 %v700
  %1005 = vmatprep.subr.bf16.mxu0 0
  %1006 = vmatpush1.bf16.msra.mxu0 %v701
  %1007 = vmatprep.subr.bf16.mxu0 0
  %1008 = vmatpush1.bf16.msra.mxu0 %v702
  %1009 = vmatprep.subr.bf16.mxu0 0
  %1010 = vmatpush1.bf16.msra.mxu0 %v703
  %1011 = vmatprep.subr.bf16.mxu0 0
  %1012 = vmatpush1.bf16.msra.mxu0 %v704
  %1013 = vmatprep.subr.bf16.mxu0 0
  %1014 = vmatpush1.bf16.msra.mxu0 %v705
  %1015 = vmatprep.subr.bf16.mxu0 0
  %1016 = vmatpush1.bf16.msra.mxu0 %v706
  %1017 = vmatprep.subr.bf16.mxu0 0
  %1018 = vmatpush1.bf16.msra.mxu0 %v707
  %1019 = vmatprep.subr.bf16.mxu0 0
  %1020 = vmatpush1.bf16.msra.mxu0 %v708
  %1021 = vmatprep.subr.bf16.mxu0 0
  %1022 = vmatpush1.bf16.msra.mxu0 %v709
  %1023 = vmatprep.subr.bf16.mxu0 0
  %1024 = vmatpush1.bf16.msra.mxu0 %v710
  %1025 = vmatprep.subr.bf16.mxu0 0
  %1026 = vmatpush1.bf16.msra.mxu0 %v711
  %1027 = vmatprep.mubr.bf16.mxu0 %v319
  %1028 = vmatmul.mubr.bf16.gmra.mrb[0].mxu0 %v318
  %v1029 = vpop.f32.mrb[0].mxu0
  %v1030 = vadd.f32 %v957, %v1029
  %v1031 = vpop.f32.mrb[0].mxu0
  %v1032 = vpop.f32.mrb[0].mxu0
  %v1033 = vadd.f32 %v960, %v1032
  %v1034 = vpop.f32.mrb[0].mxu0
  %1035 = vmatprep.mubr.bf16.mxu0 %v327
  %1036 = vmatmul.mubr.bf16.gmra.mrb[0].mxu0 %v326
  %v1037 = vpop.f32.mrb[0].mxu0
  %v1038 = vadd.f32 %v965, %v1037
  %v1039 = vpop.f32.mrb[0].mxu0
  %v1040 = vpop.f32.mrb[0].mxu0
  %v1041 = vadd.f32 %v968, %v1040
  %v1042 = vpop.f32.mrb[0].mxu0
  %1043 = vmatprep.mubr.bf16.mxu0 %v335
  %1044 = vmatmul.mubr.bf16.gmra.mrb[0].mxu0 %v334
  %v1045 = vpop.f32.mrb[0].mxu0
  %v1046 = vadd.f32 %v973, %v1045
  %v1047 = vpop.f32.mrb[0].mxu0
  %v1048 = vpop.f32.mrb[0].mxu0
  %v1049 = vadd.f32 %v976, %v1048
  %v1050 = vpop.f32.mrb[0].mxu0
  %1051 = vmatprep.mubr.bf16.mxu0 %v343
  %1052 = vmatmul.mubr.bf16.gmra.mrb[0].mxu0 %v342
  %v1053 = vpop.f32.mrb[0].mxu0
  %v1054 = vadd.f32 %v981, %v1053
  %v1055 = vpop.f32.mrb[0].mxu0
  %v1056 = vpop.f32.mrb[0].mxu0
  %v1057 = vadd.f32 %v984, %v1056
  %v1058 = vpop.f32.mrb[0].mxu0
  %1059 = vmatprep.mubr.bf16.mxu0 %v351
  %1060 = vmatmul.mubr.bf16.gmra.mrb[0].mxu0 %v350
  %v1061 = vpop.f32.mrb[0].mxu0
  %v1062 = vadd.f32 %v989, %v1061
  %v1063 = vpop.f32.mrb[0].mxu0
  %v1064 = vpop.f32.mrb[0].mxu0
  %v1065 = vadd.f32 %v992, %v1064
  %v1066 = vpop.f32.mrb[0].mxu0
  %1067 = vdwg.mxu0
  %vm1068 = vcmask 7168
  %1069 = vst.msk [vmem:[%s3] sm:$0xff] %vm1068, %v1030
  %1070 = vst.msk [vmem:[%s3 + $0x8] sm:$0xff] %vm1068, %v1033
  %1071 = vst.msk [vmem:[%s3 + $0x10] sm:$0xff] %vm1068, %v1038
  %1072 = vst.msk [vmem:[%s3 + $0x18] sm:$0xff] %vm1068, %v1041
  %1073 = vst.msk [vmem:[%s3 + $0x20] sm:$0xff] %vm1068, %v1046
  %1074 = vst.msk [vmem:[%s3 + $0x28] sm:$0xff] %vm1068, %v1049
  %1075 = vst.msk [vmem:[%s3 + $0x30] sm:$0xff] %vm1068, %v1054
  %1076 = vst.msk [vmem:[%s3 + $0x38] sm:$0xff] %vm1068, %v1057
  %1077 = vst.msk [vmem:[%s3 + $0x40] sm:$0xff] %vm1068, %v1062
  %1078 = vst.msk [vmem:[%s3 + $0x48] sm:$0xff] %vm1068, %v1065
  // Predicated region
  $region14: #{nlayer_discriminator_forward.9} parent=0 // pred_check
    _
  $region15: #{nlayer_discriminator_forward.9} parent=0 // pred_check_branch
    %1080 = sbr.rel (0) target = $region17
  $region16: #{nlayer_discriminator_forward.9} parent=0 // pred_region
    _
  $region17: #{nlayer_discriminator_forward.9} parent=0 // pred_fallthru
    _
  // Predicated region
  $region18: #{nlayer_discriminator_forward.9} parent=0 // pred_check
    _
  $region19: #{nlayer_discriminator_forward.9} parent=0 // pred_check_branch
    %1082 = sbr.rel (0) target = $region21
  $region20: #{nlayer_discriminator_forward.9} parent=0 // pred_region
    _
  $region21: #{nlayer_discriminator_forward.9} parent=0 // pred_fallthru
    _

</llo_original>
